<compile_context>
chip_gen: v6e
topology: v6e:2x2x1
jax: 0.10.0
libtpu: 0.0.40
codegen_flags: <defaults>
</compile_context>

<pallas_src>
import functools
import numpy as np

import jax
import jax.numpy as jnp
from jax.experimental import pallas as pl
from jax.experimental.pallas import tpu as pltpu

VMEM = pltpu.MemorySpace.VMEM
SMEM = pltpu.MemorySpace.SMEM

HIDDEN_DIM = 60            # hard-coded in MLP_Discriminator.__init__
HP = 128                   # hidden dim zero-padded to a full lane width
LANES = 128                # packed-output lane width / aux hidden width
VINIT_DIM = 128            # v_init = Linear(emb_dim, 128) (non-backbone path)
MXU_DTYPE = jnp.bfloat16   # MXU operand dtype; accumulation stays f32
BN_EPS = 1e-5

_INIT_CPARAMS = pltpu.CompilerParams(vmem_limit_bytes=32 * 1024 * 1024)


def _vspecs(n):
    return [pl.BlockSpec(memory_space=VMEM) for _ in range(n)]


def _dot(a, b):
    # bf16 MXU path, f32 accumulation (hot path).
    return jnp.dot(a.astype(MXU_DTYPE), b.astype(MXU_DTYPE),
                   preferred_element_type=jnp.float32)


def _dot_f32(a, b):
    # f32 matmul (init-only parameter preprocessing; preserve numerics).
    return jnp.dot(a, b, preferred_element_type=jnp.float32)


def _pad2(x, r, c):
    return jnp.pad(x, ((0, r - x.shape[0]), (0, c - x.shape[1])))


def _pad_rows8(x):
    return jnp.pad(x, ((0, (-x.shape[0]) % 8), (0, 0)))


# ------------------------- init-only Pallas kernels -------------------------

def _gcn_kernel(w_ref, ka_ref, g1_ref, g2_ref, o_ref):
    # 2-layer GCN over the (C, P, P) per-class weight slabs, batched as a
    # (C*P, P) slab.  The class-adjacency mix is expressed as kron(adj, I_P)
    # so every step is a single f32 MXU call (runs once, at init).
    s1 = _dot_f32(w_ref[...], g1_ref[...])              # (C*P, P)
    h1 = jnp.maximum(_dot_f32(ka_ref[...], s1), 0.0)    # adjacency mix + relu
    s2 = _dot_f32(h1, g2_ref[...])                      # (C*P, P)
    o_ref[...] = _dot_f32(ka_ref[...], s2)              # adjacency mix


def label_gcn(w_flat, kron_adj, g1, g2):
    return pl.pallas_call(
        _gcn_kernel,
        out_shape=jax.ShapeDtypeStruct(w_flat.shape, jnp.float32),
        in_specs=_vspecs(4),
        out_specs=pl.BlockSpec(memory_space=VMEM),
        compiler_params=_INIT_CPARAMS,
    )(w_flat, kron_adj, g1, g2)


def _linear_kernel(x_ref, w_ref, b_ref, o_ref, *, relu_in):
    x = x_ref[...]
    if relu_in:
        x = jnp.maximum(x, 0.0)
    o_ref[...] = _dot_f32(x, w_ref[...]) + b_ref[...]


def linear(x, w, b, *, relu_in=False):
    return pl.pallas_call(
        functools.partial(_linear_kernel, relu_in=relu_in),
        out_shape=jax.ShapeDtypeStruct((x.shape[0], w.shape[1]), jnp.float32),
        in_specs=_vspecs(3),
        out_specs=pl.BlockSpec(memory_space=VMEM),
        compiler_params=_INIT_CPARAMS,
    )(x, w, b)


def _item_kernel(x_ref, w1_ref, b1_ref, w2_ref, b2_ref, o_ref):
    # fused v_init -> relu -> lin_v over ALL items (init-only; v_hidden table
    # is cached so this never runs in the hot path).
    h = jnp.maximum(_dot_f32(x_ref[...], w1_ref[...]) + b1_ref[...], 0.0)
    o_ref[...] = _dot_f32(h, w2_ref[...]) + b2_ref[...]


def item_mlp(x, w1, b1, w2, b2):
    return pl.pallas_call(
        _item_kernel,
        out_shape=jax.ShapeDtypeStruct((x.shape[0], w2.shape[1]), jnp.float32),
        in_specs=_vspecs(5),
        out_specs=pl.BlockSpec(memory_space=VMEM),
        compiler_params=_INIT_CPARAMS,
    )(x, w1, b1, w2, b2)


# --------------------------- hot-path fused kernel ---------------------------

def _fused_kernel(uix_ref, vix_ref, aix_ref,
                  ut_ref, vt_ref, ct_ref,
                  wt_ref, ind_ref,
                  w1u_ref, w1v_ref, w1c_ref, b1_ref,
                  w2_ref, b2_ref, o_ref, *, n, num_classes):
    C = num_classes

    def gather(tab_ref, idx_ref):
        # N is small & static: unrolled dynamic-row loads from the VMEM table
        # using SMEM scalar indices (no host round-trip, no XLA gather HLOs).
        rows = [tab_ref[pl.ds(idx_ref[i], 1), :] for i in range(n)]
        return jnp.concatenate(rows, axis=0)                    # (n, HP) f32

    u = gather(ut_ref, uix_ref)       # lin_u(eye)[u_idx]
    v = gather(vt_ref, vix_ref)       # lin_v(relu(v_init(item_emb)))[v_idx]
    cl = gather(ct_ref, aix_ref)      # lin_c(relu(GCN(W)))[anno_idx]

    # class-wise bilinear score: one (n,HP)@(HP,C*HP) MXU call, then the
    # per-class reduction as a second tiny MXU call against the constant
    # block indicator (score lands at lanes 0:C and again at lanes C:2C).
    t = _dot(u, wt_ref[...])                                    # (n, C*HP) f32
    tv = t * jnp.concatenate([v] * C, axis=1)                   # (n, C*HP) f32
    s2 = _dot(tv, ind_ref[...])                                 # (n, 128)  f32

    # aux head: BatchNorm1d(3H, affine=False) with batch stats, computed per
    # chunk (equivalent since BN normalizes each column independently), then
    # the first Linear as three split matmuls (no lane-axis concat of u/v/cls).
    def bn(x):
        m = jnp.mean(x, axis=0, keepdims=True)
        var = jnp.mean((x - m) ** 2, axis=0, keepdims=True)
        return (x - m) * jax.lax.rsqrt(var + BN_EPS)

    z = (_dot(bn(u), w1u_ref[...]) + _dot(bn(v), w1v_ref[...])
         + _dot(bn(cl), w1c_ref[...]) + b1_ref[...])
    z = jnp.maximum(z, 0.0)
    latent = _dot(z, w2_ref[...]) + b2_ref[...]   # (n,128), classes @ lanes 2C:3C

    # lane-dense packed output: [score | sigmoid(score) | latent | 0 ...]
    lane = jax.lax.broadcasted_iota(jnp.int32, (n, LANES), 1)
    o_ref[...] = jnp.where(lane < C, s2,
                           jnp.where(lane < 2 * C, jax.nn.sigmoid(s2), latent))


@functools.partial(jax.jit, static_argnums=(0,))
def _forward(num_classes, params, u_idx, v_idx, anno_idx):
    (u_tab, v_tab, c_tab, w_t, ind, w1u, w1v, w1c, b1, w2, b2) = params
    n = u_idx.shape[0]
    packed = pl.pallas_call(
        functools.partial(_fused_kernel, n=n, num_classes=num_classes),
        out_shape=jax.ShapeDtypeStruct((n, LANES), jnp.float32),
        in_specs=[pl.BlockSpec(memory_space=SMEM)] * 3 + _vspecs(11),
        out_specs=pl.BlockSpec(memory_space=VMEM),
    )(u_idx, v_idx, anno_idx, u_tab, v_tab, c_tab, w_t, ind,
      w1u, w1v, w1c, b1, w2, b2)
    C = num_classes
    validity_score = packed[:, 0:C]
    validity = packed[:, C:2 * C]
    latent_code = packed[:, 2 * C:3 * C]
    return validity, validity_score, latent_code


# ------------------------------- glue / model -------------------------------

class PallasCrowdDiscriminator:
    """JAX/Pallas port of Discriminator(MLP_Discriminator) forward."""

    def __init__(self, num_users, num_items, emb_dim, num_classes,
                 item_embed, label_adj, key):
        assert 3 * num_classes <= LANES
        H, P, C = HIDDEN_DIM, HP, num_classes
        self.num_classes = C

        item_emb = jnp.asarray(item_embed, jnp.float32)     # (num_items, emb_dim)
        adj = np.asarray(label_adj, np.float32)             # (C, C)

        ks = jax.random.split(key, 9)
        s = 0.1
        # per-class bilinear weights (torch.rand -> uniform[0,1)), zero-padded
        W = jax.random.uniform(ks[0], (C, H, H), jnp.float32)
        W = jnp.pad(W, ((0, 0), (0, P - H), (0, P - H)))
        # v_init: Linear(emb_dim,128); lin_v: Linear(128,H); lin_u: Linear(num_users,H)
        w_vinit = s * jax.random.normal(ks[1], (emb_dim, VINIT_DIM), jnp.float32)
        b_vinit = jnp.zeros((1, VINIT_DIM), jnp.float32)
        w_lin_v = _pad2(s * jax.random.normal(ks[2], (VINIT_DIM, H), jnp.float32),
                        VINIT_DIM, P)
        b_lin_v = jnp.zeros((1, P), jnp.float32)
        w_lin_u = _pad2(s * jax.random.normal(ks[3], (num_users, H), jnp.float32),
                        num_users, P)
        b_lin_u = jnp.zeros((1, P), jnp.float32)
        # label GCN layer weights (nfeat = nhid = H)
        gc1 = _pad2(s * jax.random.normal(ks[4], (H, H), jnp.float32), P, P)
        gc2 = _pad2(s * jax.random.normal(ks[5], (H, H), jnp.float32), P, P)
        # lin_c: Linear(H*H, H) — rows remapped to the padded (P,P) slab layout
        wlc = (s / H) * jax.random.normal(ks[6], (H * H, H), jnp.float32)
        w_lin_c = jnp.pad(wlc.reshape(H, H, H),
                          ((0, P - H), (0, P - H), (0, P - H))).reshape(P * P, P)
        b_lin_c = jnp.zeros((1, P), jnp.float32)
        # aux_output: Linear(3H,128) -> ReLU -> Linear(128,C); first layer split
        # per chunk, second layer padded so classes land at output lanes 2C:3C
        wa1 = s * jax.random.normal(ks[7], (3 * H, LANES), jnp.float32)
        w_a1u = _pad2(wa1[0:H], P, LANES)
        w_a1v = _pad2(wa1[H:2 * H], P, LANES)
        w_a1c = _pad2(wa1[2 * H:3 * H], P, LANES)
        b_a1 = jnp.zeros((1, LANES), jnp.float32)
        wa2 = s * jax.random.normal(ks[8], (LANES, C), jnp.float32)
        w_a2 = jnp.zeros((LANES, LANES), jnp.float32).at[:, 2 * C:3 * C].set(wa2)
        b_a2 = jnp.zeros((1, LANES), jnp.float32)

        # ---- parameter-only / static-input work: hoisted, computed ONCE ----
        # label GCN over the per-class bilinear weights (kron-structured mix)
        kron_adj = jnp.asarray(np.kron(adj, np.eye(P, dtype=np.float32)))
        Wg_flat = label_gcn(W.reshape(C * P, P), kron_adj, gc1, gc2)     # (C*P,P)
        Wg = Wg_flat.reshape(C, P, P)
        # bilinear weights pre-transposed to (P, C*P) for a single MXU call
        w_t = jnp.transpose(Wg, (1, 0, 2)).reshape(P, C * P)
        # cls table = lin_c(relu(Wg).reshape(C, P*P))
        cls_tab = linear(Wg.reshape(C, P * P), w_lin_c, b_lin_c, relu_in=True)
        # item table = lin_v(relu(v_init(item_emb)))  — all items, once
        v_tab = item_mlp(item_emb, w_vinit, b_vinit, w_lin_v, b_lin_v)
        # user table: lin_u(eye(num_users)) == w_lin_u + b_lin_u (no matmul)
        u_tab = w_lin_u + b_lin_u

        # constant block indicator: class-c block -> output lanes c and C+c
        ind = np.zeros((C * P, LANES), np.float32)
        for c in range(C):
            ind[c * P:(c + 1) * P, c] = 1.0
            ind[c * P:(c + 1) * P, C + c] = 1.0

        # Hot-path params.  MXU weight operands pre-cast to bf16 once; gather
        # tables kept f32 (they also feed the f32 BatchNorm / elementwise path).
        self.params = (
            _pad_rows8(u_tab), _pad_rows8(v_tab), _pad_rows8(cls_tab),
            w_t.astype(MXU_DTYPE), jnp.asarray(ind, MXU_DTYPE),
            w_a1u.astype(MXU_DTYPE), w_a1v.astype(MXU_DTYPE),
            w_a1c.astype(MXU_DTYPE), b_a1,
            w_a2.astype(MXU_DTYPE), b_a2,
        )
        jax.block_until_ready(self.params)

    def __call__(self, u_idx, v_idx, anno_idx):
        # fully device-side path: no host unique()/reindex round-trip,
        # one pallas_call per forward (gathers happen inside the kernel).
        u_idx = jnp.asarray(u_idx, jnp.int32)
        v_idx = jnp.asarray(v_idx, jnp.int32)
        anno_idx = jnp.asarray(anno_idx, jnp.int32)
        return _forward(self.num_classes, self.params, u_idx, v_idx, anno_idx)


# ----------------------------------- main -----------------------------------

if __name__ == "__main__":
    key = jax.random.PRNGKey(0)
    k_item, k_param = jax.random.split(key)

    num_users, num_items, emb_dim, num_classes = 8, 16, 32, 4
    N = 8  # number of (user, item, annotation) triples

    item_embed = jax.random.normal(k_item, (num_items, emb_dim), jnp.float32)

    # deterministic normalized label adjacency: D^-1/2 (A + I) D^-1/2, A = ones
    A = np.ones((num_classes, num_classes), np.float32) + np.eye(num_classes, dtype=np.float32)
    d = 1.0 / np.sqrt(A.sum(axis=1))
    label_adj = (A * d[:, None]) * d[None, :]

    disc = PallasCrowdDiscriminator(num_users, num_items, emb_dim, num_classes,
                                    item_embed, label_adj, k_param)

    u_idx = np.array([0, 1, 2, 3, 4, 5, 6, 7], np.int32) % num_users
    v_idx = np.array([3, 3, 7, 1, 9, 1, 12, 7], np.int32) % num_items  # repeats
    anno_idx = np.array([0, 1, 2, 3, 0, 1, 2, 3], np.int32) % num_classes

    validity, validity_score, latent_code = disc(u_idx, v_idx, anno_idx)
    jax.block_until_ready((validity, validity_score, latent_code))

    assert validity.shape == (N, num_classes)
    assert validity_score.shape == (N, num_classes)
    assert latent_code.shape == (N, num_classes)
    assert bool(jnp.all(jnp.isfinite(validity)))
    assert bool(jnp.all(jnp.isfinite(validity_score)))
    assert bool(jnp.all(jnp.isfinite(latent_code)))
    assert bool(jnp.all((validity >= 0.0) & (validity <= 1.0)))
    print("KERNEL_OK")
</pallas_src>

<mosaic_0001>
module attributes {stable_mosaic.version = 11 : i64} {
  func.func @_gcn_kernel(%arg0: memref<512x128xf32, #tpu.memory_space<vmem>>, %arg1: memref<512x512xf32, #tpu.memory_space<vmem>>, %arg2: memref<128x128xf32, #tpu.memory_space<vmem>>, %arg3: memref<128x128xf32, #tpu.memory_space<vmem>>, %arg4: memref<512x128xf32, #tpu.memory_space<vmem>>) attributes {dimension_semantics = [], scalar_prefetch = 0 : i64, scratch_operands = 0 : i64, tpu.core_type = #tpu.core_type<tc>} {
    %c0 = arith.constant 0 : index
    %c0_0 = arith.constant 0 : index
    %0 = vector.load %arg0[%c0, %c0_0] : memref<512x128xf32, #tpu.memory_space<vmem>>, vector<512x128xf32>
    %c0_1 = arith.constant 0 : index
    %c0_2 = arith.constant 0 : index
    %1 = vector.load %arg2[%c0_1, %c0_2] : memref<128x128xf32, #tpu.memory_space<vmem>>, vector<128x128xf32>
    %cst = arith.constant dense<0.000000e+00> : vector<512x128xf32>
    %2 = tpu.matmul %0, %1, %cst {dimension_numbers = #tpu.dot_dimension_numbers<[1], [0], [0], [1], [0, 0, 1, 1], [], []>} : vector<512x128xf32>, vector<128x128xf32>, vector<512x128xf32> -> vector<512x128xf32>
    %c0_3 = arith.constant 0 : index
    %c0_4 = arith.constant 0 : index
    %3 = vector.load %arg1[%c0_3, %c0_4] : memref<512x512xf32, #tpu.memory_space<vmem>>, vector<512x512xf32>
    %cst_5 = arith.constant dense<0.000000e+00> : vector<512x128xf32>
    %4 = tpu.matmul %3, %2, %cst_5 {dimension_numbers = #tpu.dot_dimension_numbers<[1], [0], [0], [1], [0, 0, 1, 1], [], []>} : vector<512x512xf32>, vector<512x128xf32>, vector<512x128xf32> -> vector<512x128xf32>
    %cst_6 = arith.constant 0.000000e+00 : f32
    %5 = vector.broadcast %cst_6 : f32 to vector<512x128xf32>
    %6 = arith.maximumf %4, %5 : vector<512x128xf32>
    %c0_7 = arith.constant 0 : index
    %c0_8 = arith.constant 0 : index
    %7 = vector.load %arg3[%c0_7, %c0_8] : memref<128x128xf32, #tpu.memory_space<vmem>>, vector<128x128xf32>
    %cst_9 = arith.constant dense<0.000000e+00> : vector<512x128xf32>
    %8 = tpu.matmul %6, %7, %cst_9 {dimension_numbers = #tpu.dot_dimension_numbers<[1], [0], [0], [1], [0, 0, 1, 1], [], []>} : vector<512x128xf32>, vector<128x128xf32>, vector<512x128xf32> -> vector<512x128xf32>
    %c0_10 = arith.constant 0 : index
    %c0_11 = arith.constant 0 : index
    %9 = vector.load %arg1[%c0_10, %c0_11] : memref<512x512xf32, #tpu.memory_space<vmem>>, vector<512x512xf32>
    %cst_12 = arith.constant dense<0.000000e+00> : vector<512x128xf32>
    %10 = tpu.matmul %9, %8, %cst_12 {dimension_numbers = #tpu.dot_dimension_numbers<[1], [0], [0], [1], [0, 0, 1, 1], [], []>} : vector<512x512xf32>, vector<512x128xf32>, vector<512x128xf32> -> vector<512x128xf32>
    %c0_13 = arith.constant 0 : index
    %c0_14 = arith.constant 0 : index
    %11 = vector.load %arg4[%c0_13, %c0_14] : memref<512x128xf32, #tpu.memory_space<vmem>>, vector<512x128xf32>
    tpu.vector_store %arg4[%c0_13, %c0_14], %10 {strides = array<i32>} : memref<512x128xf32, #tpu.memory_space<vmem>>, vector<512x128xf32>,
    return
  }
}

</mosaic_0001>

<llo_original>
// kernel: tpu_custom_call.1
$region0: #{tpu_custom_call.1}
  #allocation0 [shape = 'u32[]', space=smem, size = 0x4, offset = 0x4, fixed_abs, tag = 'smem constant byte address 0x4 - core index']
  #allocation1 [shape = 'u32[144,128]{1,0:T(1,128)}', space=vmem, size = 0x12000, scoped, tag = 'internal scratch']
  %s0 = inlined_call_operand.hbm [shape: f32[512,128], index: 0, kind: input, shape index: {}]
  %s1 = inlined_call_operand.hbm [shape: f32[512,512], index: 1, kind: input, shape index: {}]
  %s2 = inlined_call_operand.hbm [shape: f32[128,128], index: 2, kind: input, shape index: {}]
  %s3 = inlined_call_operand.hbm [shape: f32[128,128], index: 3, kind: input, shape index: {}]
  %s4 = inlined_call_operand.hbm [shape: f32[512,128], index: 4, kind: output, shape index: {}]
  %s5 = sld [smem:[#allocation0]]
  $region42: #{tpu_custom_call.1} parent=0
    _
  %s7 = ssub.s32 1, %s5
  %s8 = scalar_select 0, %s7, %s5
  $region1: #{tpu_custom_call.1} parent=0
    #allocation2 [shape = 'u8[262144]{0}', space=vmem, size = 0x40000, scoped, tag = 'input window, operand 0, single buffered']
    #allocation3 [shape = 's32[1]{0}', space=sflag, size = 0x4, scoped, tag = 'scoped memory for tpu_custom_call.1']
    #allocation4 [shape = 's32[1]{0}', space=sflag, size = 0x4, scoped, tag = 'scoped memory for tpu_custom_call.1']
    #allocation5 [shape = 'u8[1048576]{0}', space=vmem, size = 0x100000, scoped, tag = 'input window, operand 1, single buffered']
    #allocation6 [shape = 's32[1]{0}', space=sflag, size = 0x4, scoped, tag = 'scoped memory for tpu_custom_call.1']
    #allocation7 [shape = 'u8[65536]{0}', space=vmem, size = 0x10000, scoped, tag = 'input window, operand 2, single buffered']
    #allocation8 [shape = 'u8[65536]{0}', space=vmem, size = 0x10000, scoped, tag = 'input window, operand 3, single buffered']
    #allocation9 [shape = 's32[1]{0}', space=sflag, size = 0x4, scoped, tag = 'scoped memory for tpu_custom_call.1']
    #allocation10 [shape = 'u8[262144]{0}', space=vmem, size = 0x40000, scoped, tag = 'output window, operand 0, single buffered']
    %9 = vsyncpa [#allocation3], 0
    %10 = vsyncpa [#allocation6], 0
    %11 = vsyncpa [#allocation9], 0
    %12 = vsyncpa [#allocation4], 0
    // Predicated region
    $region2: #{tpu_custom_call.1} parent=1 // pred_check
      _
    $region3: #{tpu_custom_call.1} parent=1 // pred_check_branch
      %14 = sbr.rel (0) target = $region5
    $region4: #{tpu_custom_call.1} parent=1 // pred_region
      %s16 = ssub.s32 8192, 8192
      %17 = vsyncadd [#allocation3], %s16
      %s18 = sshll.u32 [#allocation2], 4
      %s19 = int_to_ptr.vmem [resolvable:$true] %s18
      %24 = dma.hbm_to_vmem [thread:$0]  %s0, 8192, %s19, [#allocation3], 128, 128, 8
    $region5: #{tpu_custom_call.1} parent=1 // pred_fallthru
      _
    // Predicated region
    $region6: #{tpu_custom_call.1} parent=1 // pred_check
      _
    $region7: #{tpu_custom_call.1} parent=1 // pred_check_branch
      %26 = sbr.rel (0) target = $region9
    $region8: #{tpu_custom_call.1} parent=1 // pred_region
      %s28 = ssub.s32 32768, 32768
      %29 = vsyncadd [#allocation6], %s28
      %s30 = sshll.u32 [#allocation5], 4
      %s31 = int_to_ptr.vmem [resolvable:$true] %s30
      %36 = dma.hbm_to_vmem [thread:$0]  %s1, 32768, %s31, [#allocation6], 512, 512, 32
    $region9: #{tpu_custom_call.1} parent=1 // pred_fallthru
      _
    // Predicated region
    $region10: #{tpu_custom_call.1} parent=1 // pred_check
      _
    $region11: #{tpu_custom_call.1} parent=1 // pred_check_branch
      %38 = sbr.rel (0) target = $region13
    $region12: #{tpu_custom_call.1} parent=1 // pred_region
      %s40 = ssub.s32 2048, 2048
      %41 = vsyncadd [#allocation6], %s40
      %s42 = sshll.u32 [#allocation7], 4
      %s43 = int_to_ptr.vmem [resolvable:$true] %s42
      %48 = dma.hbm_to_vmem [thread:$0]  %s2, 2048, %s43, [#allocation6], 128, 128, 8
    $region13: #{tpu_custom_call.1} parent=1 // pred_fallthru
      _
    // Predicated region
    $region14: #{tpu_custom_call.1} parent=1 // pred_check
      _
    $region15: #{tpu_custom_call.1} parent=1 // pred_check_branch
      %50 = sbr.rel (0) target = $region17
    $region16: #{tpu_custom_call.1} parent=1 // pred_region
      %s52 = ssub.s32 2048, 2048
      %53 = vsyncadd [#allocation9], %s52
      %s54 = sshll.u32 [#allocation8], 4
      %s55 = int_to_ptr.vmem [resolvable:$true] %s54
      %60 = dma.hbm_to_vmem [thread:$0]  %s3, 2048, %s55, [#allocation9], 128, 128, 8
    $region17: #{tpu_custom_call.1} parent=1 // pred_fallthru
      _
    // Predicated region
    $region18: #{tpu_custom_call.1} parent=1 // pred_check
      _
    $region19: #{tpu_custom_call.1} parent=1 // pred_check_branch
      %62 = sbr.rel (0) target = $region21
    $region20: #{tpu_custom_call.1} parent=1 // pred_region
      %63 = dma.done [#allocation3], 8192
    $region21: #{tpu_custom_call.1} parent=1 // pred_fallthru
      _
    // Predicated region
    $region22: #{tpu_custom_call.1} parent=1 // pred_check
      _
    $region23: #{tpu_custom_call.1} parent=1 // pred_check_branch
      %65 = sbr.rel (0) target = $region25
    $region24: #{tpu_custom_call.1} parent=1 // pred_region
      %66 = dma.done [#allocation6], 32768
    $region25: #{tpu_custom_call.1} parent=1 // pred_fallthru
      _
    // Predicated region
    $region26: #{tpu_custom_call.1} parent=1 // pred_check
      _
    $region27: #{tpu_custom_call.1} parent=1 // pred_check_branch
      %68 = sbr.rel (0) target = $region29
    $region28: #{tpu_custom_call.1} parent=1 // pred_region
      %69 = dma.done [#allocation6], 2048
    $region29: #{tpu_custom_call.1} parent=1 // pred_fallthru
      _
    // Predicated region
    $region30: #{tpu_custom_call.1} parent=1 // pred_check
      _
    $region31: #{tpu_custom_call.1} parent=1 // pred_check_branch
      %71 = sbr.rel (0) target = $region33
    $region32: #{tpu_custom_call.1} parent=1 // pred_region
      %72 = dma.done [#allocation9], 2048
    $region33: #{tpu_custom_call.1} parent=1 // pred_fallthru
      _
    %v73 = vld [vmem:[#allocation2] sm:$0xff]
    %v74 = vld [vmem:[#allocation2 + $0x8] sm:$0xff]
    %v75 = vld [vmem:[#allocation2 + $0x10] sm:$0xff]
    %v76 = vld [vmem:[#allocation2 + $0x18] sm:$0xff]
    %v77 = vld [vmem:[#allocation2 + $0x20] sm:$0xff]
    %v78 = vld [vmem:[#allocation2 + $0x28] sm:$0xff]
    %v79 = vld [vmem:[#allocation2 + $0x30] sm:$0xff]
    %v80 = vld [vmem:[#allocation2 + $0x38] sm:$0xff]
    %v81 = vld [vmem:[#allocation2 + $0x40] sm:$0xff]
    %v82 = vld [vmem:[#allocation2 + $0x48] sm:$0xff]
    %v83 = vld [vmem:[#allocation2 + $0x50] sm:$0xff]
    %v84 = vld [vmem:[#allocation2 + $0x58] sm:$0xff]
    %v85 = vld [vmem:[#allocation2 + $0x60] sm:$0xff]
    %v86 = vld [vmem:[#allocation2 + $0x68] sm:$0xff]
    %v87 = vld [vmem:[#allocation2 + $0x70] sm:$0xff]
    %v88 = vld [vmem:[#allocation2 + $0x78] sm:$0xff]
    %v89 = vld [vmem:[#allocation2 + $0x80] sm:$0xff]
    %v90 = vld [vmem:[#allocation2 + $0x88] sm:$0xff]
    %v91 = vld [vmem:[#allocation2 + $0x90] sm:$0xff]
    %v92 = vld [vmem:[#allocation2 + $0x98] sm:$0xff]
    %v93 = vld [vmem:[#allocation2 + $0xa0] sm:$0xff]
    %v94 = vld [vmem:[#allocation2 + $0xa8] sm:$0xff]
    %v95 = vld [vmem:[#allocation2 + $0xb0] sm:$0xff]
    %v96 = vld [vmem:[#allocation2 + $0xb8] sm:$0xff]
    %v97 = vld [vmem:[#allocation2 + $0xc0] sm:$0xff]
    %v98 = vld [vmem:[#allocation2 + $0xc8] sm:$0xff]
    %v99 = vld [vmem:[#allocation2 + $0xd0] sm:$0xff]
    %v100 = vld [vmem:[#allocation2 + $0xd8] sm:$0xff]
    %v101 = vld [vmem:[#allocation2 + $0xe0] sm:$0xff]
    %v102 = vld [vmem:[#allocation2 + $0xe8] sm:$0xff]
    %v103 = vld [vmem:[#allocation2 + $0xf0] sm:$0xff]
    %v104 = vld [vmem:[#allocation2 + $0xf8] sm:$0xff]
    %v105 = vld [vmem:[#allocation2 + $0x100] sm:$0xff]
    %v106 = vld [vmem:[#allocation2 + $0x108] sm:$0xff]
    %v107 = vld [vmem:[#allocation2 + $0x110] sm:$0xff]
    %v108 = vld [vmem:[#allocation2 + $0x118] sm:$0xff]
    %v109 = vld [vmem:[#allocation2 + $0x120] sm:$0xff]
    %v110 = vld [vmem:[#allocation2 + $0x128] sm:$0xff]
    %v111 = vld [vmem:[#allocation2 + $0x130] sm:$0xff]
    %v112 = vld [vmem:[#allocation2 + $0x138] sm:$0xff]
    %v113 = vld [vmem:[#allocation2 + $0x140] sm:$0xff]
    %v114 = vld [vmem:[#allocation2 + $0x148] sm:$0xff]
    %v115 = vld [vmem:[#allocation2 + $0x150] sm:$0xff]
    %v116 = vld [vmem:[#allocation2 + $0x158] sm:$0xff]
    %v117 = vld [vmem:[#allocation2 + $0x160] sm:$0xff]
    %v118 = vld [vmem:[#allocation2 + $0x168] sm:$0xff]
    %v119 = vld [vmem:[#allocation2 + $0x170] sm:$0xff]
    %v120 = vld [vmem:[#allocation2 + $0x178] sm:$0xff]
    %v121 = vld [vmem:[#allocation2 + $0x180] sm:$0xff]
    %v122 = vld [vmem:[#allocation2 + $0x188] sm:$0xff]
    %v123 = vld [vmem:[#allocation2 + $0x190] sm:$0xff]
    %v124 = vld [vmem:[#allocation2 + $0x198] sm:$0xff]
    %v125 = vld [vmem:[#allocation2 + $0x1a0] sm:$0xff]
    %v126 = vld [vmem:[#allocation2 + $0x1a8] sm:$0xff]
    %v127 = vld [vmem:[#allocation2 + $0x1b0] sm:$0xff]
    %v128 = vld [vmem:[#allocation2 + $0x1b8] sm:$0xff]
    %v129 = vld [vmem:[#allocation2 + $0x1c0] sm:$0xff]
    %v130 = vld [vmem:[#allocation2 + $0x1c8] sm:$0xff]
    %v131 = vld [vmem:[#allocation2 + $0x1d0] sm:$0xff]
    %v132 = vld [vmem:[#allocation2 + $0x1d8] sm:$0xff]
    %v133 = vld [vmem:[#allocation2 + $0x1e0] sm:$0xff]
    %v134 = vld [vmem:[#allocation2 + $0x1e8] sm:$0xff]
    %v135 = vld [vmem:[#allocation2 + $0x1f0] sm:$0xff]
    %v136 = vld [vmem:[#allocation2 + $0x1f8] sm:$0xff]
    %v137 = vld [vmem:[#allocation7] sm:$0xff]
    %v138 = vld [vmem:[#allocation7 + $0x8] sm:$0xff]
    %v139 = vld [vmem:[#allocation7 + $0x10] sm:$0xff]
    %v140 = vld [vmem:[#allocation7 + $0x18] sm:$0xff]
    %v141 = vld [vmem:[#allocation7 + $0x20] sm:$0xff]
    %v142 = vld [vmem:[#allocation7 + $0x28] sm:$0xff]
    %v143 = vld [vmem:[#allocation7 + $0x30] sm:$0xff]
    %v144 = vld [vmem:[#allocation7 + $0x38] sm:$0xff]
    %v145 = vld [vmem:[#allocation7 + $0x40] sm:$0xff]
    %v146 = vld [vmem:[#allocation7 + $0x48] sm:$0xff]
    %v147 = vld [vmem:[#allocation7 + $0x50] sm:$0xff]
    %v148 = vld [vmem:[#allocation7 + $0x58] sm:$0xff]
    %v149 = vld [vmem:[#allocation7 + $0x60] sm:$0xff]
    %v150 = vld [vmem:[#allocation7 + $0x68] sm:$0xff]
    %v151 = vld [vmem:[#allocation7 + $0x70] sm:$0xff]
    %v152 = vld [vmem:[#allocation7 + $0x78] sm:$0xff]
    %153 = vmatprep.subr.mxu0 0.0
    %154 = vmatpush1.msra.mxu0 %v152
    %155 = vmatprep.subr.mxu0 0.0
    %156 = vmatpush1.msra.mxu0 %v151
    %157 = vmatprep.subr.mxu0 0.0
    %158 = vmatpush1.msra.mxu0 %v150
    %159 = vmatprep.subr.mxu0 0.0
    %160 = vmatpush1.msra.mxu0 %v149
    %161 = vmatprep.subr.mxu0 0.0
    %162 = vmatpush1.msra.mxu0 %v148
    %163 = vmatprep.subr.mxu0 0.0
    %164 = vmatpush1.msra.mxu0 %v147
    %165 = vmatprep.subr.mxu0 0.0
    %166 = vmatpush1.msra.mxu0 %v146
    %167 = vmatprep.subr.mxu0 0.0
    %168 = vmatpush1.msra.mxu0 %v145
    %169 = vmatprep.subr.mxu0 0.0
    %170 = vmatpush1.msra.mxu0 %v144
    %171 = vmatprep.subr.mxu0 0.0
    %172 = vmatpush1.msra.mxu0 %v143
    %173 = vmatprep.subr.mxu0 0.0
    %174 = vmatpush1.msra.mxu0 %v142
    %175 = vmatprep.subr.mxu0 0.0
    %176 = vmatpush1.msra.mxu0 %v141
    %177 = vmatprep.subr.mxu0 0.0
    %178 = vmatpush1.msra.mxu0 %v140
    %179 = vmatprep.subr.mxu0 0.0
    %180 = vmatpush1.msra.mxu0 %v139
    %181 = vmatprep.subr.mxu0 0.0
    %182 = vmatpush1.msra.mxu0 %v138
    %183 = vmatprep.subr.mxu0 0.0
    %184 = vmatpush1.msra.mxu0 %v137
    %185 = vmatprep.subr.mxu0 0.0
    %186 = vmatpush2.msra.mxu0 0.0
    %187 = vmatprep.subr.mxu0 0.0
    %188 = vmatpush2.msra.mxu0 0.0
    %189 = vmatprep.subr.mxu0 0.0
    %190 = vmatpush2.msra.mxu0 0.0
    %191 = vmatprep.subr.mxu0 0.0
    %192 = vmatpush2.msra.mxu0 0.0
    %193 = vmatprep.subr.mxu0 0.0
    %194 = vmatpush2.msra.mxu0 0.0
    %195 = vmatprep.subr.mxu0 0.0
    %196 = vmatpush2.msra.mxu0 0.0
    %197 = vmatprep.subr.mxu0 0.0
    %198 = vmatpush2.msra.mxu0 0.0
    %199 = vmatprep.subr.mxu0 0.0
    %200 = vmatpush2.msra.mxu0 0.0
    %201 = vmatprep.subr.mxu0 0.0
    %202 = vmatpush2.msra.mxu0 0.0
    %203 = vmatprep.subr.mxu0 0.0
    %204 = vmatpush2.msra.mxu0 0.0
    %205 = vmatprep.subr.mxu0 0.0
    %206 = vmatpush2.msra.mxu0 0.0
    %207 = vmatprep.subr.mxu0 0.0
    %208 = vmatpush2.msra.mxu0 0.0
    %209 = vmatprep.subr.mxu0 0.0
    %210 = vmatpush2.msra.mxu0 0.0
    %211 = vmatprep.subr.mxu0 0.0
    %212 = vmatpush2.msra.mxu0 0.0
    %213 = vmatprep.subr.mxu0 0.0
    %214 = vmatpush2.msra.mxu0 0.0
    %215 = vmatprep.subr.mxu0 0.0
    %216 = vmatpush2.msra.mxu0 0.0
    %217 = vmatprep.mubr.f32.mxu0 0.0
    %218 = vmatmul.mubr.f32.gmra.mxu0 %v73
    %v219 = vpop.f32.mrf.mxu0
    %v220 = vadd.f32 0.0, %v219
    %v221 = vpop.f32.mrf.mxu0
    %222 = vmatprep.mubr.f32.mxu0 0.0
    %223 = vmatmul.mubr.f32.gmra.mxu0 %v74
    %v224 = vpop.f32.mrf.mxu0
    %v225 = vadd.f32 0.0, %v224
    %v226 = vpop.f32.mrf.mxu0
    %227 = vmatprep.mubr.f32.mxu0 0.0
    %228 = vmatmul.mubr.f32.gmra.mxu0 %v75
    %v229 = vpop.f32.mrf.mxu0
    %v230 = vadd.f32 0.0, %v229
    %v231 = vpop.f32.mrf.mxu0
    %232 = vmatprep.mubr.f32.mxu0 0.0
    %233 = vmatmul.mubr.f32.gmra.mxu0 %v76
    %v234 = vpop.f32.mrf.mxu0
    %v235 = vadd.f32 0.0, %v234
    %v236 = vpop.f32.mrf.mxu0
    %237 = vmatprep.mubr.f32.mxu0 0.0
    %238 = vmatmul.mubr.f32.gmra.mxu0 %v77
    %v239 = vpop.f32.mrf.mxu0
    %v240 = vadd.f32 0.0, %v239
    %v241 = vpop.f32.mrf.mxu0
    %242 = vmatprep.mubr.f32.mxu0 0.0
    %243 = vmatmul.mubr.f32.gmra.mxu0 %v78
    %v244 = vpop.f32.mrf.mxu0
    %v245 = vadd.f32 0.0, %v244
    %v246 = vpop.f32.mrf.mxu0
    %247 = vmatprep.mubr.f32.mxu0 0.0
    %248 = vmatmul.mubr.f32.gmra.mxu0 %v79
    %v249 = vpop.f32.mrf.mxu0
    %v250 = vadd.f32 0.0, %v249
    %v251 = vpop.f32.mrf.mxu0
    %252 = vmatprep.mubr.f32.mxu0 0.0
    %253 = vmatmul.mubr.f32.gmra.mxu0 %v80
    %v254 = vpop.f32.mrf.mxu0
    %v255 = vadd.f32 0.0, %v254
    %v256 = vpop.f32.mrf.mxu0
    %257 = vmatprep.mubr.f32.mxu0 0.0
    %258 = vmatmul.mubr.f32.gmra.mxu0 %v81
    %v259 = vpop.f32.mrf.mxu0
    %v260 = vadd.f32 0.0, %v259
    %v261 = vpop.f32.mrf.mxu0
    %262 = vmatprep.mubr.f32.mxu0 0.0
    %263 = vmatmul.mubr.f32.gmra.mxu0 %v82
    %v264 = vpop.f32.mrf.mxu0
    %v265 = vadd.f32 0.0, %v264
    %v266 = vpop.f32.mrf.mxu0
    %267 = vmatprep.mubr.f32.mxu0 0.0
    %268 = vmatmul.mubr.f32.gmra.mxu0 %v83
    %v269 = vpop.f32.mrf.mxu0
    %v270 = vadd.f32 0.0, %v269
    %v271 = vpop.f32.mrf.mxu0
    %272 = vmatprep.mubr.f32.mxu0 0.0
    %273 = vmatmul.mubr.f32.gmra.mxu0 %v84
    %v274 = vpop.f32.mrf.mxu0
    %v275 = vadd.f32 0.0, %v274
    %v276 = vpop.f32.mrf.mxu0
    %277 = vmatprep.mubr.f32.mxu0 0.0
    %278 = vmatmul.mubr.f32.gmra.mxu0 %v85
    %v279 = vpop.f32.mrf.mxu0
    %v280 = vadd.f32 0.0, %v279
    %v281 = vpop.f32.mrf.mxu0
    %282 = vmatprep.mubr.f32.mxu0 0.0
    %283 = vmatmul.mubr.f32.gmra.mxu0 %v86
    %v284 = vpop.f32.mrf.mxu0
    %v285 = vadd.f32 0.0, %v284
    %v286 = vpop.f32.mrf.mxu0
    %287 = vmatprep.mubr.f32.mxu0 0.0
    %288 = vmatmul.mubr.f32.gmra.mxu0 %v87
    %v289 = vpop.f32.mrf.mxu0
    %v290 = vadd.f32 0.0, %v289
    %v291 = vpop.f32.mrf.mxu0
    %292 = vmatprep.mubr.f32.mxu0 0.0
    %293 = vmatmul.mubr.f32.gmra.mxu0 %v88
    %v294 = vpop.f32.mrf.mxu0
    %v295 = vadd.f32 0.0, %v294
    %v296 = vpop.f32.mrf.mxu0
    %297 = vmatprep.mubr.f32.mxu0 0.0
    %298 = vmatmul.mubr.f32.gmra.mxu0 %v89
    %v299 = vpop.f32.mrf.mxu0
    %v300 = vadd.f32 0.0, %v299
    %v301 = vpop.f32.mrf.mxu0
    %302 = vmatprep.mubr.f32.mxu0 0.0
    %303 = vmatmul.mubr.f32.gmra.mxu0 %v90
    %v304 = vpop.f32.mrf.mxu0
    %v305 = vadd.f32 0.0, %v304
    %v306 = vpop.f32.mrf.mxu0
    %307 = vmatprep.mubr.f32.mxu0 0.0
    %308 = vmatmul.mubr.f32.gmra.mxu0 %v91
    %v309 = vpop.f32.mrf.mxu0
    %v310 = vadd.f32 0.0, %v309
    %v311 = vpop.f32.mrf.mxu0
    %312 = vmatprep.mubr.f32.mxu0 0.0
    %313 = vmatmul.mubr.f32.gmra.mxu0 %v92
    %v314 = vpop.f32.mrf.mxu0
    %v315 = vadd.f32 0.0, %v314
    %v316 = vpop.f32.mrf.mxu0
    %317 = vmatprep.mubr.f32.mxu0 0.0
    %318 = vmatmul.mubr.f32.gmra.mxu0 %v93
    %v319 = vpop.f32.mrf.mxu0
    %v320 = vadd.f32 0.0, %v319
    %v321 = vpop.f32.mrf.mxu0
    %322 = vmatprep.mubr.f32.mxu0 0.0
    %323 = vmatmul.mubr.f32.gmra.mxu0 %v94
    %v324 = vpop.f32.mrf.mxu0
    %v325 = vadd.f32 0.0, %v324
    %v326 = vpop.f32.mrf.mxu0
    %327 = vmatprep.mubr.f32.mxu0 0.0
    %328 = vmatmul.mubr.f32.gmra.mxu0 %v95
    %v329 = vpop.f32.mrf.mxu0
    %v330 = vadd.f32 0.0, %v329
    %v331 = vpop.f32.mrf.mxu0
    %332 = vmatprep.mubr.f32.mxu0 0.0
    %333 = vmatmul.mubr.f32.gmra.mxu0 %v96
    %v334 = vpop.f32.mrf.mxu0
    %v335 = vadd.f32 0.0, %v334
    %v336 = vpop.f32.mrf.mxu0
    %337 = vmatprep.mubr.f32.mxu0 0.0
    %338 = vmatmul.mubr.f32.gmra.mxu0 %v97
    %v339 = vpop.f32.mrf.mxu0
    %v340 = vadd.f32 0.0, %v339
    %v341 = vpop.f32.mrf.mxu0
    %342 = vmatprep.mubr.f32.mxu0 0.0
    %343 = vmatmul.mubr.f32.gmra.mxu0 %v98
    %v344 = vpop.f32.mrf.mxu0
    %v345 = vadd.f32 0.0, %v344
    %v346 = vpop.f32.mrf.mxu0
    %347 = vmatprep.mubr.f32.mxu0 0.0
    %348 = vmatmul.mubr.f32.gmra.mxu0 %v99
    %v349 = vpop.f32.mrf.mxu0
    %v350 = vadd.f32 0.0, %v349
    %v351 = vpop.f32.mrf.mxu0
    %352 = vmatprep.mubr.f32.mxu0 0.0
    %353 = vmatmul.mubr.f32.gmra.mxu0 %v100
    %v354 = vpop.f32.mrf.mxu0
    %v355 = vadd.f32 0.0, %v354
    %v356 = vpop.f32.mrf.mxu0
    %357 = vmatprep.mubr.f32.mxu0 0.0
    %358 = vmatmul.mubr.f32.gmra.mxu0 %v101
    %v359 = vpop.f32.mrf.mxu0
    %v360 = vadd.f32 0.0, %v359
    %v361 = vpop.f32.mrf.mxu0
    %362 = vmatprep.mubr.f32.mxu0 0.0
    %363 = vmatmul.mubr.f32.gmra.mxu0 %v102
    %v364 = vpop.f32.mrf.mxu0
    %v365 = vadd.f32 0.0, %v364
    %v366 = vpop.f32.mrf.mxu0
    %367 = vmatprep.mubr.f32.mxu0 0.0
    %368 = vmatmul.mubr.f32.gmra.mxu0 %v103
    %v369 = vpop.f32.mrf.mxu0
    %v370 = vadd.f32 0.0, %v369
    %v371 = vpop.f32.mrf.mxu0
    %372 = vmatprep.mubr.f32.mxu0 0.0
    %373 = vmatmul.mubr.f32.gmra.mxu0 %v104
    %v374 = vpop.f32.mrf.mxu0
    %v375 = vadd.f32 0.0, %v374
    %v376 = vpop.f32.mrf.mxu0
    %377 = vmatprep.mubr.f32.mxu0 0.0
    %378 = vmatmul.mubr.f32.gmra.mxu0 %v105
    %v379 = vpop.f32.mrf.mxu0
    %v380 = vadd.f32 0.0, %v379
    %v381 = vpop.f32.mrf.mxu0
    %382 = vmatprep.mubr.f32.mxu0 0.0
    %383 = vmatmul.mubr.f32.gmra.mxu0 %v106
    %v384 = vpop.f32.mrf.mxu0
    %v385 = vadd.f32 0.0, %v384
    %v386 = vpop.f32.mrf.mxu0
    %387 = vmatprep.mubr.f32.mxu0 0.0
    %388 = vmatmul.mubr.f32.gmra.mxu0 %v107
    %v389 = vpop.f32.mrf.mxu0
    %v390 = vadd.f32 0.0, %v389
    %v391 = vpop.f32.mrf.mxu0
    %392 = vmatprep.mubr.f32.mxu0 0.0
    %393 = vmatmul.mubr.f32.gmra.mxu0 %v108
    %v394 = vpop.f32.mrf.mxu0
    %v395 = vadd.f32 0.0, %v394
    %v396 = vpop.f32.mrf.mxu0
    %397 = vmatprep.mubr.f32.mxu0 0.0
    %398 = vmatmul.mubr.f32.gmra.mxu0 %v109
    %v399 = vpop.f32.mrf.mxu0
    %v400 = vadd.f32 0.0, %v399
    %v401 = vpop.f32.mrf.mxu0
    %402 = vmatprep.mubr.f32.mxu0 0.0
    %403 = vmatmul.mubr.f32.gmra.mxu0 %v110
    %v404 = vpop.f32.mrf.mxu0
    %v405 = vadd.f32 0.0, %v404
    %v406 = vpop.f32.mrf.mxu0
    %407 = vmatprep.mubr.f32.mxu0 0.0
    %408 = vmatmul.mubr.f32.gmra.mxu0 %v111
    %v409 = vpop.f32.mrf.mxu0
    %v410 = vadd.f32 0.0, %v409
    %v411 = vpop.f32.mrf.mxu0
    %412 = vmatprep.mubr.f32.mxu0 0.0
    %413 = vmatmul.mubr.f32.gmra.mxu0 %v112
    %v414 = vpop.f32.mrf.mxu0
    %v415 = vadd.f32 0.0, %v414
    %v416 = vpop.f32.mrf.mxu0
    %417 = vmatprep.mubr.f32.mxu0 0.0
    %418 = vmatmul.mubr.f32.gmra.mxu0 %v113
    %v419 = vpop.f32.mrf.mxu0
    %v420 = vadd.f32 0.0, %v419
    %v421 = vpop.f32.mrf.mxu0
    %422 = vmatprep.mubr.f32.mxu0 0.0
    %423 = vmatmul.mubr.f32.gmra.mxu0 %v114
    %v424 = vpop.f32.mrf.mxu0
    %v425 = vadd.f32 0.0, %v424
    %v426 = vpop.f32.mrf.mxu0
    %427 = vmatprep.mubr.f32.mxu0 0.0
    %428 = vmatmul.mubr.f32.gmra.mxu0 %v115
    %v429 = vpop.f32.mrf.mxu0
    %v430 = vadd.f32 0.0, %v429
    %v431 = vpop.f32.mrf.mxu0
    %432 = vmatprep.mubr.f32.mxu0 0.0
    %433 = vmatmul.mubr.f32.gmra.mxu0 %v116
    %v434 = vpop.f32.mrf.mxu0
    %v435 = vadd.f32 0.0, %v434
    %v436 = vpop.f32.mrf.mxu0
    %437 = vmatprep.mubr.f32.mxu0 0.0
    %438 = vmatmul.mubr.f32.gmra.mxu0 %v117
    %v439 = vpop.f32.mrf.mxu0
    %v440 = vadd.f32 0.0, %v439
    %v441 = vpop.f32.mrf.mxu0
    %442 = vmatprep.mubr.f32.mxu0 0.0
    %443 = vmatmul.mubr.f32.gmra.mxu0 %v118
    %v444 = vpop.f32.mrf.mxu0
    %v445 = vadd.f32 0.0, %v444
    %v446 = vpop.f32.mrf.mxu0
    %447 = vmatprep.mubr.f32.mxu0 0.0
    %448 = vmatmul.mubr.f32.gmra.mxu0 %v119
    %v449 = vpop.f32.mrf.mxu0
    %v450 = vadd.f32 0.0, %v449
    %v451 = vpop.f32.mrf.mxu0
    %452 = vmatprep.mubr.f32.mxu0 0.0
    %453 = vmatmul.mubr.f32.gmra.mxu0 %v120
    %v454 = vpop.f32.mrf.mxu0
    %v455 = vadd.f32 0.0, %v454
    %v456 = vpop.f32.mrf.mxu0
    %457 = vmatprep.mubr.f32.mxu0 0.0
    %458 = vmatmul.mubr.f32.gmra.mxu0 %v121
    %v459 = vpop.f32.mrf.mxu0
    %v460 = vadd.f32 0.0, %v459
    %v461 = vpop.f32.mrf.mxu0
    %462 = vmatprep.mubr.f32.mxu0 0.0
    %463 = vmatmul.mubr.f32.gmra.mxu0 %v122
    %v464 = vpop.f32.mrf.mxu0
    %v465 = vadd.f32 0.0, %v464
    %v466 = vpop.f32.mrf.mxu0
    %467 = vmatprep.mubr.f32.mxu0 0.0
    %468 = vmatmul.mubr.f32.gmra.mxu0 %v123
    %v469 = vpop.f32.mrf.mxu0
    %v470 = vadd.f32 0.0, %v469
    %v471 = vpop.f32.mrf.mxu0
    %472 = vmatprep.mubr.f32.mxu0 0.0
    %473 = vmatmul.mubr.f32.gmra.mxu0 %v124
    %v474 = vpop.f32.mrf.mxu0
    %v475 = vadd.f32 0.0, %v474
    %v476 = vpop.f32.mrf.mxu0
    %477 = vmatprep.mubr.f32.mxu0 0.0
    %478 = vmatmul.mubr.f32.gmra.mxu0 %v125
    %v479 = vpop.f32.mrf.mxu0
    %v480 = vadd.f32 0.0, %v479
    %v481 = vpop.f32.mrf.mxu0
    %482 = vmatprep.mubr.f32.mxu0 0.0
    %483 = vmatmul.mubr.f32.gmra.mxu0 %v126
    %v484 = vpop.f32.mrf.mxu0
    %v485 = vadd.f32 0.0, %v484
    %v486 = vpop.f32.mrf.mxu0
    %487 = vmatprep.mubr.f32.mxu0 0.0
    %488 = vmatmul.mubr.f32.gmra.mxu0 %v127
    %v489 = vpop.f32.mrf.mxu0
    %v490 = vadd.f32 0.0, %v489
    %v491 = vpop.f32.mrf.mxu0
    %492 = vmatprep.mubr.f32.mxu0 0.0
    %493 = vmatmul.mubr.f32.gmra.mxu0 %v128
    %v494 = vpop.f32.mrf.mxu0
    %v495 = vadd.f32 0.0, %v494
    %v496 = vpop.f32.mrf.mxu0
    %497 = vmatprep.mubr.f32.mxu0 0.0
    %498 = vmatmul.mubr.f32.gmra.mxu0 %v129
    %v499 = vpop.f32.mrf.mxu0
    %v500 = vadd.f32 0.0, %v499
    %v501 = vpop.f32.mrf.mxu0
    %502 = vmatprep.mubr.f32.mxu0 0.0
    %503 = vmatmul.mubr.f32.gmra.mxu0 %v130
    %v504 = vpop.f32.mrf.mxu0
    %v505 = vadd.f32 0.0, %v504
    %v506 = vpop.f32.mrf.mxu0
    %507 = vmatprep.mubr.f32.mxu0 0.0
    %508 = vmatmul.mubr.f32.gmra.mxu0 %v131
    %v509 = vpop.f32.mrf.mxu0
    %v510 = vadd.f32 0.0, %v509
    %v511 = vpop.f32.mrf.mxu0
    %512 = vmatprep.mubr.f32.mxu0 0.0
    %513 = vmatmul.mubr.f32.gmra.mxu0 %v132
    %v514 = vpop.f32.mrf.mxu0
    %v515 = vadd.f32 0.0, %v514
    %v516 = vpop.f32.mrf.mxu0
    %517 = vmatprep.mubr.f32.mxu0 0.0
    %518 = vmatmul.mubr.f32.gmra.mxu0 %v133
    %v519 = vpop.f32.mrf.mxu0
    %v520 = vadd.f32 0.0, %v519
    %v521 = vpop.f32.mrf.mxu0
    %522 = vmatprep.mubr.f32.mxu0 0.0
    %523 = vmatmul.mubr.f32.gmra.mxu0 %v134
    %v524 = vpop.f32.mrf.mxu0
    %v525 = vadd.f32 0.0, %v524
    %v526 = vpop.f32.mrf.mxu0
    %527 = vmatprep.mubr.f32.mxu0 0.0
    %528 = vmatmul.mubr.f32.gmra.mxu0 %v135
    %v529 = vpop.f32.mrf.mxu0
    %v530 = vadd.f32 0.0, %v529
    %v531 = vpop.f32.mrf.mxu0
    %532 = vmatprep.mubr.f32.mxu0 0.0
    %533 = vmatmul.mubr.f32.gmra.mxu0 %v136
    %v534 = vpop.f32.mrf.mxu0
    %v535 = vadd.f32 0.0, %v534
    %v536 = vpop.f32.mrf.mxu0
    %537 = vdwg.mxu0
    %v538 = vld [vmem:[#allocation5] sm:$0xff]
    %v539 = vld [vmem:[#allocation5 + $0x8] sm:$0xff]
    %v540 = vld [vmem:[#allocation5 + $0x10] sm:$0xff]
    %v541 = vld [vmem:[#allocation5 + $0x18] sm:$0xff]
    %v542 = vld [vmem:[#allocation5 + $0x20] sm:$0xff]
    %v543 = vld [vmem:[#allocation5 + $0x28] sm:$0xff]
    %v544 = vld [vmem:[#allocation5 + $0x30] sm:$0xff]
    %v545 = vld [vmem:[#allocation5 + $0x38] sm:$0xff]
    %v546 = vld [vmem:[#allocation5 + $0x40] sm:$0xff]
    %v547 = vld [vmem:[#allocation5 + $0x48] sm:$0xff]
    %v548 = vld [vmem:[#allocation5 + $0x50] sm:$0xff]
    %v549 = vld [vmem:[#allocation5 + $0x58] sm:$0xff]
    %v550 = vld [vmem:[#allocation5 + $0x60] sm:$0xff]
    %v551 = vld [vmem:[#allocation5 + $0x68] sm:$0xff]
    %v552 = vld [vmem:[#allocation5 + $0x70] sm:$0xff]
    %v553 = vld [vmem:[#allocation5 + $0x78] sm:$0xff]
    %v554 = vld [vmem:[#allocation5 + $0x80] sm:$0xff]
    %v555 = vld [vmem:[#allocation5 + $0x88] sm:$0xff]
    %v556 = vld [vmem:[#allocation5 + $0x90] sm:$0xff]
    %v557 = vld [vmem:[#allocation5 + $0x98] sm:$0xff]
    %v558 = vld [vmem:[#allocation5 + $0xa0] sm:$0xff]
    %v559 = vld [vmem:[#allocation5 + $0xa8] sm:$0xff]
    %v560 = vld [vmem:[#allocation5 + $0xb0] sm:$0xff]
    %v561 = vld [vmem:[#allocation5 + $0xb8] sm:$0xff]
    %v562 = vld [vmem:[#allocation5 + $0xc0] sm:$0xff]
    %v563 = vld [vmem:[#allocation5 + $0xc8] sm:$0xff]
    %v564 = vld [vmem:[#allocation5 + $0xd0] sm:$0xff]
    %v565 = vld [vmem:[#allocation5 + $0xd8] sm:$0xff]
    %v566 = vld [vmem:[#allocation5 + $0xe0] sm:$0xff]
    %v567 = vld [vmem:[#allocation5 + $0xe8] sm:$0xff]
    %v568 = vld [vmem:[#allocation5 + $0xf0] sm:$0xff]
    %v569 = vld [vmem:[#allocation5 + $0xf8] sm:$0xff]
    %v570 = vld [vmem:[#allocation5 + $0x100] sm:$0xff]
    %v571 = vld [vmem:[#allocation5 + $0x108] sm:$0xff]
    %v572 = vld [vmem:[#allocation5 + $0x110] sm:$0xff]
    %v573 = vld [vmem:[#allocation5 + $0x118] sm:$0xff]
    %v574 = vld [vmem:[#allocation5 + $0x120] sm:$0xff]
    %v575 = vld [vmem:[#allocation5 + $0x128] sm:$0xff]
    %v576 = vld [vmem:[#allocation5 + $0x130] sm:$0xff]
    %v577 = vld [vmem:[#allocation5 + $0x138] sm:$0xff]
    %v578 = vld [vmem:[#allocation5 + $0x140] sm:$0xff]
    %v579 = vld [vmem:[#allocation5 + $0x148] sm:$0xff]
    %v580 = vld [vmem:[#allocation5 + $0x150] sm:$0xff]
    %v581 = vld [vmem:[#allocation5 + $0x158] sm:$0xff]
    %v582 = vld [vmem:[#allocation5 + $0x160] sm:$0xff]
    %v583 = vld [vmem:[#allocation5 + $0x168] sm:$0xff]
    %v584 = vld [vmem:[#allocation5 + $0x170] sm:$0xff]
    %v585 = vld [vmem:[#allocation5 + $0x178] sm:$0xff]
    %v586 = vld [vmem:[#allocation5 + $0x180] sm:$0xff]
    %v587 = vld [vmem:[#allocation5 + $0x188] sm:$0xff]
    %v588 = vld [vmem:[#allocation5 + $0x190] sm:$0xff]
    %v589 = vld [vmem:[#allocation5 + $0x198] sm:$0xff]
    %v590 = vld [vmem:[#allocation5 + $0x1a0] sm:$0xff]
    %v591 = vld [vmem:[#allocation5 + $0x1a8] sm:$0xff]
    %v592 = vld [vmem:[#allocation5 + $0x1b0] sm:$0xff]
    %v593 = vld [vmem:[#allocation5 + $0x1b8] sm:$0xff]
    %v594 = vld [vmem:[#allocation5 + $0x1c0] sm:$0xff]
    %v595 = vld [vmem:[#allocation5 + $0x1c8] sm:$0xff]
    %v596 = vld [vmem:[#allocation5 + $0x1d0] sm:$0xff]
    %v597 = vld [vmem:[#allocation5 + $0x1d8] sm:$0xff]
    %v598 = vld [vmem:[#allocation5 + $0x1e0] sm:$0xff]
    %v599 = vld [vmem:[#allocation5 + $0x1e8] sm:$0xff]
    %v600 = vld [vmem:[#allocation5 + $0x1f0] sm:$0xff]
    %v601 = vld [vmem:[#allocation5 + $0x1f8] sm:$0xff]
    %v602 = vld [vmem:[#allocation5 + $0x200] sm:$0xff]
    %v603 = vld [vmem:[#allocation5 + $0x208] sm:$0xff]
    %v604 = vld [vmem:[#allocation5 + $0x210] sm:$0xff]
    %v605 = vld [vmem:[#allocation5 + $0x218] sm:$0xff]
    %v606 = vld [vmem:[#allocation5 + $0x220] sm:$0xff]
    %v607 = vld [vmem:[#allocation5 + $0x228] sm:$0xff]
    %v608 = vld [vmem:[#allocation5 + $0x230] sm:$0xff]
    %v609 = vld [vmem:[#allocation5 + $0x238] sm:$0xff]
    %v610 = vld [vmem:[#allocation5 + $0x240] sm:$0xff]
    %v611 = vld [vmem:[#allocation5 + $0x248] sm:$0xff]
    %v612 = vld [vmem:[#allocation5 + $0x250] sm:$0xff]
    %v613 = vld [vmem:[#allocation5 + $0x258] sm:$0xff]
    %v614 = vld [vmem:[#allocation5 + $0x260] sm:$0xff]
    %v615 = vld [vmem:[#allocation5 + $0x268] sm:$0xff]
    %v616 = vld [vmem:[#allocation5 + $0x270] sm:$0xff]
    %v617 = vld [vmem:[#allocation5 + $0x278] sm:$0xff]
    %v618 = vld [vmem:[#allocation5 + $0x280] sm:$0xff]
    %v619 = vld [vmem:[#allocation5 + $0x288] sm:$0xff]
    %v620 = vld [vmem:[#allocation5 + $0x290] sm:$0xff]
    %v621 = vld [vmem:[#allocation5 + $0x298] sm:$0xff]
    %v622 = vld [vmem:[#allocation5 + $0x2a0] sm:$0xff]
    %v623 = vld [vmem:[#allocation5 + $0x2a8] sm:$0xff]
    %v624 = vld [vmem:[#allocation5 + $0x2b0] sm:$0xff]
    %v625 = vld [vmem:[#allocation5 + $0x2b8] sm:$0xff]
    %v626 = vld [vmem:[#allocation5 + $0x2c0] sm:$0xff]
    %v627 = vld [vmem:[#allocation5 + $0x2c8] sm:$0xff]
    %v628 = vld [vmem:[#allocation5 + $0x2d0] sm:$0xff]
    %v629 = vld [vmem:[#allocation5 + $0x2d8] sm:$0xff]
    %v630 = vld [vmem:[#allocation5 + $0x2e0] sm:$0xff]
    %v631 = vld [vmem:[#allocation5 + $0x2e8] sm:$0xff]
    %v632 = vld [vmem:[#allocation5 + $0x2f0] sm:$0xff]
    %v633 = vld [vmem:[#allocation5 + $0x2f8] sm:$0xff]
    %v634 = vld [vmem:[#allocation5 + $0x300] sm:$0xff]
    %v635 = vld [vmem:[#allocation5 + $0x308] sm:$0xff]
    %v636 = vld [vmem:[#allocation5 + $0x310] sm:$0xff]
    %v637 = vld [vmem:[#allocation5 + $0x318] sm:$0xff]
    %v638 = vld [vmem:[#allocation5 + $0x320] sm:$0xff]
    %v639 = vld [vmem:[#allocation5 + $0x328] sm:$0xff]
    %v640 = vld [vmem:[#allocation5 + $0x330] sm:$0xff]
    %v641 = vld [vmem:[#allocation5 + $0x338] sm:$0xff]
    %v642 = vld [vmem:[#allocation5 + $0x340] sm:$0xff]
    %v643 = vld [vmem:[#allocation5 + $0x348] sm:$0xff]
    %v644 = vld [vmem:[#allocation5 + $0x350] sm:$0xff]
    %v645 = vld [vmem:[#allocation5 + $0x358] sm:$0xff]
    %v646 = vld [vmem:[#allocation5 + $0x360] sm:$0xff]
    %v647 = vld [vmem:[#allocation5 + $0x368] sm:$0xff]
    %v648 = vld [vmem:[#allocation5 + $0x370] sm:$0xff]
    %v649 = vld [vmem:[#allocation5 + $0x378] sm:$0xff]
    %v650 = vld [vmem:[#allocation5 + $0x380] sm:$0xff]
    %v651 = vld [vmem:[#allocation5 + $0x388] sm:$0xff]
    %v652 = vld [vmem:[#allocation5 + $0x390] sm:$0xff]
    %v653 = vld [vmem:[#allocation5 + $0x398] sm:$0xff]
    %v654 = vld [vmem:[#allocation5 + $0x3a0] sm:$0xff]
    %v655 = vld [vmem:[#allocation5 + $0x3a8] sm:$0xff]
    %v656 = vld [vmem:[#allocation5 + $0x3b0] sm:$0xff]
    %v657 = vld [vmem:[#allocation5 + $0x3b8] sm:$0xff]
    %v658 = vld [vmem:[#allocation5 + $0x3c0] sm:$0xff]
    %v659 = vld [vmem:[#allocation5 + $0x3c8] sm:$0xff]
    %v660 = vld [vmem:[#allocation5 + $0x3d0] sm:$0xff]
    %v661 = vld [vmem:[#allocation5 + $0x3d8] sm:$0xff]
    %v662 = vld [vmem:[#allocation5 + $0x3e0] sm:$0xff]
    %v663 = vld [vmem:[#allocation5 + $0x3e8] sm:$0xff]
    %v664 = vld [vmem:[#allocation5 + $0x3f0] sm:$0xff]
    %v665 = vld [vmem:[#allocation5 + $0x3f8] sm:$0xff]
    %v666 = vld [vmem:[#allocation5 + $0x400] sm:$0xff]
    %v667 = vld [vmem:[#allocation5 + $0x408] sm:$0xff]
    %v668 = vld [vmem:[#allocation5 + $0x410] sm:$0xff]
    %v669 = vld [vmem:[#allocation5 + $0x418] sm:$0xff]
    %v670 = vld [vmem:[#allocation5 + $0x420] sm:$0xff]
    %v671 = vld [vmem:[#allocation5 + $0x428] sm:$0xff]
    %v672 = vld [vmem:[#allocation5 + $0x430] sm:$0xff]
    %v673 = vld [vmem:[#allocation5 + $0x438] sm:$0xff]
    %v674 = vld [vmem:[#allocation5 + $0x440] sm:$0xff]
    %v675 = vld [vmem:[#allocation5 + $0x448] sm:$0xff]
    %v676 = vld [vmem:[#allocation5 + $0x450] sm:$0xff]
    %v677 = vld [vmem:[#allocation5 + $0x458] sm:$0xff]
    %v678 = vld [vmem:[#allocation5 + $0x460] sm:$0xff]
    %v679 = vld [vmem:[#allocation5 + $0x468] sm:$0xff]
    %v680 = vld [vmem:[#allocation5 + $0x470] sm:$0xff]
    %v681 = vld [vmem:[#allocation5 + $0x478] sm:$0xff]
    %v682 = vld [vmem:[#allocation5 + $0x480] sm:$0xff]
    %v683 = vld [vmem:[#allocation5 + $0x488] sm:$0xff]
    %v684 = vld [vmem:[#allocation5 + $0x490] sm:$0xff]
    %v685 = vld [vmem:[#allocation5 + $0x498] sm:$0xff]
    %v686 = vld [vmem:[#allocation5 + $0x4a0] sm:$0xff]
    %v687 = vld [vmem:[#allocation5 + $0x4a8] sm:$0xff]
    %v688 = vld [vmem:[#allocation5 + $0x4b0] sm:$0xff]
    %v689 = vld [vmem:[#allocation5 + $0x4b8] sm:$0xff]
    %v690 = vld [vmem:[#allocation5 + $0x4c0] sm:$0xff]
    %v691 = vld [vmem:[#allocation5 + $0x4c8] sm:$0xff]
    %v692 = vld [vmem:[#allocation5 + $0x4d0] sm:$0xff]
    %v693 = vld [vmem:[#allocation5 + $0x4d8] sm:$0xff]
    %v694 = vld [vmem:[#allocation5 + $0x4e0] sm:$0xff]
    %v695 = vld [vmem:[#allocation5 + $0x4e8] sm:$0xff]
    %v696 = vld [vmem:[#allocation5 + $0x4f0] sm:$0xff]
    %v697 = vld [vmem:[#allocation5 + $0x4f8] sm:$0xff]
    %v698 = vld [vmem:[#allocation5 + $0x500] sm:$0xff]
    %v699 = vld [vmem:[#allocation5 + $0x508] sm:$0xff]
    %v700 = vld [vmem:[#allocation5 + $0x510] sm:$0xff]
    %v701 = vld [vmem:[#allocation5 + $0x518] sm:$0xff]
    %v702 = vld [vmem:[#allocation5 + $0x520] sm:$0xff]
    %v703 = vld [vmem:[#allocation5 + $0x528] sm:$0xff]
    %v704 = vld [vmem:[#allocation5 + $0x530] sm:$0xff]
    %v705 = vld [vmem:[#allocation5 + $0x538] sm:$0xff]
    %v706 = vld [vmem:[#allocation5 + $0x540] sm:$0xff]
    %v707 = vld [vmem:[#allocation5 + $0x548] sm:$0xff]
    %v708 = vld [vmem:[#allocation5 + $0x550] sm:$0xff]
    %v709 = vld [vmem:[#allocation5 + $0x558] sm:$0xff]
    %v710 = vld [vmem:[#allocation5 + $0x560] sm:$0xff]
    %v711 = vld [vmem:[#allocation5 + $0x568] sm:$0xff]
    %v712 = vld [vmem:[#allocation5 + $0x570] sm:$0xff]
    %v713 = vld [vmem:[#allocation5 + $0x578] sm:$0xff]
    %v714 = vld [vmem:[#allocation5 + $0x580] sm:$0xff]
    %v715 = vld [vmem:[#allocation5 + $0x588] sm:$0xff]
    %v716 = vld [vmem:[#allocation5 + $0x590] sm:$0xff]
    %v717 = vld [vmem:[#allocation5 + $0x598] sm:$0xff]
    %v718 = vld [vmem:[#allocation5 + $0x5a0] sm:$0xff]
    %v719 = vld [vmem:[#allocation5 + $0x5a8] sm:$0xff]
    %v720 = vld [vmem:[#allocation5 + $0x5b0] sm:$0xff]
    %v721 = vld [vmem:[#allocation5 + $0x5b8] sm:$0xff]
    %v722 = vld [vmem:[#allocation5 + $0x5c0] sm:$0xff]
    %v723 = vld [vmem:[#allocation5 + $0x5c8] sm:$0xff]
    %v724 = vld [vmem:[#allocation5 + $0x5d0] sm:$0xff]
    %v725 = vld [vmem:[#allocation5 + $0x5d8] sm:$0xff]
    %v726 = vld [vmem:[#allocation5 + $0x5e0] sm:$0xff]
    %v727 = vld [vmem:[#allocation5 + $0x5e8] sm:$0xff]
    %v728 = vld [vmem:[#allocation5 + $0x5f0] sm:$0xff]
    %v729 = vld [vmem:[#allocation5 + $0x5f8] sm:$0xff]
    %v730 = vld [vmem:[#allocation5 + $0x600] sm:$0xff]
    %v731 = vld [vmem:[#allocation5 + $0x608] sm:$0xff]
    %v732 = vld [vmem:[#allocation5 + $0x610] sm:$0xff]
    %v733 = vld [vmem:[#allocation5 + $0x618] sm:$0xff]
    %v734 = vld [vmem:[#allocation5 + $0x620] sm:$0xff]
    %v735 = vld [vmem:[#allocation5 + $0x628] sm:$0xff]
    %v736 = vld [vmem:[#allocation5 + $0x630] sm:$0xff]
    %v737 = vld [vmem:[#allocation5 + $0x638] sm:$0xff]
    %v738 = vld [vmem:[#allocation5 + $0x640] sm:$0xff]
    %v739 = vld [vmem:[#allocation5 + $0x648] sm:$0xff]
    %v740 = vld [vmem:[#allocation5 + $0x650] sm:$0xff]
    %v741 = vld [vmem:[#allocation5 + $0x658] sm:$0xff]
    %v742 = vld [vmem:[#allocation5 + $0x660] sm:$0xff]
    %v743 = vld [vmem:[#allocation5 + $0x668] sm:$0xff]
    %v744 = vld [vmem:[#allocation5 + $0x670] sm:$0xff]
    %v745 = vld [vmem:[#allocation5 + $0x678] sm:$0xff]
    %v746 = vld [vmem:[#allocation5 + $0x680] sm:$0xff]
    %v747 = vld [vmem:[#allocation5 + $0x688] sm:$0xff]
    %v748 = vld [vmem:[#allocation5 + $0x690] sm:$0xff]
    %v749 = vld [vmem:[#allocation5 + $0x698] sm:$0xff]
    %v750 = vld [vmem:[#allocation5 + $0x6a0] sm:$0xff]
    %v751 = vld [vmem:[#allocation5 + $0x6a8] sm:$0xff]
    %v752 = vld [vmem:[#allocation5 + $0x6b0] sm:$0xff]
    %v753 = vld [vmem:[#allocation5 + $0x6b8] sm:$0xff]
    %v754 = vld [vmem:[#allocation5 + $0x6c0] sm:$0xff]
    %v755 = vld [vmem:[#allocation5 + $0x6c8] sm:$0xff]
    %v756 = vld [vmem:[#allocation5 + $0x6d0] sm:$0xff]
    %v757 = vld [vmem:[#allocation5 + $0x6d8] sm:$0xff]
    %v758 = vld [vmem:[#allocation5 + $0x6e0] sm:$0xff]
    %v759 = vld [vmem:[#allocation5 + $0x6e8] sm:$0xff]
    %v760 = vld [vmem:[#allocation5 + $0x6f0] sm:$0xff]
    %v761 = vld [vmem:[#allocation5 + $0x6f8] sm:$0xff]
    %v762 = vld [vmem:[#allocation5 + $0x700] sm:$0xff]
    %v763 = vld [vmem:[#allocation5 + $0x708] sm:$0xff]
    %v764 = vld [vmem:[#allocation5 + $0x710] sm:$0xff]
    %v765 = vld [vmem:[#allocation5 + $0x718] sm:$0xff]
    %v766 = vld [vmem:[#allocation5 + $0x720] sm:$0xff]
    %v767 = vld [vmem:[#allocation5 + $0x728] sm:$0xff]
    %v768 = vld [vmem:[#allocation5 + $0x730] sm:$0xff]
    %v769 = vld [vmem:[#allocation5 + $0x738] sm:$0xff]
    %v770 = vld [vmem:[#allocation5 + $0x740] sm:$0xff]
    %v771 = vld [vmem:[#allocation5 + $0x748] sm:$0xff]
    %v772 = vld [vmem:[#allocation5 + $0x750] sm:$0xff]
    %v773 = vld [vmem:[#allocation5 + $0x758] sm:$0xff]
    %v774 = vld [vmem:[#allocation5 + $0x760] sm:$0xff]
    %v775 = vld [vmem:[#allocation5 + $0x768] sm:$0xff]
    %v776 = vld [vmem:[#allocation5 + $0x770] sm:$0xff]
    %v777 = vld [vmem:[#allocation5 + $0x778] sm:$0xff]
    %v778 = vld [vmem:[#allocation5 + $0x780] sm:$0xff]
    %v779 = vld [vmem:[#allocation5 + $0x788] sm:$0xff]
    %v780 = vld [vmem:[#allocation5 + $0x790] sm:$0xff]
    %v781 = vld [vmem:[#allocation5 + $0x798] sm:$0xff]
    %v782 = vld [vmem:[#allocation5 + $0x7a0] sm:$0xff]
    %v783 = vld [vmem:[#allocation5 + $0x7a8] sm:$0xff]
    %v784 = vld [vmem:[#allocation5 + $0x7b0] sm:$0xff]
    %v785 = vld [vmem:[#allocation5 + $0x7b8] sm:$0xff]
    %v786 = vld [vmem:[#allocation5 + $0x7c0] sm:$0xff]
    %v787 = vld [vmem:[#allocation5 + $0x7c8] sm:$0xff]
    %v788 = vld [vmem:[#allocation5 + $0x7d0] sm:$0xff]
    %v789 = vld [vmem:[#allocation5 + $0x7d8] sm:$0xff]
    %v790 = vld [vmem:[#allocation5 + $0x7e0] sm:$0xff]
    %v791 = vld [vmem:[#allocation5 + $0x7e8] sm:$0xff]
    %v792 = vld [vmem:[#allocation5 + $0x7f0] sm:$0xff]
    %v793 = vld [vmem:[#allocation5 + $0x7f8] sm:$0xff]
    %794 = vmatprep.subr.mxu0 0.0
    %795 = vmatpush1.msra.mxu0 %v295
    %796 = vmatprep.subr.mxu0 0.0
    %797 = vmatpush1.msra.mxu0 %v290
    %798 = vmatprep.subr.mxu0 0.0
    %799 = vmatpush1.msra.mxu0 %v285
    %800 = vmatprep.subr.mxu0 0.0
    %801 = vmatpush1.msra.mxu0 %v280
    %802 = vmatprep.subr.mxu0 0.0
    %803 = vmatpush1.msra.mxu0 %v275
    %804 = vmatprep.subr.mxu0 0.0
    %805 = vmatpush1.msra.mxu0 %v270
    %806 = vmatprep.subr.mxu0 0.0
    %807 = vmatpush1.msra.mxu0 %v265
    %808 = vmatprep.subr.mxu0 0.0
    %809 = vmatpush1.msra.mxu0 %v260
    %810 = vmatprep.subr.mxu0 0.0
    %811 = vmatpush1.msra.mxu0 %v255
    %812 = vmatprep.subr.mxu0 0.0
    %813 = vmatpush1.msra.mxu0 %v250
    %814 = vmatprep.subr.mxu0 0.0
    %815 = vmatpush1.msra.mxu0 %v245
    %816 = vmatprep.subr.mxu0 0.0
    %817 = vmatpush1.msra.mxu0 %v240
    %818 = vmatprep.subr.mxu0 0.0
    %819 = vmatpush1.msra.mxu0 %v235
    %820 = vmatprep.subr.mxu0 0.0
    %821 = vmatpush1.msra.mxu0 %v230
    %822 = vmatprep.subr.mxu0 0.0
    %823 = vmatpush1.msra.mxu0 %v225
    %824 = vmatprep.subr.mxu0 0.0
    %825 = vmatpush1.msra.mxu0 %v220
    %826 = vmatprep.subr.mxu0 0.0
    %827 = vmatpush2.msra.mxu0 %v375
    %828 = vmatprep.subr.mxu0 0.0
    %829 = vmatpush2.msra.mxu0 %v370
    %830 = vmatprep.subr.mxu0 0.0
    %831 = vmatpush2.msra.mxu0 %v365
    %832 = vmatprep.subr.mxu0 0.0
    %833 = vmatpush2.msra.mxu0 %v360
    %834 = vmatprep.subr.mxu0 0.0
    %835 = vmatpush2.msra.mxu0 %v355
    %836 = vmatprep.subr.mxu0 0.0
    %837 = vmatpush2.msra.mxu0 %v350
    %838 = vmatprep.subr.mxu0 0.0
    %839 = vmatpush2.msra.mxu0 %v345
    %840 = vmatprep.subr.mxu0 0.0
    %841 = vmatpush2.msra.mxu0 %v340
    %842 = vmatprep.subr.mxu0 0.0
    %843 = vmatpush2.msra.mxu0 %v335
    %844 = vmatprep.subr.mxu0 0.0
    %845 = vmatpush2.msra.mxu0 %v330
    %846 = vmatprep.subr.mxu0 0.0
    %847 = vmatpush2.msra.mxu0 %v325
    %848 = vmatprep.subr.mxu0 0.0
    %849 = vmatpush2.msra.mxu0 %v320
    %850 = vmatprep.subr.mxu0 0.0
    %851 = vmatpush2.msra.mxu0 %v315
    %852 = vmatprep.subr.mxu0 0.0
    %853 = vmatpush2.msra.mxu0 %v310
    %854 = vmatprep.subr.mxu0 0.0
    %855 = vmatpush2.msra.mxu0 %v305
    %856 = vmatprep.subr.mxu0 0.0
    %857 = vmatpush2.msra.mxu0 %v300
    %858 = vmatprep.mubr.f32.mxu0 %v539
    %859 = vmatmul.mubr.f32.gmra.mxu0 %v538
    %v860 = vpop.f32.mrf.mxu0
    %v861 = vadd.f32 0.0, %v860
    %v862 = vpop.f32.mrf.mxu0
    %863 = vmatprep.mubr.f32.mxu0 %v543
    %864 = vmatmul.mubr.f32.gmra.mxu0 %v542
    %v865 = vpop.f32.mrf.mxu0
    %v866 = vadd.f32 0.0, %v865
    %v867 = vpop.f32.mrf.mxu0
    %868 = vmatprep.mubr.f32.mxu0 %v547
    %869 = vmatmul.mubr.f32.gmra.mxu0 %v546
    %v870 = vpop.f32.mrf.mxu0
    %v871 = vadd.f32 0.0, %v870
    %v872 = vpop.f32.mrf.mxu0
    %873 = vmatprep.mubr.f32.mxu0 %v551
    %874 = vmatmul.mubr.f32.gmra.mxu0 %v550
    %v875 = vpop.f32.mrf.mxu0
    %v876 = vadd.f32 0.0, %v875
    %v877 = vpop.f32.mrf.mxu0
    %878 = vmatprep.mubr.f32.mxu0 %v555
    %879 = vmatmul.mubr.f32.gmra.mxu0 %v554
    %v880 = vpop.f32.mrf.mxu0
    %v881 = vadd.f32 0.0, %v880
    %v882 = vpop.f32.mrf.mxu0
    %883 = vmatprep.mubr.f32.mxu0 %v559
    %884 = vmatmul.mubr.f32.gmra.mxu0 %v558
    %v885 = vpop.f32.mrf.mxu0
    %v886 = vadd.f32 0.0, %v885
    %v887 = vpop.f32.mrf.mxu0
    %888 = vmatprep.mubr.f32.mxu0 %v563
    %889 = vmatmul.mubr.f32.gmra.mxu0 %v562
    %v890 = vpop.f32.mrf.mxu0
    %v891 = vadd.f32 0.0, %v890
    %v892 = vpop.f32.mrf.mxu0
    %893 = vmatprep.mubr.f32.mxu0 %v567
    %894 = vmatmul.mubr.f32.gmra.mxu0 %v566
    %v895 = vpop.f32.mrf.mxu0
    %v896 = vadd.f32 0.0, %v895
    %v897 = vpop.f32.mrf.mxu0
    %898 = vmatprep.mubr.f32.mxu0 %v571
    %899 = vmatmul.mubr.f32.gmra.mxu0 %v570
    %v900 = vpop.f32.mrf.mxu0
    %v901 = vadd.f32 0.0, %v900
    %v902 = vpop.f32.mrf.mxu0
    %903 = vmatprep.mubr.f32.mxu0 %v575
    %904 = vmatmul.mubr.f32.gmra.mxu0 %v574
    %v905 = vpop.f32.mrf.mxu0
    %v906 = vadd.f32 0.0, %v905
    %v907 = vpop.f32.mrf.mxu0
    %908 = vmatprep.mubr.f32.mxu0 %v579
    %909 = vmatmul.mubr.f32.gmra.mxu0 %v578
    %v910 = vpop.f32.mrf.mxu0
    %v911 = vadd.f32 0.0, %v910
    %v912 = vpop.f32.mrf.mxu0
    %913 = vmatprep.mubr.f32.mxu0 %v583
    %914 = vmatmul.mubr.f32.gmra.mxu0 %v582
    %v915 = vpop.f32.mrf.mxu0
    %v916 = vadd.f32 0.0, %v915
    %v917 = vpop.f32.mrf.mxu0
    %918 = vmatprep.mubr.f32.mxu0 %v587
    %919 = vmatmul.mubr.f32.gmra.mxu0 %v586
    %v920 = vpop.f32.mrf.mxu0
    %v921 = vadd.f32 0.0, %v920
    %v922 = vpop.f32.mrf.mxu0
    %923 = vmatprep.mubr.f32.mxu0 %v591
    %924 = vmatmul.mubr.f32.gmra.mxu0 %v590
    %v925 = vpop.f32.mrf.mxu0
    %v926 = vadd.f32 0.0, %v925
    %v927 = vpop.f32.mrf.mxu0
    %928 = vmatprep.mubr.f32.mxu0 %v595
    %929 = vmatmul.mubr.f32.gmra.mxu0 %v594
    %v930 = vpop.f32.mrf.mxu0
    %v931 = vadd.f32 0.0, %v930
    %v932 = vpop.f32.mrf.mxu0
    %933 = vmatprep.mubr.f32.mxu0 %v599
    %934 = vmatmul.mubr.f32.gmra.mxu0 %v598
    %v935 = vpop.f32.mrf.mxu0
    %v936 = vadd.f32 0.0, %v935
    %v937 = vpop.f32.mrf.mxu0
    %938 = vmatprep.mubr.f32.mxu0 %v603
    %939 = vmatmul.mubr.f32.gmra.mxu0 %v602
    %v940 = vpop.f32.mrf.mxu0
    %v941 = vadd.f32 0.0, %v940
    %v942 = vpop.f32.mrf.mxu0
    %943 = vmatprep.mubr.f32.mxu0 %v607
    %944 = vmatmul.mubr.f32.gmra.mxu0 %v606
    %v945 = vpop.f32.mrf.mxu0
    %v946 = vadd.f32 0.0, %v945
    %v947 = vpop.f32.mrf.mxu0
    %948 = vmatprep.mubr.f32.mxu0 %v611
    %949 = vmatmul.mubr.f32.gmra.mxu0 %v610
    %v950 = vpop.f32.mrf.mxu0
    %v951 = vadd.f32 0.0, %v950
    %v952 = vpop.f32.mrf.mxu0
    %953 = vmatprep.mubr.f32.mxu0 %v615
    %954 = vmatmul.mubr.f32.gmra.mxu0 %v614
    %v955 = vpop.f32.mrf.mxu0
    %v956 = vadd.f32 0.0, %v955
    %v957 = vpop.f32.mrf.mxu0
    %958 = vmatprep.mubr.f32.mxu0 %v619
    %959 = vmatmul.mubr.f32.gmra.mxu0 %v618
    %v960 = vpop.f32.mrf.mxu0
    %v961 = vadd.f32 0.0, %v960
    %v962 = vpop.f32.mrf.mxu0
    %963 = vmatprep.mubr.f32.mxu0 %v623
    %964 = vmatmul.mubr.f32.gmra.mxu0 %v622
    %v965 = vpop.f32.mrf.mxu0
    %v966 = vadd.f32 0.0, %v965
    %v967 = vpop.f32.mrf.mxu0
    %968 = vmatprep.mubr.f32.mxu0 %v627
    %969 = vmatmul.mubr.f32.gmra.mxu0 %v626
    %v970 = vpop.f32.mrf.mxu0
    %v971 = vadd.f32 0.0, %v970
    %v972 = vpop.f32.mrf.mxu0
    %973 = vmatprep.mubr.f32.mxu0 %v631
    %974 = vmatmul.mubr.f32.gmra.mxu0 %v630
    %v975 = vpop.f32.mrf.mxu0
    %v976 = vadd.f32 0.0, %v975
    %v977 = vpop.f32.mrf.mxu0
    %978 = vmatprep.mubr.f32.mxu0 %v635
    %979 = vmatmul.mubr.f32.gmra.mxu0 %v634
    %v980 = vpop.f32.mrf.mxu0
    %v981 = vadd.f32 0.0, %v980
    %v982 = vpop.f32.mrf.mxu0
    %983 = vmatprep.mubr.f32.mxu0 %v639
    %984 = vmatmul.mubr.f32.gmra.mxu0 %v638
    %v985 = vpop.f32.mrf.mxu0
    %v986 = vadd.f32 0.0, %v985
    %v987 = vpop.f32.mrf.mxu0
    %988 = vmatprep.mubr.f32.mxu0 %v643
    %989 = vmatmul.mubr.f32.gmra.mxu0 %v642
    %v990 = vpop.f32.mrf.mxu0
    %v991 = vadd.f32 0.0, %v990
    %v992 = vpop.f32.mrf.mxu0
    %993 = vmatprep.mubr.f32.mxu0 %v647
    %994 = vmatmul.mubr.f32.gmra.mxu0 %v646
    %v995 = vpop.f32.mrf.mxu0
    %v996 = vadd.f32 0.0, %v995
    %v997 = vpop.f32.mrf.mxu0
    %998 = vmatprep.mubr.f32.mxu0 %v651
    %999 = vmatmul.mubr.f32.gmra.mxu0 %v650
    %v1000 = vpop.f32.mrf.mxu0
    %v1001 = vadd.f32 0.0, %v1000
    %v1002 = vpop.f32.mrf.mxu0
    %1003 = vmatprep.mubr.f32.mxu0 %v655
    %1004 = vmatmul.mubr.f32.gmra.mxu0 %v654
    %v1005 = vpop.f32.mrf.mxu0
    %v1006 = vadd.f32 0.0, %v1005
    %v1007 = vpop.f32.mrf.mxu0
    %1008 = vmatprep.mubr.f32.mxu0 %v659
    %1009 = vmatmul.mubr.f32.gmra.mxu0 %v658
    %v1010 = vpop.f32.mrf.mxu0
    %v1011 = vadd.f32 0.0, %v1010
    %v1012 = vpop.f32.mrf.mxu0
    %1013 = vmatprep.mubr.f32.mxu0 %v663
    %1014 = vmatmul.mubr.f32.gmra.mxu0 %v662
    %v1015 = vpop.f32.mrf.mxu0
    %v1016 = vadd.f32 0.0, %v1015
    %v1017 = vpop.f32.mrf.mxu0
    %1018 = vmatprep.mubr.f32.mxu0 %v667
    %1019 = vmatmul.mubr.f32.gmra.mxu0 %v666
    %v1020 = vpop.f32.mrf.mxu0
    %v1021 = vadd.f32 0.0, %v1020
    %v1022 = vpop.f32.mrf.mxu0
    %1023 = vmatprep.mubr.f32.mxu0 %v671
    %1024 = vmatmul.mubr.f32.gmra.mxu0 %v670
    %v1025 = vpop.f32.mrf.mxu0
    %v1026 = vadd.f32 0.0, %v1025
    %v1027 = vpop.f32.mrf.mxu0
    %1028 = vmatprep.mubr.f32.mxu0 %v675
    %1029 = vmatmul.mubr.f32.gmra.mxu0 %v674
    %v1030 = vpop.f32.mrf.mxu0
    %v1031 = vadd.f32 0.0, %v1030
    %v1032 = vpop.f32.mrf.mxu0
    %1033 = vmatprep.mubr.f32.mxu0 %v679
    %1034 = vmatmul.mubr.f32.gmra.mxu0 %v678
    %v1035 = vpop.f32.mrf.mxu0
    %v1036 = vadd.f32 0.0, %v1035
    %v1037 = vpop.f32.mrf.mxu0
    %1038 = vmatprep.mubr.f32.mxu0 %v683
    %1039 = vmatmul.mubr.f32.gmra.mxu0 %v682
    %v1040 = vpop.f32.mrf.mxu0
    %v1041 = vadd.f32 0.0, %v1040
    %v1042 = vpop.f32.mrf.mxu0
    %1043 = vmatprep.mubr.f32.mxu0 %v687
    %1044 = vmatmul.mubr.f32.gmra.mxu0 %v686
    %v1045 = vpop.f32.mrf.mxu0
    %v1046 = vadd.f32 0.0, %v1045
    %v1047 = vpop.f32.mrf.mxu0
    %1048 = vmatprep.mubr.f32.mxu0 %v691
    %1049 = vmatmul.mubr.f32.gmra.mxu0 %v690
    %v1050 = vpop.f32.mrf.mxu0
    %v1051 = vadd.f32 0.0, %v1050
    %v1052 = vpop.f32.mrf.mxu0
    %1053 = vmatprep.mubr.f32.mxu0 %v695
    %1054 = vmatmul.mubr.f32.gmra.mxu0 %v694
    %v1055 = vpop.f32.mrf.mxu0
    %v1056 = vadd.f32 0.0, %v1055
    %v1057 = vpop.f32.mrf.mxu0
    %1058 = vmatprep.mubr.f32.mxu0 %v699
    %1059 = vmatmul.mubr.f32.gmra.mxu0 %v698
    %v1060 = vpop.f32.mrf.mxu0
    %v1061 = vadd.f32 0.0, %v1060
    %v1062 = vpop.f32.mrf.mxu0
    %1063 = vmatprep.mubr.f32.mxu0 %v703
    %1064 = vmatmul.mubr.f32.gmra.mxu0 %v702
    %v1065 = vpop.f32.mrf.mxu0
    %v1066 = vadd.f32 0.0, %v1065
    %v1067 = vpop.f32.mrf.mxu0
    %1068 = vmatprep.mubr.f32.mxu0 %v707
    %1069 = vmatmul.mubr.f32.gmra.mxu0 %v706
    %v1070 = vpop.f32.mrf.mxu0
    %v1071 = vadd.f32 0.0, %v1070
    %v1072 = vpop.f32.mrf.mxu0
    %1073 = vmatprep.mubr.f32.mxu0 %v711
    %1074 = vmatmul.mubr.f32.gmra.mxu0 %v710
    %v1075 = vpop.f32.mrf.mxu0
    %v1076 = vadd.f32 0.0, %v1075
    %v1077 = vpop.f32.mrf.mxu0
    %1078 = vmatprep.mubr.f32.mxu0 %v715
    %1079 = vmatmul.mubr.f32.gmra.mxu0 %v714
    %v1080 = vpop.f32.mrf.mxu0
    %v1081 = vadd.f32 0.0, %v1080
    %v1082 = vpop.f32.mrf.mxu0
    %1083 = vmatprep.mubr.f32.mxu0 %v719
    %1084 = vmatmul.mubr.f32.gmra.mxu0 %v718
    %v1085 = vpop.f32.mrf.mxu0
    %v1086 = vadd.f32 0.0, %v1085
    %v1087 = vpop.f32.mrf.mxu0
    %1088 = vmatprep.mubr.f32.mxu0 %v723
    %1089 = vmatmul.mubr.f32.gmra.mxu0 %v722
    %v1090 = vpop.f32.mrf.mxu0
    %v1091 = vadd.f32 0.0, %v1090
    %v1092 = vpop.f32.mrf.mxu0
    %1093 = vmatprep.mubr.f32.mxu0 %v727
    %1094 = vmatmul.mubr.f32.gmra.mxu0 %v726
    %v1095 = vpop.f32.mrf.mxu0
    %v1096 = vadd.f32 0.0, %v1095
    %v1097 = vpop.f32.mrf.mxu0
    %1098 = vmatprep.mubr.f32.mxu0 %v731
    %1099 = vmatmul.mubr.f32.gmra.mxu0 %v730
    %v1100 = vpop.f32.mrf.mxu0
    %v1101 = vadd.f32 0.0, %v1100
    %v1102 = vpop.f32.mrf.mxu0
    %1103 = vmatprep.mubr.f32.mxu0 %v735
    %1104 = vmatmul.mubr.f32.gmra.mxu0 %v734
    %v1105 = vpop.f32.mrf.mxu0
    %v1106 = vadd.f32 0.0, %v1105
    %v1107 = vpop.f32.mrf.mxu0
    %1108 = vmatprep.mubr.f32.mxu0 %v739
    %1109 = vmatmul.mubr.f32.gmra.mxu0 %v738
    %v1110 = vpop.f32.mrf.mxu0
    %v1111 = vadd.f32 0.0, %v1110
    %v1112 = vpop.f32.mrf.mxu0
    %1113 = vmatprep.mubr.f32.mxu0 %v743
    %1114 = vmatmul.mubr.f32.gmra.mxu0 %v742
    %v1115 = vpop.f32.mrf.mxu0
    %v1116 = vadd.f32 0.0, %v1115
    %v1117 = vpop.f32.mrf.mxu0
    %1118 = vmatprep.mubr.f32.mxu0 %v747
    %1119 = vmatmul.mubr.f32.gmra.mxu0 %v746
    %v1120 = vpop.f32.mrf.mxu0
    %v1121 = vadd.f32 0.0, %v1120
    %v1122 = vpop.f32.mrf.mxu0
    %1123 = vmatprep.mubr.f32.mxu0 %v751
    %1124 = vmatmul.mubr.f32.gmra.mxu0 %v750
    %v1125 = vpop.f32.mrf.mxu0
    %v1126 = vadd.f32 0.0, %v1125
    %v1127 = vpop.f32.mrf.mxu0
    %1128 = vmatprep.mubr.f32.mxu0 %v755
    %1129 = vmatmul.mubr.f32.gmra.mxu0 %v754
    %v1130 = vpop.f32.mrf.mxu0
    %v1131 = vadd.f32 0.0, %v1130
    %v1132 = vpop.f32.mrf.mxu0
    %1133 = vmatprep.mubr.f32.mxu0 %v759
    %1134 = vmatmul.mubr.f32.gmra.mxu0 %v758
    %v1135 = vpop.f32.mrf.mxu0
    %v1136 = vadd.f32 0.0, %v1135
    %v1137 = vpop.f32.mrf.mxu0
    %1138 = vmatprep.mubr.f32.mxu0 %v763
    %1139 = vmatmul.mubr.f32.gmra.mxu0 %v762
    %v1140 = vpop.f32.mrf.mxu0
    %v1141 = vadd.f32 0.0, %v1140
    %v1142 = vpop.f32.mrf.mxu0
    %1143 = vmatprep.mubr.f32.mxu0 %v767
    %1144 = vmatmul.mubr.f32.gmra.mxu0 %v766
    %v1145 = vpop.f32.mrf.mxu0
    %v1146 = vadd.f32 0.0, %v1145
    %v1147 = vpop.f32.mrf.mxu0
    %1148 = vmatprep.mubr.f32.mxu0 %v771
    %1149 = vmatmul.mubr.f32.gmra.mxu0 %v770
    %v1150 = vpop.f32.mrf.mxu0
    %v1151 = vadd.f32 0.0, %v1150
    %v1152 = vpop.f32.mrf.mxu0
    %1153 = vmatprep.mubr.f32.mxu0 %v775
    %1154 = vmatmul.mubr.f32.gmra.mxu0 %v774
    %v1155 = vpop.f32.mrf.mxu0
    %v1156 = vadd.f32 0.0, %v1155
    %v1157 = vpop.f32.mrf.mxu0
    %1158 = vmatprep.mubr.f32.mxu0 %v779
    %1159 = vmatmul.mubr.f32.gmra.mxu0 %v778
    %v1160 = vpop.f32.mrf.mxu0
    %v1161 = vadd.f32 0.0, %v1160
    %v1162 = vpop.f32.mrf.mxu0
    %1163 = vmatprep.mubr.f32.mxu0 %v783
    %1164 = vmatmul.mubr.f32.gmra.mxu0 %v782
    %v1165 = vpop.f32.mrf.mxu0
    %v1166 = vadd.f32 0.0, %v1165
    %v1167 = vpop.f32.mrf.mxu0
    %1168 = vmatprep.mubr.f32.mxu0 %v787
    %1169 = vmatmul.mubr.f32.gmra.mxu0 %v786
    %v1170 = vpop.f32.mrf.mxu0
    %v1171 = vadd.f32 0.0, %v1170
    %v1172 = vpop.f32.mrf.mxu0
    %1173 = vmatprep.mubr.f32.mxu0 %v791
    %1174 = vmatmul.mubr.f32.gmra.mxu0 %v790
    %v1175 = vpop.f32.mrf.mxu0
    %v1176 = vadd.f32 0.0, %v1175
    %v1177 = vpop.f32.mrf.mxu0
    %1178 = vdwg.mxu0
    %1179 = vmatprep.subr.mxu0 0.0
    %1180 = vmatpush1.msra.mxu0 %v455
    %1181 = vmatprep.subr.mxu0 0.0
    %1182 = vmatpush1.msra.mxu0 %v450
    %1183 = vmatprep.subr.mxu0 0.0
    %1184 = vmatpush1.msra.mxu0 %v445
    %1185 = vmatprep.subr.mxu0 0.0
    %1186 = vmatpush1.msra.mxu0 %v440
    %1187 = vmatprep.subr.mxu0 0.0
    %1188 = vmatpush1.msra.mxu0 %v435
    %1189 = vmatprep.subr.mxu0 0.0
    %1190 = vmatpush1.msra.mxu0 %v430
    %1191 = vmatprep.subr.mxu0 0.0
    %1192 = vmatpush1.msra.mxu0 %v425
    %1193 = vmatprep.subr.mxu0 0.0
    %1194 = vmatpush1.msra.mxu0 %v420
    %1195 = vmatprep.subr.mxu0 0.0
    %1196 = vmatpush1.msra.mxu0 %v415
    %1197 = vmatprep.subr.mxu0 0.0
    %1198 = vmatpush1.msra.mxu0 %v410
    %1199 = vmatprep.subr.mxu0 0.0
    %1200 = vmatpush1.msra.mxu0 %v405
    %1201 = vmatprep.subr.mxu0 0.0
    %1202 = vmatpush1.msra.mxu0 %v400
    %1203 = vmatprep.subr.mxu0 0.0
    %1204 = vmatpush1.msra.mxu0 %v395
    %1205 = vmatprep.subr.mxu0 0.0
    %1206 = vmatpush1.msra.mxu0 %v390
    %1207 = vmatprep.subr.mxu0 0.0
    %1208 = vmatpush1.msra.mxu0 %v385
    %1209 = vmatprep.subr.mxu0 0.0
    %1210 = vmatpush1.msra.mxu0 %v380
    %1211 = vmatprep.subr.mxu0 0.0
    %1212 = vmatpush2.msra.mxu0 %v535
    %1213 = vmatprep.subr.mxu0 0.0
    %1214 = vmatpush2.msra.mxu0 %v530
    %1215 = vmatprep.subr.mxu0 0.0
    %1216 = vmatpush2.msra.mxu0 %v525
    %1217 = vmatprep.subr.mxu0 0.0
    %1218 = vmatpush2.msra.mxu0 %v520
    %1219 = vmatprep.subr.mxu0 0.0
    %1220 = vmatpush2.msra.mxu0 %v515
    %1221 = vmatprep.subr.mxu0 0.0
    %1222 = vmatpush2.msra.mxu0 %v510
    %1223 = vmatprep.subr.mxu0 0.0
    %1224 = vmatpush2.msra.mxu0 %v505
    %1225 = vmatprep.subr.mxu0 0.0
    %1226 = vmatpush2.msra.mxu0 %v500
    %1227 = vmatprep.subr.mxu0 0.0
    %1228 = vmatpush2.msra.mxu0 %v495
    %1229 = vmatprep.subr.mxu0 0.0
    %1230 = vmatpush2.msra.mxu0 %v490
    %1231 = vmatprep.subr.mxu0 0.0
    %1232 = vmatpush2.msra.mxu0 %v485
    %1233 = vmatprep.subr.mxu0 0.0
    %1234 = vmatpush2.msra.mxu0 %v480
    %1235 = vmatprep.subr.mxu0 0.0
    %1236 = vmatpush2.msra.mxu0 %v475
    %1237 = vmatprep.subr.mxu0 0.0
    %1238 = vmatpush2.msra.mxu0 %v470
    %1239 = vmatprep.subr.mxu0 0.0
    %1240 = vmatpush2.msra.mxu0 %v465
    %1241 = vmatprep.subr.mxu0 0.0
    %1242 = vmatpush2.msra.mxu0 %v460
    %1243 = vmatprep.mubr.f32.mxu0 %v541
    %1244 = vmatmul.mubr.f32.gmra.mxu0 %v540
    %v1245 = vpop.f32.mrf.mxu0
    %v1246 = vadd.f32 %v861, %v1245
    %v1247 = vpop.f32.mrf.mxu0
    %1248 = vmatprep.mubr.f32.mxu0 %v545
    %1249 = vmatmul.mubr.f32.gmra.mxu0 %v544
    %v1250 = vpop.f32.mrf.mxu0
    %v1251 = vadd.f32 %v866, %v1250
    %v1252 = vpop.f32.mrf.mxu0
    %1253 = vmatprep.mubr.f32.mxu0 %v549
    %1254 = vmatmul.mubr.f32.gmra.mxu0 %v548
    %v1255 = vpop.f32.mrf.mxu0
    %v1256 = vadd.f32 %v871, %v1255
    %v1257 = vpop.f32.mrf.mxu0
    %1258 = vmatprep.mubr.f32.mxu0 %v553
    %1259 = vmatmul.mubr.f32.gmra.mxu0 %v552
    %v1260 = vpop.f32.mrf.mxu0
    %v1261 = vadd.f32 %v876, %v1260
    %v1262 = vpop.f32.mrf.mxu0
    %1263 = vmatprep.mubr.f32.mxu0 %v557
    %1264 = vmatmul.mubr.f32.gmra.mxu0 %v556
    %v1265 = vpop.f32.mrf.mxu0
    %v1266 = vadd.f32 %v881, %v1265
    %v1267 = vpop.f32.mrf.mxu0
    %1268 = vmatprep.mubr.f32.mxu0 %v561
    %1269 = vmatmul.mubr.f32.gmra.mxu0 %v560
    %v1270 = vpop.f32.mrf.mxu0
    %v1271 = vadd.f32 %v886, %v1270
    %v1272 = vpop.f32.mrf.mxu0
    %1273 = vmatprep.mubr.f32.mxu0 %v565
    %1274 = vmatmul.mubr.f32.gmra.mxu0 %v564
    %v1275 = vpop.f32.mrf.mxu0
    %v1276 = vadd.f32 %v891, %v1275
    %v1277 = vpop.f32.mrf.mxu0
    %1278 = vmatprep.mubr.f32.mxu0 %v569
    %1279 = vmatmul.mubr.f32.gmra.mxu0 %v568
    %v1280 = vpop.f32.mrf.mxu0
    %v1281 = vadd.f32 %v896, %v1280
    %v1282 = vpop.f32.mrf.mxu0
    %1283 = vmatprep.mubr.f32.mxu0 %v573
    %1284 = vmatmul.mubr.f32.gmra.mxu0 %v572
    %v1285 = vpop.f32.mrf.mxu0
    %v1286 = vadd.f32 %v901, %v1285
    %v1287 = vpop.f32.mrf.mxu0
    %1288 = vmatprep.mubr.f32.mxu0 %v577
    %1289 = vmatmul.mubr.f32.gmra.mxu0 %v576
    %v1290 = vpop.f32.mrf.mxu0
    %v1291 = vadd.f32 %v906, %v1290
    %v1292 = vpop.f32.mrf.mxu0
    %1293 = vmatprep.mubr.f32.mxu0 %v581
    %1294 = vmatmul.mubr.f32.gmra.mxu0 %v580
    %v1295 = vpop.f32.mrf.mxu0
    %v1296 = vadd.f32 %v911, %v1295
    %v1297 = vpop.f32.mrf.mxu0
    %1298 = vmatprep.mubr.f32.mxu0 %v585
    %1299 = vmatmul.mubr.f32.gmra.mxu0 %v584
    %v1300 = vpop.f32.mrf.mxu0
    %v1301 = vadd.f32 %v916, %v1300
    %v1302 = vpop.f32.mrf.mxu0
    %1303 = vmatprep.mubr.f32.mxu0 %v589
    %1304 = vmatmul.mubr.f32.gmra.mxu0 %v588
    %v1305 = vpop.f32.mrf.mxu0
    %v1306 = vadd.f32 %v921, %v1305
    %v1307 = vpop.f32.mrf.mxu0
    %1308 = vmatprep.mubr.f32.mxu0 %v593
    %1309 = vmatmul.mubr.f32.gmra.mxu0 %v592
    %v1310 = vpop.f32.mrf.mxu0
    %v1311 = vadd.f32 %v926, %v1310
    %v1312 = vpop.f32.mrf.mxu0
    %1313 = vmatprep.mubr.f32.mxu0 %v597
    %1314 = vmatmul.mubr.f32.gmra.mxu0 %v596
    %v1315 = vpop.f32.mrf.mxu0
    %v1316 = vadd.f32 %v931, %v1315
    %v1317 = vpop.f32.mrf.mxu0
    %1318 = vmatprep.mubr.f32.mxu0 %v601
    %1319 = vmatmul.mubr.f32.gmra.mxu0 %v600
    %v1320 = vpop.f32.mrf.mxu0
    %v1321 = vadd.f32 %v936, %v1320
    %v1322 = vpop.f32.mrf.mxu0
    %1323 = vmatprep.mubr.f32.mxu0 %v605
    %1324 = vmatmul.mubr.f32.gmra.mxu0 %v604
    %v1325 = vpop.f32.mrf.mxu0
    %v1326 = vadd.f32 %v941, %v1325
    %v1327 = vpop.f32.mrf.mxu0
    %1328 = vmatprep.mubr.f32.mxu0 %v609
    %1329 = vmatmul.mubr.f32.gmra.mxu0 %v608
    %v1330 = vpop.f32.mrf.mxu0
    %v1331 = vadd.f32 %v946, %v1330
    %v1332 = vpop.f32.mrf.mxu0
    %1333 = vmatprep.mubr.f32.mxu0 %v613
    %1334 = vmatmul.mubr.f32.gmra.mxu0 %v612
    %v1335 = vpop.f32.mrf.mxu0
    %v1336 = vadd.f32 %v951, %v1335
    %v1337 = vpop.f32.mrf.mxu0
    %1338 = vmatprep.mubr.f32.mxu0 %v617
    %1339 = vmatmul.mubr.f32.gmra.mxu0 %v616
    %v1340 = vpop.f32.mrf.mxu0
    %v1341 = vadd.f32 %v956, %v1340
    %v1342 = vpop.f32.mrf.mxu0
    %1343 = vmatprep.mubr.f32.mxu0 %v621
    %1344 = vmatmul.mubr.f32.gmra.mxu0 %v620
    %v1345 = vpop.f32.mrf.mxu0
    %v1346 = vadd.f32 %v961, %v1345
    %v1347 = vpop.f32.mrf.mxu0
    %1348 = vmatprep.mubr.f32.mxu0 %v625
    %1349 = vmatmul.mubr.f32.gmra.mxu0 %v624
    %v1350 = vpop.f32.mrf.mxu0
    %v1351 = vadd.f32 %v966, %v1350
    %v1352 = vpop.f32.mrf.mxu0
    %1353 = vmatprep.mubr.f32.mxu0 %v629
    %1354 = vmatmul.mubr.f32.gmra.mxu0 %v628
    %v1355 = vpop.f32.mrf.mxu0
    %v1356 = vadd.f32 %v971, %v1355
    %v1357 = vpop.f32.mrf.mxu0
    %1358 = vmatprep.mubr.f32.mxu0 %v633
    %1359 = vmatmul.mubr.f32.gmra.mxu0 %v632
    %v1360 = vpop.f32.mrf.mxu0
    %v1361 = vadd.f32 %v976, %v1360
    %v1362 = vpop.f32.mrf.mxu0
    %1363 = vmatprep.mubr.f32.mxu0 %v637
    %1364 = vmatmul.mubr.f32.gmra.mxu0 %v636
    %v1365 = vpop.f32.mrf.mxu0
    %v1366 = vadd.f32 %v981, %v1365
    %v1367 = vpop.f32.mrf.mxu0
    %1368 = vmatprep.mubr.f32.mxu0 %v641
    %1369 = vmatmul.mubr.f32.gmra.mxu0 %v640
    %v1370 = vpop.f32.mrf.mxu0
    %v1371 = vadd.f32 %v986, %v1370
    %v1372 = vpop.f32.mrf.mxu0
    %1373 = vmatprep.mubr.f32.mxu0 %v645
    %1374 = vmatmul.mubr.f32.gmra.mxu0 %v644
    %v1375 = vpop.f32.mrf.mxu0
    %v1376 = vadd.f32 %v991, %v1375
    %v1377 = vpop.f32.mrf.mxu0
    %1378 = vmatprep.mubr.f32.mxu0 %v649
    %1379 = vmatmul.mubr.f32.gmra.mxu0 %v648
    %v1380 = vpop.f32.mrf.mxu0
    %v1381 = vadd.f32 %v996, %v1380
    %v1382 = vpop.f32.mrf.mxu0
    %1383 = vmatprep.mubr.f32.mxu0 %v653
    %1384 = vmatmul.mubr.f32.gmra.mxu0 %v652
    %v1385 = vpop.f32.mrf.mxu0
    %v1386 = vadd.f32 %v1001, %v1385
    %v1387 = vpop.f32.mrf.mxu0
    %1388 = vmatprep.mubr.f32.mxu0 %v657
    %1389 = vmatmul.mubr.f32.gmra.mxu0 %v656
    %v1390 = vpop.f32.mrf.mxu0
    %v1391 = vadd.f32 %v1006, %v1390
    %v1392 = vpop.f32.mrf.mxu0
    %1393 = vmatprep.mubr.f32.mxu0 %v661
    %1394 = vmatmul.mubr.f32.gmra.mxu0 %v660
    %v1395 = vpop.f32.mrf.mxu0
    %v1396 = vadd.f32 %v1011, %v1395
    %v1397 = vpop.f32.mrf.mxu0
    %1398 = vmatprep.mubr.f32.mxu0 %v665
    %1399 = vmatmul.mubr.f32.gmra.mxu0 %v664
    %v1400 = vpop.f32.mrf.mxu0
    %v1401 = vadd.f32 %v1016, %v1400
    %v1402 = vpop.f32.mrf.mxu0
    %1403 = vmatprep.mubr.f32.mxu0 %v669
    %1404 = vmatmul.mubr.f32.gmra.mxu0 %v668
    %v1405 = vpop.f32.mrf.mxu0
    %v1406 = vadd.f32 %v1021, %v1405
    %v1407 = vpop.f32.mrf.mxu0
    %1408 = vmatprep.mubr.f32.mxu0 %v673
    %1409 = vmatmul.mubr.f32.gmra.mxu0 %v672
    %v1410 = vpop.f32.mrf.mxu0
    %v1411 = vadd.f32 %v1026, %v1410
    %v1412 = vpop.f32.mrf.mxu0
    %1413 = vmatprep.mubr.f32.mxu0 %v677
    %1414 = vmatmul.mubr.f32.gmra.mxu0 %v676
    %v1415 = vpop.f32.mrf.mxu0
    %v1416 = vadd.f32 %v1031, %v1415
    %v1417 = vpop.f32.mrf.mxu0
    %1418 = vmatprep.mubr.f32.mxu0 %v681
    %1419 = vmatmul.mubr.f32.gmra.mxu0 %v680
    %v1420 = vpop.f32.mrf.mxu0
    %v1421 = vadd.f32 %v1036, %v1420
    %v1422 = vpop.f32.mrf.mxu0
    %1423 = vmatprep.mubr.f32.mxu0 %v685
    %1424 = vmatmul.mubr.f32.gmra.mxu0 %v684
    %v1425 = vpop.f32.mrf.mxu0
    %v1426 = vadd.f32 %v1041, %v1425
    %v1427 = vpop.f32.mrf.mxu0
    %1428 = vmatprep.mubr.f32.mxu0 %v689
    %1429 = vmatmul.mubr.f32.gmra.mxu0 %v688
    %v1430 = vpop.f32.mrf.mxu0
    %v1431 = vadd.f32 %v1046, %v1430
    %v1432 = vpop.f32.mrf.mxu0
    %1433 = vmatprep.mubr.f32.mxu0 %v693
    %1434 = vmatmul.mubr.f32.gmra.mxu0 %v692
    %v1435 = vpop.f32.mrf.mxu0
    %v1436 = vadd.f32 %v1051, %v1435
    %v1437 = vpop.f32.mrf.mxu0
    %1438 = vmatprep.mubr.f32.mxu0 %v697
    %1439 = vmatmul.mubr.f32.gmra.mxu0 %v696
    %v1440 = vpop.f32.mrf.mxu0
    %v1441 = vadd.f32 %v1056, %v1440
    %v1442 = vpop.f32.mrf.mxu0
    %1443 = vmatprep.mubr.f32.mxu0 %v701
    %1444 = vmatmul.mubr.f32.gmra.mxu0 %v700
    %v1445 = vpop.f32.mrf.mxu0
    %v1446 = vadd.f32 %v1061, %v1445
    %v1447 = vpop.f32.mrf.mxu0
    %1448 = vmatprep.mubr.f32.mxu0 %v705
    %1449 = vmatmul.mubr.f32.gmra.mxu0 %v704
    %v1450 = vpop.f32.mrf.mxu0
    %v1451 = vadd.f32 %v1066, %v1450
    %v1452 = vpop.f32.mrf.mxu0
    %1453 = vmatprep.mubr.f32.mxu0 %v709
    %1454 = vmatmul.mubr.f32.gmra.mxu0 %v708
    %v1455 = vpop.f32.mrf.mxu0
    %v1456 = vadd.f32 %v1071, %v1455
    %v1457 = vpop.f32.mrf.mxu0
    %1458 = vmatprep.mubr.f32.mxu0 %v713
    %1459 = vmatmul.mubr.f32.gmra.mxu0 %v712
    %v1460 = vpop.f32.mrf.mxu0
    %v1461 = vadd.f32 %v1076, %v1460
    %v1462 = vpop.f32.mrf.mxu0
    %1463 = vmatprep.mubr.f32.mxu0 %v717
    %1464 = vmatmul.mubr.f32.gmra.mxu0 %v716
    %v1465 = vpop.f32.mrf.mxu0
    %v1466 = vadd.f32 %v1081, %v1465
    %v1467 = vpop.f32.mrf.mxu0
    %1468 = vmatprep.mubr.f32.mxu0 %v721
    %1469 = vmatmul.mubr.f32.gmra.mxu0 %v720
    %v1470 = vpop.f32.mrf.mxu0
    %v1471 = vadd.f32 %v1086, %v1470
    %v1472 = vpop.f32.mrf.mxu0
    %1473 = vmatprep.mubr.f32.mxu0 %v725
    %1474 = vmatmul.mubr.f32.gmra.mxu0 %v724
    %v1475 = vpop.f32.mrf.mxu0
    %v1476 = vadd.f32 %v1091, %v1475
    %v1477 = vpop.f32.mrf.mxu0
    %1478 = vmatprep.mubr.f32.mxu0 %v729
    %1479 = vmatmul.mubr.f32.gmra.mxu0 %v728
    %v1480 = vpop.f32.mrf.mxu0
    %v1481 = vadd.f32 %v1096, %v1480
    %v1482 = vpop.f32.mrf.mxu0
    %1483 = vmatprep.mubr.f32.mxu0 %v733
    %1484 = vmatmul.mubr.f32.gmra.mxu0 %v732
    %v1485 = vpop.f32.mrf.mxu0
    %v1486 = vadd.f32 %v1101, %v1485
    %v1487 = vpop.f32.mrf.mxu0
    %1488 = vmatprep.mubr.f32.mxu0 %v737
    %1489 = vmatmul.mubr.f32.gmra.mxu0 %v736
    %v1490 = vpop.f32.mrf.mxu0
    %v1491 = vadd.f32 %v1106, %v1490
    %v1492 = vpop.f32.mrf.mxu0
    %1493 = vmatprep.mubr.f32.mxu0 %v741
    %1494 = vmatmul.mubr.f32.gmra.mxu0 %v740
    %v1495 = vpop.f32.mrf.mxu0
    %v1496 = vadd.f32 %v1111, %v1495
    %v1497 = vpop.f32.mrf.mxu0
    %1498 = vmatprep.mubr.f32.mxu0 %v745
    %1499 = vmatmul.mubr.f32.gmra.mxu0 %v744
    %v1500 = vpop.f32.mrf.mxu0
    %v1501 = vadd.f32 %v1116, %v1500
    %v1502 = vpop.f32.mrf.mxu0
    %1503 = vmatprep.mubr.f32.mxu0 %v749
    %1504 = vmatmul.mubr.f32.gmra.mxu0 %v748
    %v1505 = vpop.f32.mrf.mxu0
    %v1506 = vadd.f32 %v1121, %v1505
    %v1507 = vpop.f32.mrf.mxu0
    %1508 = vmatprep.mubr.f32.mxu0 %v753
    %1509 = vmatmul.mubr.f32.gmra.mxu0 %v752
    %v1510 = vpop.f32.mrf.mxu0
    %v1511 = vadd.f32 %v1126, %v1510
    %v1512 = vpop.f32.mrf.mxu0
    %1513 = vmatprep.mubr.f32.mxu0 %v757
    %1514 = vmatmul.mubr.f32.gmra.mxu0 %v756
    %v1515 = vpop.f32.mrf.mxu0
    %v1516 = vadd.f32 %v1131, %v1515
    %v1517 = vpop.f32.mrf.mxu0
    %1518 = vmatprep.mubr.f32.mxu0 %v761
    %1519 = vmatmul.mubr.f32.gmra.mxu0 %v760
    %v1520 = vpop.f32.mrf.mxu0
    %v1521 = vadd.f32 %v1136, %v1520
    %v1522 = vpop.f32.mrf.mxu0
    %1523 = vmatprep.mubr.f32.mxu0 %v765
    %1524 = vmatmul.mubr.f32.gmra.mxu0 %v764
    %v1525 = vpop.f32.mrf.mxu0
    %v1526 = vadd.f32 %v1141, %v1525
    %v1527 = vpop.f32.mrf.mxu0
    %1528 = vmatprep.mubr.f32.mxu0 %v769
    %1529 = vmatmul.mubr.f32.gmra.mxu0 %v768
    %v1530 = vpop.f32.mrf.mxu0
    %v1531 = vadd.f32 %v1146, %v1530
    %v1532 = vpop.f32.mrf.mxu0
    %1533 = vmatprep.mubr.f32.mxu0 %v773
    %1534 = vmatmul.mubr.f32.gmra.mxu0 %v772
    %v1535 = vpop.f32.mrf.mxu0
    %v1536 = vadd.f32 %v1151, %v1535
    %v1537 = vpop.f32.mrf.mxu0
    %1538 = vmatprep.mubr.f32.mxu0 %v777
    %1539 = vmatmul.mubr.f32.gmra.mxu0 %v776
    %v1540 = vpop.f32.mrf.mxu0
    %v1541 = vadd.f32 %v1156, %v1540
    %v1542 = vpop.f32.mrf.mxu0
    %1543 = vmatprep.mubr.f32.mxu0 %v781
    %1544 = vmatmul.mubr.f32.gmra.mxu0 %v780
    %v1545 = vpop.f32.mrf.mxu0
    %v1546 = vadd.f32 %v1161, %v1545
    %v1547 = vpop.f32.mrf.mxu0
    %1548 = vmatprep.mubr.f32.mxu0 %v785
    %1549 = vmatmul.mubr.f32.gmra.mxu0 %v784
    %v1550 = vpop.f32.mrf.mxu0
    %v1551 = vadd.f32 %v1166, %v1550
    %v1552 = vpop.f32.mrf.mxu0
    %1553 = vmatprep.mubr.f32.mxu0 %v789
    %1554 = vmatmul.mubr.f32.gmra.mxu0 %v788
    %v1555 = vpop.f32.mrf.mxu0
    %v1556 = vadd.f32 %v1171, %v1555
    %v1557 = vpop.f32.mrf.mxu0
    %1558 = vmatprep.mubr.f32.mxu0 %v793
    %1559 = vmatmul.mubr.f32.gmra.mxu0 %v792
    %v1560 = vpop.f32.mrf.mxu0
    %v1561 = vadd.f32 %v1176, %v1560
    %v1562 = vpop.f32.mrf.mxu0
    %1563 = vdwg.mxu0
    %v1564 = vmax.f32 %v1246, 0.0
    %v1565 = vmax.f32 %v1251, 0.0
    %v1566 = vmax.f32 %v1256, 0.0
    %v1567 = vmax.f32 %v1261, 0.0
    %v1568 = vmax.f32 %v1266, 0.0
    %v1569 = vmax.f32 %v1271, 0.0
    %v1570 = vmax.f32 %v1276, 0.0
    %v1571 = vmax.f32 %v1281, 0.0
    %v1572 = vmax.f32 %v1286, 0.0
    %v1573 = vmax.f32 %v1291, 0.0
    %v1574 = vmax.f32 %v1296, 0.0
    %v1575 = vmax.f32 %v1301, 0.0
    %v1576 = vmax.f32 %v1306, 0.0
    %v1577 = vmax.f32 %v1311, 0.0
    %v1578 = vmax.f32 %v1316, 0.0
    %v1579 = vmax.f32 %v1321, 0.0
    %v1580 = vmax.f32 %v1326, 0.0
    %v1581 = vmax.f32 %v1331, 0.0
    %v1582 = vmax.f32 %v1336, 0.0
    %v1583 = vmax.f32 %v1341, 0.0
    %v1584 = vmax.f32 %v1346, 0.0
    %v1585 = vmax.f32 %v1351, 0.0
    %v1586 = vmax.f32 %v1356, 0.0
    %v1587 = vmax.f32 %v1361, 0.0
    %v1588 = vmax.f32 %v1366, 0.0
    %v1589 = vmax.f32 %v1371, 0.0
    %v1590 = vmax.f32 %v1376, 0.0
    %v1591 = vmax.f32 %v1381, 0.0
    %v1592 = vmax.f32 %v1386, 0.0
    %v1593 = vmax.f32 %v1391, 0.0
    %v1594 = vmax.f32 %v1396, 0.0
    %v1595 = vmax.f32 %v1401, 0.0
    %v1596 = vmax.f32 %v1406, 0.0
    %v1597 = vmax.f32 %v1411, 0.0
    %v1598 = vmax.f32 %v1416, 0.0
    %v1599 = vmax.f32 %v1421, 0.0
    %v1600 = vmax.f32 %v1426, 0.0
    %v1601 = vmax.f32 %v1431, 0.0
    %v1602 = vmax.f32 %v1436, 0.0
    %v1603 = vmax.f32 %v1441, 0.0
    %v1604 = vmax.f32 %v1446, 0.0
    %v1605 = vmax.f32 %v1451, 0.0
    %v1606 = vmax.f32 %v1456, 0.0
    %v1607 = vmax.f32 %v1461, 0.0
    %v1608 = vmax.f32 %v1466, 0.0
    %v1609 = vmax.f32 %v1471, 0.0
    %v1610 = vmax.f32 %v1476, 0.0
    %v1611 = vmax.f32 %v1481, 0.0
    %v1612 = vmax.f32 %v1486, 0.0
    %v1613 = vmax.f32 %v1491, 0.0
    %v1614 = vmax.f32 %v1496, 0.0
    %v1615 = vmax.f32 %v1501, 0.0
    %v1616 = vmax.f32 %v1506, 0.0
    %v1617 = vmax.f32 %v1511, 0.0
    %v1618 = vmax.f32 %v1516, 0.0
    %v1619 = vmax.f32 %v1521, 0.0
    %v1620 = vmax.f32 %v1526, 0.0
    %v1621 = vmax.f32 %v1531, 0.0
    %v1622 = vmax.f32 %v1536, 0.0
    %v1623 = vmax.f32 %v1541, 0.0
    %v1624 = vmax.f32 %v1546, 0.0
    %v1625 = vmax.f32 %v1551, 0.0
    %v1626 = vmax.f32 %v1556, 0.0
    %v1627 = vmax.f32 %v1561, 0.0
    %v1628 = vld [vmem:[#allocation8] sm:$0xff]
    %v1629 = vld [vmem:[#allocation8 + $0x8] sm:$0xff]
    %v1630 = vld [vmem:[#allocation8 + $0x10] sm:$0xff]
    %v1631 = vld [vmem:[#allocation8 + $0x18] sm:$0xff]
    %v1632 = vld [vmem:[#allocation8 + $0x20] sm:$0xff]
    %v1633 = vld [vmem:[#allocation8 + $0x28] sm:$0xff]
    %v1634 = vld [vmem:[#allocation8 + $0x30] sm:$0xff]
    %v1635 = vld [vmem:[#allocation8 + $0x38] sm:$0xff]
    %v1636 = vld [vmem:[#allocation8 + $0x40] sm:$0xff]
    %v1637 = vld [vmem:[#allocation8 + $0x48] sm:$0xff]
    %v1638 = vld [vmem:[#allocation8 + $0x50] sm:$0xff]
    %v1639 = vld [vmem:[#allocation8 + $0x58] sm:$0xff]
    %v1640 = vld [vmem:[#allocation8 + $0x60] sm:$0xff]
    %v1641 = vld [vmem:[#allocation8 + $0x68] sm:$0xff]
    %v1642 = vld [vmem:[#allocation8 + $0x70] sm:$0xff]
    %v1643 = vld [vmem:[#allocation8 + $0x78] sm:$0xff]
    %1644 = vmatprep.subr.mxu0 0.0
    %1645 = vmatpush1.msra.mxu0 %v1643
    %1646 = vmatprep.subr.mxu0 0.0
    %1647 = vmatpush1.msra.mxu0 %v1642
    %1648 = vmatprep.subr.mxu0 0.0
    %1649 = vmatpush1.msra.mxu0 %v1641
    %1650 = vmatprep.subr.mxu0 0.0
    %1651 = vmatpush1.msra.mxu0 %v1640
    %1652 = vmatprep.subr.mxu0 0.0
    %1653 = vmatpush1.msra.mxu0 %v1639
    %1654 = vmatprep.subr.mxu0 0.0
    %1655 = vmatpush1.msra.mxu0 %v1638
    %1656 = vmatprep.subr.mxu0 0.0
    %1657 = vmatpush1.msra.mxu0 %v1637
    %1658 = vmatprep.subr.mxu0 0.0
    %1659 = vmatpush1.msra.mxu0 %v1636
    %1660 = vmatprep.subr.mxu0 0.0
    %1661 = vmatpush1.msra.mxu0 %v1635
    %1662 = vmatprep.subr.mxu0 0.0
    %1663 = vmatpush1.msra.mxu0 %v1634
    %1664 = vmatprep.subr.mxu0 0.0
    %1665 = vmatpush1.msra.mxu0 %v1633
    %1666 = vmatprep.subr.mxu0 0.0
    %1667 = vmatpush1.msra.mxu0 %v1632
    %1668 = vmatprep.subr.mxu0 0.0
    %1669 = vmatpush1.msra.mxu0 %v1631
    %1670 = vmatprep.subr.mxu0 0.0
    %1671 = vmatpush1.msra.mxu0 %v1630
    %1672 = vmatprep.subr.mxu0 0.0
    %1673 = vmatpush1.msra.mxu0 %v1629
    %1674 = vmatprep.subr.mxu0 0.0
    %1675 = vmatpush1.msra.mxu0 %v1628
    %1676 = vmatprep.subr.mxu0 0.0
    %1677 = vmatpush2.msra.mxu0 0.0
    %1678 = vmatprep.subr.mxu0 0.0
    %1679 = vmatpush2.msra.mxu0 0.0
    %1680 = vmatprep.subr.mxu0 0.0
    %1681 = vmatpush2.msra.mxu0 0.0
    %1682 = vmatprep.subr.mxu0 0.0
    %1683 = vmatpush2.msra.mxu0 0.0
    %1684 = vmatprep.subr.mxu0 0.0
    %1685 = vmatpush2.msra.mxu0 0.0
    %1686 = vmatprep.subr.mxu0 0.0
    %1687 = vmatpush2.msra.mxu0 0.0
    %1688 = vmatprep.subr.mxu0 0.0
    %1689 = vmatpush2.msra.mxu0 0.0
    %1690 = vmatprep.subr.mxu0 0.0
    %1691 = vmatpush2.msra.mxu0 0.0
    %1692 = vmatprep.subr.mxu0 0.0
    %1693 = vmatpush2.msra.mxu0 0.0
    %1694 = vmatprep.subr.mxu0 0.0
    %1695 = vmatpush2.msra.mxu0 0.0
    %1696 = vmatprep.subr.mxu0 0.0
    %1697 = vmatpush2.msra.mxu0 0.0
    %1698 = vmatprep.subr.mxu0 0.0
    %1699 = vmatpush2.msra.mxu0 0.0
    %1700 = vmatprep.subr.mxu0 0.0
    %1701 = vmatpush2.msra.mxu0 0.0
    %1702 = vmatprep.subr.mxu0 0.0
    %1703 = vmatpush2.msra.mxu0 0.0
    %1704 = vmatprep.subr.mxu0 0.0
    %1705 = vmatpush2.msra.mxu0 0.0
    %1706 = vmatprep.subr.mxu0 0.0
    %1707 = vmatpush2.msra.mxu0 0.0
    %1708 = vmatprep.mubr.f32.mxu0 0.0
    %1709 = vmatmul.mubr.f32.gmra.mxu0 %v1564
    %v1710 = vpop.f32.mrf.mxu0
    %v1711 = vadd.f32 0.0, %v1710
    %v1712 = vpop.f32.mrf.mxu0
    %1713 = vmatprep.mubr.f32.mxu0 0.0
    %1714 = vmatmul.mubr.f32.gmra.mxu0 %v1565
    %v1715 = vpop.f32.mrf.mxu0
    %v1716 = vadd.f32 0.0, %v1715
    %v1717 = vpop.f32.mrf.mxu0
    %1718 = vmatprep.mubr.f32.mxu0 0.0
    %1719 = vmatmul.mubr.f32.gmra.mxu0 %v1566
    %v1720 = vpop.f32.mrf.mxu0
    %v1721 = vadd.f32 0.0, %v1720
    %v1722 = vpop.f32.mrf.mxu0
    %1723 = vmatprep.mubr.f32.mxu0 0.0
    %1724 = vmatmul.mubr.f32.gmra.mxu0 %v1567
    %v1725 = vpop.f32.mrf.mxu0
    %v1726 = vadd.f32 0.0, %v1725
    %v1727 = vpop.f32.mrf.mxu0
    %1728 = vmatprep.mubr.f32.mxu0 0.0
    %1729 = vmatmul.mubr.f32.gmra.mxu0 %v1568
    %v1730 = vpop.f32.mrf.mxu0
    %v1731 = vadd.f32 0.0, %v1730
    %v1732 = vpop.f32.mrf.mxu0
    %1733 = vmatprep.mubr.f32.mxu0 0.0
    %1734 = vmatmul.mubr.f32.gmra.mxu0 %v1569
    %v1735 = vpop.f32.mrf.mxu0
    %v1736 = vadd.f32 0.0, %v1735
    %v1737 = vpop.f32.mrf.mxu0
    %1738 = vmatprep.mubr.f32.mxu0 0.0
    %1739 = vmatmul.mubr.f32.gmra.mxu0 %v1570
    %v1740 = vpop.f32.mrf.mxu0
    %v1741 = vadd.f32 0.0, %v1740
    %v1742 = vpop.f32.mrf.mxu0
    %1743 = vmatprep.mubr.f32.mxu0 0.0
    %1744 = vmatmul.mubr.f32.gmra.mxu0 %v1571
    %v1745 = vpop.f32.mrf.mxu0
    %v1746 = vadd.f32 0.0, %v1745
    %v1747 = vpop.f32.mrf.mxu0
    %1748 = vmatprep.mubr.f32.mxu0 0.0
    %1749 = vmatmul.mubr.f32.gmra.mxu0 %v1572
    %v1750 = vpop.f32.mrf.mxu0
    %v1751 = vadd.f32 0.0, %v1750
    %v1752 = vpop.f32.mrf.mxu0
    %1753 = vmatprep.mubr.f32.mxu0 0.0
    %1754 = vmatmul.mubr.f32.gmra.mxu0 %v1573
    %v1755 = vpop.f32.mrf.mxu0
    %v1756 = vadd.f32 0.0, %v1755
    %v1757 = vpop.f32.mrf.mxu0
    %1758 = vmatprep.mubr.f32.mxu0 0.0
    %1759 = vmatmul.mubr.f32.gmra.mxu0 %v1574
    %v1760 = vpop.f32.mrf.mxu0
    %v1761 = vadd.f32 0.0, %v1760
    %v1762 = vpop.f32.mrf.mxu0
    %1763 = vmatprep.mubr.f32.mxu0 0.0
    %1764 = vmatmul.mubr.f32.gmra.mxu0 %v1575
    %v1765 = vpop.f32.mrf.mxu0
    %v1766 = vadd.f32 0.0, %v1765
    %v1767 = vpop.f32.mrf.mxu0
    %1768 = vmatprep.mubr.f32.mxu0 0.0
    %1769 = vmatmul.mubr.f32.gmra.mxu0 %v1576
    %v1770 = vpop.f32.mrf.mxu0
    %v1771 = vadd.f32 0.0, %v1770
    %v1772 = vpop.f32.mrf.mxu0
    %1773 = vmatprep.mubr.f32.mxu0 0.0
    %1774 = vmatmul.mubr.f32.gmra.mxu0 %v1577
    %v1775 = vpop.f32.mrf.mxu0
    %v1776 = vadd.f32 0.0, %v1775
    %v1777 = vpop.f32.mrf.mxu0
    %1778 = vmatprep.mubr.f32.mxu0 0.0
    %1779 = vmatmul.mubr.f32.gmra.mxu0 %v1578
    %v1780 = vpop.f32.mrf.mxu0
    %v1781 = vadd.f32 0.0, %v1780
    %v1782 = vpop.f32.mrf.mxu0
    %1783 = vmatprep.mubr.f32.mxu0 0.0
    %1784 = vmatmul.mubr.f32.gmra.mxu0 %v1579
    %v1785 = vpop.f32.mrf.mxu0
    %v1786 = vadd.f32 0.0, %v1785
    %v1787 = vpop.f32.mrf.mxu0
    %1788 = vmatprep.mubr.f32.mxu0 0.0
    %1789 = vmatmul.mubr.f32.gmra.mxu0 %v1580
    %v1790 = vpop.f32.mrf.mxu0
    %v1791 = vadd.f32 0.0, %v1790
    %v1792 = vpop.f32.mrf.mxu0
    %1793 = vmatprep.mubr.f32.mxu0 0.0
    %1794 = vmatmul.mubr.f32.gmra.mxu0 %v1581
    %v1795 = vpop.f32.mrf.mxu0
    %v1796 = vadd.f32 0.0, %v1795
    %v1797 = vpop.f32.mrf.mxu0
    %1798 = vmatprep.mubr.f32.mxu0 0.0
    %1799 = vmatmul.mubr.f32.gmra.mxu0 %v1582
    %v1800 = vpop.f32.mrf.mxu0
    %v1801 = vadd.f32 0.0, %v1800
    %v1802 = vpop.f32.mrf.mxu0
    %1803 = vmatprep.mubr.f32.mxu0 0.0
    %1804 = vmatmul.mubr.f32.gmra.mxu0 %v1583
    %v1805 = vpop.f32.mrf.mxu0
    %v1806 = vadd.f32 0.0, %v1805
    %v1807 = vpop.f32.mrf.mxu0
    %1808 = vmatprep.mubr.f32.mxu0 0.0
    %1809 = vmatmul.mubr.f32.gmra.mxu0 %v1584
    %v1810 = vpop.f32.mrf.mxu0
    %v1811 = vadd.f32 0.0, %v1810
    %v1812 = vpop.f32.mrf.mxu0
    %1813 = vmatprep.mubr.f32.mxu0 0.0
    %1814 = vmatmul.mubr.f32.gmra.mxu0 %v1585
    %v1815 = vpop.f32.mrf.mxu0
    %v1816 = vadd.f32 0.0, %v1815
    %v1817 = vpop.f32.mrf.mxu0
    %1818 = vmatprep.mubr.f32.mxu0 0.0
    %1819 = vmatmul.mubr.f32.gmra.mxu0 %v1586
    %v1820 = vpop.f32.mrf.mxu0
    %v1821 = vadd.f32 0.0, %v1820
    %v1822 = vpop.f32.mrf.mxu0
    %1823 = vmatprep.mubr.f32.mxu0 0.0
    %1824 = vmatmul.mubr.f32.gmra.mxu0 %v1587
    %v1825 = vpop.f32.mrf.mxu0
    %v1826 = vadd.f32 0.0, %v1825
    %v1827 = vpop.f32.mrf.mxu0
    %1828 = vmatprep.mubr.f32.mxu0 0.0
    %1829 = vmatmul.mubr.f32.gmra.mxu0 %v1588
    %v1830 = vpop.f32.mrf.mxu0
    %v1831 = vadd.f32 0.0, %v1830
    %v1832 = vpop.f32.mrf.mxu0
    %1833 = vmatprep.mubr.f32.mxu0 0.0
    %1834 = vmatmul.mubr.f32.gmra.mxu0 %v1589
    %v1835 = vpop.f32.mrf.mxu0
    %v1836 = vadd.f32 0.0, %v1835
    %v1837 = vpop.f32.mrf.mxu0
    %1838 = vmatprep.mubr.f32.mxu0 0.0
    %1839 = vmatmul.mubr.f32.gmra.mxu0 %v1590
    %v1840 = vpop.f32.mrf.mxu0
    %v1841 = vadd.f32 0.0, %v1840
    %v1842 = vpop.f32.mrf.mxu0
    %1843 = vmatprep.mubr.f32.mxu0 0.0
    %1844 = vmatmul.mubr.f32.gmra.mxu0 %v1591
    %v1845 = vpop.f32.mrf.mxu0
    %v1846 = vadd.f32 0.0, %v1845
    %v1847 = vpop.f32.mrf.mxu0
    %1848 = vmatprep.mubr.f32.mxu0 0.0
    %1849 = vmatmul.mubr.f32.gmra.mxu0 %v1592
    %v1850 = vpop.f32.mrf.mxu0
    %v1851 = vadd.f32 0.0, %v1850
    %v1852 = vpop.f32.mrf.mxu0
    %1853 = vmatprep.mubr.f32.mxu0 0.0
    %1854 = vmatmul.mubr.f32.gmra.mxu0 %v1593
    %v1855 = vpop.f32.mrf.mxu0
    %v1856 = vadd.f32 0.0, %v1855
    %v1857 = vpop.f32.mrf.mxu0
    %1858 = vmatprep.mubr.f32.mxu0 0.0
    %1859 = vmatmul.mubr.f32.gmra.mxu0 %v1594
    %v1860 = vpop.f32.mrf.mxu0
    %v1861 = vadd.f32 0.0, %v1860
    %v1862 = vpop.f32.mrf.mxu0
    %1863 = vmatprep.mubr.f32.mxu0 0.0
    %1864 = vmatmul.mubr.f32.gmra.mxu0 %v1595
    %v1865 = vpop.f32.mrf.mxu0
    %v1866 = vadd.f32 0.0, %v1865
    %v1867 = vpop.f32.mrf.mxu0
    %1868 = vmatprep.mubr.f32.mxu0 0.0
    %1869 = vmatmul.mubr.f32.gmra.mxu0 %v1596
    %v1870 = vpop.f32.mrf.mxu0
    %v1871 = vadd.f32 0.0, %v1870
    %v1872 = vpop.f32.mrf.mxu0
    %1873 = vmatprep.mubr.f32.mxu0 0.0
    %1874 = vmatmul.mubr.f32.gmra.mxu0 %v1597
    %v1875 = vpop.f32.mrf.mxu0
    %v1876 = vadd.f32 0.0, %v1875
    %v1877 = vpop.f32.mrf.mxu0
    %1878 = vmatprep.mubr.f32.mxu0 0.0
    %1879 = vmatmul.mubr.f32.gmra.mxu0 %v1598
    %v1880 = vpop.f32.mrf.mxu0
    %v1881 = vadd.f32 0.0, %v1880
    %v1882 = vpop.f32.mrf.mxu0
    %1883 = vmatprep.mubr.f32.mxu0 0.0
    %1884 = vmatmul.mubr.f32.gmra.mxu0 %v1599
    %v1885 = vpop.f32.mrf.mxu0
    %v1886 = vadd.f32 0.0, %v1885
    %v1887 = vpop.f32.mrf.mxu0
    %1888 = vmatprep.mubr.f32.mxu0 0.0
    %1889 = vmatmul.mubr.f32.gmra.mxu0 %v1600
    %v1890 = vpop.f32.mrf.mxu0
    %v1891 = vadd.f32 0.0, %v1890
    %v1892 = vpop.f32.mrf.mxu0
    %1893 = vmatprep.mubr.f32.mxu0 0.0
    %1894 = vmatmul.mubr.f32.gmra.mxu0 %v1601
    %v1895 = vpop.f32.mrf.mxu0
    %v1896 = vadd.f32 0.0, %v1895
    %v1897 = vpop.f32.mrf.mxu0
    %1898 = vmatprep.mubr.f32.mxu0 0.0
    %1899 = vmatmul.mubr.f32.gmra.mxu0 %v1602
    %v1900 = vpop.f32.mrf.mxu0
    %v1901 = vadd.f32 0.0, %v1900
    %v1902 = vpop.f32.mrf.mxu0
    %1903 = vmatprep.mubr.f32.mxu0 0.0
    %1904 = vmatmul.mubr.f32.gmra.mxu0 %v1603
    %v1905 = vpop.f32.mrf.mxu0
    %v1906 = vadd.f32 0.0, %v1905
    %v1907 = vpop.f32.mrf.mxu0
    %1908 = vmatprep.mubr.f32.mxu0 0.0
    %1909 = vmatmul.mubr.f32.gmra.mxu0 %v1604
    %v1910 = vpop.f32.mrf.mxu0
    %v1911 = vadd.f32 0.0, %v1910
    %v1912 = vpop.f32.mrf.mxu0
    %1913 = vmatprep.mubr.f32.mxu0 0.0
    %1914 = vmatmul.mubr.f32.gmra.mxu0 %v1605
    %v1915 = vpop.f32.mrf.mxu0
    %v1916 = vadd.f32 0.0, %v1915
    %v1917 = vpop.f32.mrf.mxu0
    %1918 = vmatprep.mubr.f32.mxu0 0.0
    %1919 = vmatmul.mubr.f32.gmra.mxu0 %v1606
    %v1920 = vpop.f32.mrf.mxu0
    %v1921 = vadd.f32 0.0, %v1920
    %v1922 = vpop.f32.mrf.mxu0
    %1923 = vmatprep.mubr.f32.mxu0 0.0
    %1924 = vmatmul.mubr.f32.gmra.mxu0 %v1607
    %v1925 = vpop.f32.mrf.mxu0
    %v1926 = vadd.f32 0.0, %v1925
    %v1927 = vpop.f32.mrf.mxu0
    %1928 = vmatprep.mubr.f32.mxu0 0.0
    %1929 = vmatmul.mubr.f32.gmra.mxu0 %v1608
    %v1930 = vpop.f32.mrf.mxu0
    %v1931 = vadd.f32 0.0, %v1930
    %v1932 = vpop.f32.mrf.mxu0
    %1933 = vmatprep.mubr.f32.mxu0 0.0
    %1934 = vmatmul.mubr.f32.gmra.mxu0 %v1609
    %v1935 = vpop.f32.mrf.mxu0
    %v1936 = vadd.f32 0.0, %v1935
    %v1937 = vpop.f32.mrf.mxu0
    %1938 = vmatprep.mubr.f32.mxu0 0.0
    %1939 = vmatmul.mubr.f32.gmra.mxu0 %v1610
    %v1940 = vpop.f32.mrf.mxu0
    %v1941 = vadd.f32 0.0, %v1940
    %v1942 = vpop.f32.mrf.mxu0
    %1943 = vmatprep.mubr.f32.mxu0 0.0
    %1944 = vmatmul.mubr.f32.gmra.mxu0 %v1611
    %v1945 = vpop.f32.mrf.mxu0
    %v1946 = vadd.f32 0.0, %v1945
    %v1947 = vpop.f32.mrf.mxu0
    %1948 = vmatprep.mubr.f32.mxu0 0.0
    %1949 = vmatmul.mubr.f32.gmra.mxu0 %v1612
    %v1950 = vpop.f32.mrf.mxu0
    %v1951 = vadd.f32 0.0, %v1950
    %v1952 = vpop.f32.mrf.mxu0
    %1953 = vmatprep.mubr.f32.mxu0 0.0
    %1954 = vmatmul.mubr.f32.gmra.mxu0 %v1613
    %v1955 = vpop.f32.mrf.mxu0
    %v1956 = vadd.f32 0.0, %v1955
    %v1957 = vpop.f32.mrf.mxu0
    %1958 = vmatprep.mubr.f32.mxu0 0.0
    %1959 = vmatmul.mubr.f32.gmra.mxu0 %v1614
    %v1960 = vpop.f32.mrf.mxu0
    %v1961 = vadd.f32 0.0, %v1960
    %v1962 = vpop.f32.mrf.mxu0
    %1963 = vmatprep.mubr.f32.mxu0 0.0
    %1964 = vmatmul.mubr.f32.gmra.mxu0 %v1615
    %v1965 = vpop.f32.mrf.mxu0
    %v1966 = vadd.f32 0.0, %v1965
    %v1967 = vpop.f32.mrf.mxu0
    %1968 = vmatprep.mubr.f32.mxu0 0.0
    %1969 = vmatmul.mubr.f32.gmra.mxu0 %v1616
    %v1970 = vpop.f32.mrf.mxu0
    %v1971 = vadd.f32 0.0, %v1970
    %v1972 = vpop.f32.mrf.mxu0
    %1973 = vmatprep.mubr.f32.mxu0 0.0
    %1974 = vmatmul.mubr.f32.gmra.mxu0 %v1617
    %v1975 = vpop.f32.mrf.mxu0
    %v1976 = vadd.f32 0.0, %v1975
    %v1977 = vpop.f32.mrf.mxu0
    %1978 = vmatprep.mubr.f32.mxu0 0.0
    %1979 = vmatmul.mubr.f32.gmra.mxu0 %v1618
    %v1980 = vpop.f32.mrf.mxu0
    %v1981 = vadd.f32 0.0, %v1980
    %v1982 = vpop.f32.mrf.mxu0
    %1983 = vmatprep.mubr.f32.mxu0 0.0
    %1984 = vmatmul.mubr.f32.gmra.mxu0 %v1619
    %v1985 = vpop.f32.mrf.mxu0
    %v1986 = vadd.f32 0.0, %v1985
    %v1987 = vpop.f32.mrf.mxu0
    %1988 = vmatprep.mubr.f32.mxu0 0.0
    %1989 = vmatmul.mubr.f32.gmra.mxu0 %v1620
    %v1990 = vpop.f32.mrf.mxu0
    %v1991 = vadd.f32 0.0, %v1990
    %v1992 = vpop.f32.mrf.mxu0
    %1993 = vmatprep.mubr.f32.mxu0 0.0
    %1994 = vmatmul.mubr.f32.gmra.mxu0 %v1621
    %v1995 = vpop.f32.mrf.mxu0
    %v1996 = vadd.f32 0.0, %v1995
    %v1997 = vpop.f32.mrf.mxu0
    %1998 = vmatprep.mubr.f32.mxu0 0.0
    %1999 = vmatmul.mubr.f32.gmra.mxu0 %v1622
    %v2000 = vpop.f32.mrf.mxu0
    %v2001 = vadd.f32 0.0, %v2000
    %v2002 = vpop.f32.mrf.mxu0
    %2003 = vmatprep.mubr.f32.mxu0 0.0
    %2004 = vmatmul.mubr.f32.gmra.mxu0 %v1623
    %v2005 = vpop.f32.mrf.mxu0
    %v2006 = vadd.f32 0.0, %v2005
    %v2007 = vpop.f32.mrf.mxu0
    %2008 = vmatprep.mubr.f32.mxu0 0.0
    %2009 = vmatmul.mubr.f32.gmra.mxu0 %v1624
    %v2010 = vpop.f32.mrf.mxu0
    %v2011 = vadd.f32 0.0, %v2010
    %v2012 = vpop.f32.mrf.mxu0
    %2013 = vmatprep.mubr.f32.mxu0 0.0
    %2014 = vmatmul.mubr.f32.gmra.mxu0 %v1625
    %v2015 = vpop.f32.mrf.mxu0
    %v2016 = vadd.f32 0.0, %v2015
    %v2017 = vpop.f32.mrf.mxu0
    %2018 = vmatprep.mubr.f32.mxu0 0.0
    %2019 = vmatmul.mubr.f32.gmra.mxu0 %v1626
    %v2020 = vpop.f32.mrf.mxu0
    %v2021 = vadd.f32 0.0, %v2020
    %v2022 = vpop.f32.mrf.mxu0
    %2023 = vmatprep.mubr.f32.mxu0 0.0
    %2024 = vmatmul.mubr.f32.gmra.mxu0 %v1627
    %v2025 = vpop.f32.mrf.mxu0
    %v2026 = vadd.f32 0.0, %v2025
    %v2027 = vpop.f32.mrf.mxu0
    %2028 = vdwg.mxu0
    %2029 = vmatprep.subr.mxu0 0.0
    %2030 = vmatpush1.msra.mxu0 %v1786
    %2031 = vmatprep.subr.mxu0 0.0
    %2032 = vmatpush1.msra.mxu0 %v1781
    %2033 = vmatprep.subr.mxu0 0.0
    %2034 = vmatpush1.msra.mxu0 %v1776
    %2035 = vmatprep.subr.mxu0 0.0
    %2036 = vmatpush1.msra.mxu0 %v1771
    %2037 = vmatprep.subr.mxu0 0.0
    %2038 = vmatpush1.msra.mxu0 %v1766
    %2039 = vmatprep.subr.mxu0 0.0
    %2040 = vmatpush1.msra.mxu0 %v1761
    %2041 = vmatprep.subr.mxu0 0.0
    %2042 = vmatpush1.msra.mxu0 %v1756
    %2043 = vmatprep.subr.mxu0 0.0
    %2044 = vmatpush1.msra.mxu0 %v1751
    %2045 = vmatprep.subr.mxu0 0.0
    %2046 = vmatpush1.msra.mxu0 %v1746
    %2047 = vmatprep.subr.mxu0 0.0
    %2048 = vmatpush1.msra.mxu0 %v1741
    %2049 = vmatprep.subr.mxu0 0.0
    %2050 = vmatpush1.msra.mxu0 %v1736
    %2051 = vmatprep.subr.mxu0 0.0
    %2052 = vmatpush1.msra.mxu0 %v1731
    %2053 = vmatprep.subr.mxu0 0.0
    %2054 = vmatpush1.msra.mxu0 %v1726
    %2055 = vmatprep.subr.mxu0 0.0
    %2056 = vmatpush1.msra.mxu0 %v1721
    %2057 = vmatprep.subr.mxu0 0.0
    %2058 = vmatpush1.msra.mxu0 %v1716
    %2059 = vmatprep.subr.mxu0 0.0
    %2060 = vmatpush1.msra.mxu0 %v1711
    %2061 = vmatprep.subr.mxu0 0.0
    %2062 = vmatpush2.msra.mxu0 %v1866
    %2063 = vmatprep.subr.mxu0 0.0
    %2064 = vmatpush2.msra.mxu0 %v1861
    %2065 = vmatprep.subr.mxu0 0.0
    %2066 = vmatpush2.msra.mxu0 %v1856
    %2067 = vmatprep.subr.mxu0 0.0
    %2068 = vmatpush2.msra.mxu0 %v1851
    %2069 = vmatprep.subr.mxu0 0.0
    %2070 = vmatpush2.msra.mxu0 %v1846
    %2071 = vmatprep.subr.mxu0 0.0
    %2072 = vmatpush2.msra.mxu0 %v1841
    %2073 = vmatprep.subr.mxu0 0.0
    %2074 = vmatpush2.msra.mxu0 %v1836
    %2075 = vmatprep.subr.mxu0 0.0
    %2076 = vmatpush2.msra.mxu0 %v1831
    %2077 = vmatprep.subr.mxu0 0.0
    %2078 = vmatpush2.msra.mxu0 %v1826
    %2079 = vmatprep.subr.mxu0 0.0
    %2080 = vmatpush2.msra.mxu0 %v1821
    %2081 = vmatprep.subr.mxu0 0.0
    %2082 = vmatpush2.msra.mxu0 %v1816
    %2083 = vmatprep.subr.mxu0 0.0
    %2084 = vmatpush2.msra.mxu0 %v1811
    %2085 = vmatprep.subr.mxu0 0.0
    %2086 = vmatpush2.msra.mxu0 %v1806
    %2087 = vmatprep.subr.mxu0 0.0
    %2088 = vmatpush2.msra.mxu0 %v1801
    %2089 = vmatprep.subr.mxu0 0.0
    %2090 = vmatpush2.msra.mxu0 %v1796
    %2091 = vmatprep.subr.mxu0 0.0
    %2092 = vmatpush2.msra.mxu0 %v1791
    %2093 = vmatprep.mubr.f32.mxu0 %v539
    %2094 = vmatmul.mubr.f32.gmra.mxu0 %v538
    %v2095 = vpop.f32.mrf.mxu0
    %v2096 = vadd.f32 0.0, %v2095
    %v2097 = vpop.f32.mrf.mxu0
    %2098 = vmatprep.mubr.f32.mxu0 %v543
    %2099 = vmatmul.mubr.f32.gmra.mxu0 %v542
    %v2100 = vpop.f32.mrf.mxu0
    %v2101 = vadd.f32 0.0, %v2100
    %v2102 = vpop.f32.mrf.mxu0
    %2103 = vmatprep.mubr.f32.mxu0 %v547
    %2104 = vmatmul.mubr.f32.gmra.mxu0 %v546
    %v2105 = vpop.f32.mrf.mxu0
    %v2106 = vadd.f32 0.0, %v2105
    %v2107 = vpop.f32.mrf.mxu0
    %2108 = vmatprep.mubr.f32.mxu0 %v551
    %2109 = vmatmul.mubr.f32.gmra.mxu0 %v550
    %v2110 = vpop.f32.mrf.mxu0
    %v2111 = vadd.f32 0.0, %v2110
    %v2112 = vpop.f32.mrf.mxu0
    %2113 = vmatprep.mubr.f32.mxu0 %v555
    %2114 = vmatmul.mubr.f32.gmra.mxu0 %v554
    %v2115 = vpop.f32.mrf.mxu0
    %v2116 = vadd.f32 0.0, %v2115
    %v2117 = vpop.f32.mrf.mxu0
    %2118 = vmatprep.mubr.f32.mxu0 %v559
    %2119 = vmatmul.mubr.f32.gmra.mxu0 %v558
    %v2120 = vpop.f32.mrf.mxu0
    %v2121 = vadd.f32 0.0, %v2120
    %v2122 = vpop.f32.mrf.mxu0
    %2123 = vmatprep.mubr.f32.mxu0 %v563
    %2124 = vmatmul.mubr.f32.gmra.mxu0 %v562
    %v2125 = vpop.f32.mrf.mxu0
    %v2126 = vadd.f32 0.0, %v2125
    %v2127 = vpop.f32.mrf.mxu0
    %2128 = vmatprep.mubr.f32.mxu0 %v567
    %2129 = vmatmul.mubr.f32.gmra.mxu0 %v566
    %v2130 = vpop.f32.mrf.mxu0
    %v2131 = vadd.f32 0.0, %v2130
    %v2132 = vpop.f32.mrf.mxu0
    %2133 = vmatprep.mubr.f32.mxu0 %v571
    %2134 = vmatmul.mubr.f32.gmra.mxu0 %v570
    %v2135 = vpop.f32.mrf.mxu0
    %v2136 = vadd.f32 0.0, %v2135
    %v2137 = vpop.f32.mrf.mxu0
    %2138 = vmatprep.mubr.f32.mxu0 %v575
    %2139 = vmatmul.mubr.f32.gmra.mxu0 %v574
    %v2140 = vpop.f32.mrf.mxu0
    %v2141 = vadd.f32 0.0, %v2140
    %v2142 = vpop.f32.mrf.mxu0
    %2143 = vmatprep.mubr.f32.mxu0 %v579
    %2144 = vmatmul.mubr.f32.gmra.mxu0 %v578
    %v2145 = vpop.f32.mrf.mxu0
    %v2146 = vadd.f32 0.0, %v2145
    %v2147 = vpop.f32.mrf.mxu0
    %2148 = vmatprep.mubr.f32.mxu0 %v583
    %2149 = vmatmul.mubr.f32.gmra.mxu0 %v582
    %v2150 = vpop.f32.mrf.mxu0
    %v2151 = vadd.f32 0.0, %v2150
    %v2152 = vpop.f32.mrf.mxu0
    %2153 = vmatprep.mubr.f32.mxu0 %v587
    %2154 = vmatmul.mubr.f32.gmra.mxu0 %v586
    %v2155 = vpop.f32.mrf.mxu0
    %v2156 = vadd.f32 0.0, %v2155
    %v2157 = vpop.f32.mrf.mxu0
    %2158 = vmatprep.mubr.f32.mxu0 %v591
    %2159 = vmatmul.mubr.f32.gmra.mxu0 %v590
    %v2160 = vpop.f32.mrf.mxu0
    %v2161 = vadd.f32 0.0, %v2160
    %v2162 = vpop.f32.mrf.mxu0
    %2163 = vmatprep.mubr.f32.mxu0 %v595
    %2164 = vmatmul.mubr.f32.gmra.mxu0 %v594
    %v2165 = vpop.f32.mrf.mxu0
    %v2166 = vadd.f32 0.0, %v2165
    %v2167 = vpop.f32.mrf.mxu0
    %2168 = vmatprep.mubr.f32.mxu0 %v599
    %2169 = vmatmul.mubr.f32.gmra.mxu0 %v598
    %v2170 = vpop.f32.mrf.mxu0
    %v2171 = vadd.f32 0.0, %v2170
    %v2172 = vpop.f32.mrf.mxu0
    %2173 = vmatprep.mubr.f32.mxu0 %v603
    %2174 = vmatmul.mubr.f32.gmra.mxu0 %v602
    %v2175 = vpop.f32.mrf.mxu0
    %v2176 = vadd.f32 0.0, %v2175
    %v2177 = vpop.f32.mrf.mxu0
    %2178 = vmatprep.mubr.f32.mxu0 %v607
    %2179 = vmatmul.mubr.f32.gmra.mxu0 %v606
    %v2180 = vpop.f32.mrf.mxu0
    %v2181 = vadd.f32 0.0, %v2180
    %v2182 = vpop.f32.mrf.mxu0
    %2183 = vmatprep.mubr.f32.mxu0 %v611
    %2184 = vmatmul.mubr.f32.gmra.mxu0 %v610
    %v2185 = vpop.f32.mrf.mxu0
    %v2186 = vadd.f32 0.0, %v2185
    %v2187 = vpop.f32.mrf.mxu0
    %2188 = vmatprep.mubr.f32.mxu0 %v615
    %2189 = vmatmul.mubr.f32.gmra.mxu0 %v614
    %v2190 = vpop.f32.mrf.mxu0
    %v2191 = vadd.f32 0.0, %v2190
    %v2192 = vpop.f32.mrf.mxu0
    %2193 = vmatprep.mubr.f32.mxu0 %v619
    %2194 = vmatmul.mubr.f32.gmra.mxu0 %v618
    %v2195 = vpop.f32.mrf.mxu0
    %v2196 = vadd.f32 0.0, %v2195
    %v2197 = vpop.f32.mrf.mxu0
    %2198 = vmatprep.mubr.f32.mxu0 %v623
    %2199 = vmatmul.mubr.f32.gmra.mxu0 %v622
    %v2200 = vpop.f32.mrf.mxu0
    %v2201 = vadd.f32 0.0, %v2200
    %v2202 = vpop.f32.mrf.mxu0
    %2203 = vmatprep.mubr.f32.mxu0 %v627
    %2204 = vmatmul.mubr.f32.gmra.mxu0 %v626
    %v2205 = vpop.f32.mrf.mxu0
    %v2206 = vadd.f32 0.0, %v2205
    %v2207 = vpop.f32.mrf.mxu0
    %2208 = vmatprep.mubr.f32.mxu0 %v631
    %2209 = vmatmul.mubr.f32.gmra.mxu0 %v630
    %v2210 = vpop.f32.mrf.mxu0
    %v2211 = vadd.f32 0.0, %v2210
    %v2212 = vpop.f32.mrf.mxu0
    %2213 = vmatprep.mubr.f32.mxu0 %v635
    %2214 = vmatmul.mubr.f32.gmra.mxu0 %v634
    %v2215 = vpop.f32.mrf.mxu0
    %v2216 = vadd.f32 0.0, %v2215
    %v2217 = vpop.f32.mrf.mxu0
    %2218 = vmatprep.mubr.f32.mxu0 %v639
    %2219 = vmatmul.mubr.f32.gmra.mxu0 %v638
    %v2220 = vpop.f32.mrf.mxu0
    %v2221 = vadd.f32 0.0, %v2220
    %v2222 = vpop.f32.mrf.mxu0
    %2223 = vmatprep.mubr.f32.mxu0 %v643
    %2224 = vmatmul.mubr.f32.gmra.mxu0 %v642
    %v2225 = vpop.f32.mrf.mxu0
    %v2226 = vadd.f32 0.0, %v2225
    %v2227 = vpop.f32.mrf.mxu0
    %2228 = vmatprep.mubr.f32.mxu0 %v647
    %2229 = vmatmul.mubr.f32.gmra.mxu0 %v646
    %v2230 = vpop.f32.mrf.mxu0
    %v2231 = vadd.f32 0.0, %v2230
    %v2232 = vpop.f32.mrf.mxu0
    %2233 = vmatprep.mubr.f32.mxu0 %v651
    %2234 = vmatmul.mubr.f32.gmra.mxu0 %v650
    %v2235 = vpop.f32.mrf.mxu0
    %v2236 = vadd.f32 0.0, %v2235
    %v2237 = vpop.f32.mrf.mxu0
    %2238 = vmatprep.mubr.f32.mxu0 %v655
    %2239 = vmatmul.mubr.f32.gmra.mxu0 %v654
    %v2240 = vpop.f32.mrf.mxu0
    %v2241 = vadd.f32 0.0, %v2240
    %v2242 = vpop.f32.mrf.mxu0
    %2243 = vmatprep.mubr.f32.mxu0 %v659
    %2244 = vmatmul.mubr.f32.gmra.mxu0 %v658
    %v2245 = vpop.f32.mrf.mxu0
    %v2246 = vadd.f32 0.0, %v2245
    %v2247 = vpop.f32.mrf.mxu0
    %2248 = vmatprep.mubr.f32.mxu0 %v663
    %2249 = vmatmul.mubr.f32.gmra.mxu0 %v662
    %v2250 = vpop.f32.mrf.mxu0
    %v2251 = vadd.f32 0.0, %v2250
    %v2252 = vpop.f32.mrf.mxu0
    %2253 = vmatprep.mubr.f32.mxu0 %v667
    %2254 = vmatmul.mubr.f32.gmra.mxu0 %v666
    %v2255 = vpop.f32.mrf.mxu0
    %v2256 = vadd.f32 0.0, %v2255
    %v2257 = vpop.f32.mrf.mxu0
    %2258 = vmatprep.mubr.f32.mxu0 %v671
    %2259 = vmatmul.mubr.f32.gmra.mxu0 %v670
    %v2260 = vpop.f32.mrf.mxu0
    %v2261 = vadd.f32 0.0, %v2260
    %v2262 = vpop.f32.mrf.mxu0
    %2263 = vmatprep.mubr.f32.mxu0 %v675
    %2264 = vmatmul.mubr.f32.gmra.mxu0 %v674
    %v2265 = vpop.f32.mrf.mxu0
    %v2266 = vadd.f32 0.0, %v2265
    %v2267 = vpop.f32.mrf.mxu0
    %2268 = vmatprep.mubr.f32.mxu0 %v679
    %2269 = vmatmul.mubr.f32.gmra.mxu0 %v678
    %v2270 = vpop.f32.mrf.mxu0
    %v2271 = vadd.f32 0.0, %v2270
    %v2272 = vpop.f32.mrf.mxu0
    %2273 = vmatprep.mubr.f32.mxu0 %v683
    %2274 = vmatmul.mubr.f32.gmra.mxu0 %v682
    %v2275 = vpop.f32.mrf.mxu0
    %v2276 = vadd.f32 0.0, %v2275
    %v2277 = vpop.f32.mrf.mxu0
    %2278 = vmatprep.mubr.f32.mxu0 %v687
    %2279 = vmatmul.mubr.f32.gmra.mxu0 %v686
    %v2280 = vpop.f32.mrf.mxu0
    %v2281 = vadd.f32 0.0, %v2280
    %v2282 = vpop.f32.mrf.mxu0
    %2283 = vmatprep.mubr.f32.mxu0 %v691
    %2284 = vmatmul.mubr.f32.gmra.mxu0 %v690
    %v2285 = vpop.f32.mrf.mxu0
    %v2286 = vadd.f32 0.0, %v2285
    %v2287 = vpop.f32.mrf.mxu0
    %2288 = vmatprep.mubr.f32.mxu0 %v695
    %2289 = vmatmul.mubr.f32.gmra.mxu0 %v694
    %v2290 = vpop.f32.mrf.mxu0
    %v2291 = vadd.f32 0.0, %v2290
    %v2292 = vpop.f32.mrf.mxu0
    %2293 = vmatprep.mubr.f32.mxu0 %v699
    %2294 = vmatmul.mubr.f32.gmra.mxu0 %v698
    %v2295 = vpop.f32.mrf.mxu0
    %v2296 = vadd.f32 0.0, %v2295
    %v2297 = vpop.f32.mrf.mxu0
    %2298 = vmatprep.mubr.f32.mxu0 %v703
    %2299 = vmatmul.mubr.f32.gmra.mxu0 %v702
    %v2300 = vpop.f32.mrf.mxu0
    %v2301 = vadd.f32 0.0, %v2300
    %v2302 = vpop.f32.mrf.mxu0
    %2303 = vmatprep.mubr.f32.mxu0 %v707
    %2304 = vmatmul.mubr.f32.gmra.mxu0 %v706
    %v2305 = vpop.f32.mrf.mxu0
    %v2306 = vadd.f32 0.0, %v2305
    %v2307 = vpop.f32.mrf.mxu0
    %2308 = vmatprep.mubr.f32.mxu0 %v711
    %2309 = vmatmul.mubr.f32.gmra.mxu0 %v710
    %v2310 = vpop.f32.mrf.mxu0
    %v2311 = vadd.f32 0.0, %v2310
    %v2312 = vpop.f32.mrf.mxu0
    %2313 = vmatprep.mubr.f32.mxu0 %v715
    %2314 = vmatmul.mubr.f32.gmra.mxu0 %v714
    %v2315 = vpop.f32.mrf.mxu0
    %v2316 = vadd.f32 0.0, %v2315
    %v2317 = vpop.f32.mrf.mxu0
    %2318 = vmatprep.mubr.f32.mxu0 %v719
    %2319 = vmatmul.mubr.f32.gmra.mxu0 %v718
    %v2320 = vpop.f32.mrf.mxu0
    %v2321 = vadd.f32 0.0, %v2320
    %v2322 = vpop.f32.mrf.mxu0
    %2323 = vmatprep.mubr.f32.mxu0 %v723
    %2324 = vmatmul.mubr.f32.gmra.mxu0 %v722
    %v2325 = vpop.f32.mrf.mxu0
    %v2326 = vadd.f32 0.0, %v2325
    %v2327 = vpop.f32.mrf.mxu0
    %2328 = vmatprep.mubr.f32.mxu0 %v727
    %2329 = vmatmul.mubr.f32.gmra.mxu0 %v726
    %v2330 = vpop.f32.mrf.mxu0
    %v2331 = vadd.f32 0.0, %v2330
    %v2332 = vpop.f32.mrf.mxu0
    %2333 = vmatprep.mubr.f32.mxu0 %v731
    %2334 = vmatmul.mubr.f32.gmra.mxu0 %v730
    %v2335 = vpop.f32.mrf.mxu0
    %v2336 = vadd.f32 0.0, %v2335
    %v2337 = vpop.f32.mrf.mxu0
    %2338 = vmatprep.mubr.f32.mxu0 %v735
    %2339 = vmatmul.mubr.f32.gmra.mxu0 %v734
    %v2340 = vpop.f32.mrf.mxu0
    %v2341 = vadd.f32 0.0, %v2340
    %v2342 = vpop.f32.mrf.mxu0
    %2343 = vmatprep.mubr.f32.mxu0 %v739
    %2344 = vmatmul.mubr.f32.gmra.mxu0 %v738
    %v2345 = vpop.f32.mrf.mxu0
    %v2346 = vadd.f32 0.0, %v2345
    %v2347 = vpop.f32.mrf.mxu0
    %2348 = vmatprep.mubr.f32.mxu0 %v743
    %2349 = vmatmul.mubr.f32.gmra.mxu0 %v742
    %v2350 = vpop.f32.mrf.mxu0
    %v2351 = vadd.f32 0.0, %v2350
    %v2352 = vpop.f32.mrf.mxu0
    %2353 = vmatprep.mubr.f32.mxu0 %v747
    %2354 = vmatmul.mubr.f32.gmra.mxu0 %v746
    %v2355 = vpop.f32.mrf.mxu0
    %v2356 = vadd.f32 0.0, %v2355
    %v2357 = vpop.f32.mrf.mxu0
    %2358 = vmatprep.mubr.f32.mxu0 %v751
    %2359 = vmatmul.mubr.f32.gmra.mxu0 %v750
    %v2360 = vpop.f32.mrf.mxu0
    %v2361 = vadd.f32 0.0, %v2360
    %v2362 = vpop.f32.mrf.mxu0
    %2363 = vmatprep.mubr.f32.mxu0 %v755
    %2364 = vmatmul.mubr.f32.gmra.mxu0 %v754
    %v2365 = vpop.f32.mrf.mxu0
    %v2366 = vadd.f32 0.0, %v2365
    %v2367 = vpop.f32.mrf.mxu0
    %2368 = vmatprep.mubr.f32.mxu0 %v759
    %2369 = vmatmul.mubr.f32.gmra.mxu0 %v758
    %v2370 = vpop.f32.mrf.mxu0
    %v2371 = vadd.f32 0.0, %v2370
    %v2372 = vpop.f32.mrf.mxu0
    %2373 = vmatprep.mubr.f32.mxu0 %v763
    %2374 = vmatmul.mubr.f32.gmra.mxu0 %v762
    %v2375 = vpop.f32.mrf.mxu0
    %v2376 = vadd.f32 0.0, %v2375
    %v2377 = vpop.f32.mrf.mxu0
    %2378 = vmatprep.mubr.f32.mxu0 %v767
    %2379 = vmatmul.mubr.f32.gmra.mxu0 %v766
    %v2380 = vpop.f32.mrf.mxu0
    %v2381 = vadd.f32 0.0, %v2380
    %v2382 = vpop.f32.mrf.mxu0
    %2383 = vmatprep.mubr.f32.mxu0 %v771
    %2384 = vmatmul.mubr.f32.gmra.mxu0 %v770
    %v2385 = vpop.f32.mrf.mxu0
    %v2386 = vadd.f32 0.0, %v2385
    %v2387 = vpop.f32.mrf.mxu0
    %2388 = vmatprep.mubr.f32.mxu0 %v775
    %2389 = vmatmul.mubr.f32.gmra.mxu0 %v774
    %v2390 = vpop.f32.mrf.mxu0
    %v2391 = vadd.f32 0.0, %v2390
    %v2392 = vpop.f32.mrf.mxu0
    %2393 = vmatprep.mubr.f32.mxu0 %v779
    %2394 = vmatmul.mubr.f32.gmra.mxu0 %v778
    %v2395 = vpop.f32.mrf.mxu0
    %v2396 = vadd.f32 0.0, %v2395
    %v2397 = vpop.f32.mrf.mxu0
    %2398 = vmatprep.mubr.f32.mxu0 %v783
    %2399 = vmatmul.mubr.f32.gmra.mxu0 %v782
    %v2400 = vpop.f32.mrf.mxu0
    %v2401 = vadd.f32 0.0, %v2400
    %v2402 = vpop.f32.mrf.mxu0
    %2403 = vmatprep.mubr.f32.mxu0 %v787
    %2404 = vmatmul.mubr.f32.gmra.mxu0 %v786
    %v2405 = vpop.f32.mrf.mxu0
    %v2406 = vadd.f32 0.0, %v2405
    %v2407 = vpop.f32.mrf.mxu0
    %2408 = vmatprep.mubr.f32.mxu0 %v791
    %2409 = vmatmul.mubr.f32.gmra.mxu0 %v790
    %v2410 = vpop.f32.mrf.mxu0
    %v2411 = vadd.f32 0.0, %v2410
    %v2412 = vpop.f32.mrf.mxu0
    %2413 = vdwg.mxu0
    %2414 = vmatprep.subr.mxu0 0.0
    %2415 = vmatpush1.msra.mxu0 %v1946
    %2416 = vmatprep.subr.mxu0 0.0
    %2417 = vmatpush1.msra.mxu0 %v1941
    %2418 = vmatprep.subr.mxu0 0.0
    %2419 = vmatpush1.msra.mxu0 %v1936
    %2420 = vmatprep.subr.mxu0 0.0
    %2421 = vmatpush1.msra.mxu0 %v1931
    %2422 = vmatprep.subr.mxu0 0.0
    %2423 = vmatpush1.msra.mxu0 %v1926
    %2424 = vmatprep.subr.mxu0 0.0
    %2425 = vmatpush1.msra.mxu0 %v1921
    %2426 = vmatprep.subr.mxu0 0.0
    %2427 = vmatpush1.msra.mxu0 %v1916
    %2428 = vmatprep.subr.mxu0 0.0
    %2429 = vmatpush1.msra.mxu0 %v1911
    %2430 = vmatprep.subr.mxu0 0.0
    %2431 = vmatpush1.msra.mxu0 %v1906
    %2432 = vmatprep.subr.mxu0 0.0
    %2433 = vmatpush1.msra.mxu0 %v1901
    %2434 = vmatprep.subr.mxu0 0.0
    %2435 = vmatpush1.msra.mxu0 %v1896
    %2436 = vmatprep.subr.mxu0 0.0
    %2437 = vmatpush1.msra.mxu0 %v1891
    %2438 = vmatprep.subr.mxu0 0.0
    %2439 = vmatpush1.msra.mxu0 %v1886
    %2440 = vmatprep.subr.mxu0 0.0
    %2441 = vmatpush1.msra.mxu0 %v1881
    %2442 = vmatprep.subr.mxu0 0.0
    %2443 = vmatpush1.msra.mxu0 %v1876
    %2444 = vmatprep.subr.mxu0 0.0
    %2445 = vmatpush1.msra.mxu0 %v1871
    %2446 = vmatprep.subr.mxu0 0.0
    %2447 = vmatpush2.msra.mxu0 %v2026
    %2448 = vmatprep.subr.mxu0 0.0
    %2449 = vmatpush2.msra.mxu0 %v2021
    %2450 = vmatprep.subr.mxu0 0.0
    %2451 = vmatpush2.msra.mxu0 %v2016
    %2452 = vmatprep.subr.mxu0 0.0
    %2453 = vmatpush2.msra.mxu0 %v2011
    %2454 = vmatprep.subr.mxu0 0.0
    %2455 = vmatpush2.msra.mxu0 %v2006
    %2456 = vmatprep.subr.mxu0 0.0
    %2457 = vmatpush2.msra.mxu0 %v2001
    %2458 = vmatprep.subr.mxu0 0.0
    %2459 = vmatpush2.msra.mxu0 %v1996
    %2460 = vmatprep.subr.mxu0 0.0
    %2461 = vmatpush2.msra.mxu0 %v1991
    %2462 = vmatprep.subr.mxu0 0.0
    %2463 = vmatpush2.msra.mxu0 %v1986
    %2464 = vmatprep.subr.mxu0 0.0
    %2465 = vmatpush2.msra.mxu0 %v1981
    %2466 = vmatprep.subr.mxu0 0.0
    %2467 = vmatpush2.msra.mxu0 %v1976
    %2468 = vmatprep.subr.mxu0 0.0
    %2469 = vmatpush2.msra.mxu0 %v1971
    %2470 = vmatprep.subr.mxu0 0.0
    %2471 = vmatpush2.msra.mxu0 %v1966
    %2472 = vmatprep.subr.mxu0 0.0
    %2473 = vmatpush2.msra.mxu0 %v1961
    %2474 = vmatprep.subr.mxu0 0.0
    %2475 = vmatpush2.msra.mxu0 %v1956
    %2476 = vmatprep.subr.mxu0 0.0
    %2477 = vmatpush2.msra.mxu0 %v1951
    %2478 = vmatprep.mubr.f32.mxu0 %v541
    %2479 = vmatmul.mubr.f32.gmra.mxu0 %v540
    %v2480 = vpop.f32.mrf.mxu0
    %v2481 = vadd.f32 %v2096, %v2480
    %v2482 = vpop.f32.mrf.mxu0
    %2483 = vmatprep.mubr.f32.mxu0 %v545
    %2484 = vmatmul.mubr.f32.gmra.mxu0 %v544
    %v2485 = vpop.f32.mrf.mxu0
    %v2486 = vadd.f32 %v2101, %v2485
    %v2487 = vpop.f32.mrf.mxu0
    %2488 = vmatprep.mubr.f32.mxu0 %v549
    %2489 = vmatmul.mubr.f32.gmra.mxu0 %v548
    %v2490 = vpop.f32.mrf.mxu0
    %v2491 = vadd.f32 %v2106, %v2490
    %v2492 = vpop.f32.mrf.mxu0
    %2493 = vmatprep.mubr.f32.mxu0 %v553
    %2494 = vmatmul.mubr.f32.gmra.mxu0 %v552
    %v2495 = vpop.f32.mrf.mxu0
    %v2496 = vadd.f32 %v2111, %v2495
    %v2497 = vpop.f32.mrf.mxu0
    %2498 = vmatprep.mubr.f32.mxu0 %v557
    %2499 = vmatmul.mubr.f32.gmra.mxu0 %v556
    %v2500 = vpop.f32.mrf.mxu0
    %v2501 = vadd.f32 %v2116, %v2500
    %v2502 = vpop.f32.mrf.mxu0
    %2503 = vmatprep.mubr.f32.mxu0 %v561
    %2504 = vmatmul.mubr.f32.gmra.mxu0 %v560
    %v2505 = vpop.f32.mrf.mxu0
    %v2506 = vadd.f32 %v2121, %v2505
    %v2507 = vpop.f32.mrf.mxu0
    %2508 = vmatprep.mubr.f32.mxu0 %v565
    %2509 = vmatmul.mubr.f32.gmra.mxu0 %v564
    %v2510 = vpop.f32.mrf.mxu0
    %v2511 = vadd.f32 %v2126, %v2510
    %v2512 = vpop.f32.mrf.mxu0
    %2513 = vmatprep.mubr.f32.mxu0 %v569
    %2514 = vmatmul.mubr.f32.gmra.mxu0 %v568
    %v2515 = vpop.f32.mrf.mxu0
    %v2516 = vadd.f32 %v2131, %v2515
    %v2517 = vpop.f32.mrf.mxu0
    %2518 = vmatprep.mubr.f32.mxu0 %v573
    %2519 = vmatmul.mubr.f32.gmra.mxu0 %v572
    %v2520 = vpop.f32.mrf.mxu0
    %v2521 = vadd.f32 %v2136, %v2520
    %v2522 = vpop.f32.mrf.mxu0
    %2523 = vmatprep.mubr.f32.mxu0 %v577
    %2524 = vmatmul.mubr.f32.gmra.mxu0 %v576
    %v2525 = vpop.f32.mrf.mxu0
    %v2526 = vadd.f32 %v2141, %v2525
    %v2527 = vpop.f32.mrf.mxu0
    %2528 = vmatprep.mubr.f32.mxu0 %v581
    %2529 = vmatmul.mubr.f32.gmra.mxu0 %v580
    %v2530 = vpop.f32.mrf.mxu0
    %v2531 = vadd.f32 %v2146, %v2530
    %v2532 = vpop.f32.mrf.mxu0
    %2533 = vmatprep.mubr.f32.mxu0 %v585
    %2534 = vmatmul.mubr.f32.gmra.mxu0 %v584
    %v2535 = vpop.f32.mrf.mxu0
    %v2536 = vadd.f32 %v2151, %v2535
    %v2537 = vpop.f32.mrf.mxu0
    %2538 = vmatprep.mubr.f32.mxu0 %v589
    %2539 = vmatmul.mubr.f32.gmra.mxu0 %v588
    %v2540 = vpop.f32.mrf.mxu0
    %v2541 = vadd.f32 %v2156, %v2540
    %v2542 = vpop.f32.mrf.mxu0
    %2543 = vmatprep.mubr.f32.mxu0 %v593
    %2544 = vmatmul.mubr.f32.gmra.mxu0 %v592
    %v2545 = vpop.f32.mrf.mxu0
    %v2546 = vadd.f32 %v2161, %v2545
    %v2547 = vpop.f32.mrf.mxu0
    %2548 = vmatprep.mubr.f32.mxu0 %v597
    %2549 = vmatmul.mubr.f32.gmra.mxu0 %v596
    %v2550 = vpop.f32.mrf.mxu0
    %v2551 = vadd.f32 %v2166, %v2550
    %v2552 = vpop.f32.mrf.mxu0
    %2553 = vmatprep.mubr.f32.mxu0 %v601
    %2554 = vmatmul.mubr.f32.gmra.mxu0 %v600
    %v2555 = vpop.f32.mrf.mxu0
    %v2556 = vadd.f32 %v2171, %v2555
    %v2557 = vpop.f32.mrf.mxu0
    %2558 = vmatprep.mubr.f32.mxu0 %v605
    %2559 = vmatmul.mubr.f32.gmra.mxu0 %v604
    %v2560 = vpop.f32.mrf.mxu0
    %v2561 = vadd.f32 %v2176, %v2560
    %v2562 = vpop.f32.mrf.mxu0
    %2563 = vmatprep.mubr.f32.mxu0 %v609
    %2564 = vmatmul.mubr.f32.gmra.mxu0 %v608
    %v2565 = vpop.f32.mrf.mxu0
    %v2566 = vadd.f32 %v2181, %v2565
    %v2567 = vpop.f32.mrf.mxu0
    %2568 = vmatprep.mubr.f32.mxu0 %v613
    %2569 = vmatmul.mubr.f32.gmra.mxu0 %v612
    %v2570 = vpop.f32.mrf.mxu0
    %v2571 = vadd.f32 %v2186, %v2570
    %v2572 = vpop.f32.mrf.mxu0
    %2573 = vmatprep.mubr.f32.mxu0 %v617
    %2574 = vmatmul.mubr.f32.gmra.mxu0 %v616
    %v2575 = vpop.f32.mrf.mxu0
    %v2576 = vadd.f32 %v2191, %v2575
    %v2577 = vpop.f32.mrf.mxu0
    %2578 = vmatprep.mubr.f32.mxu0 %v621
    %2579 = vmatmul.mubr.f32.gmra.mxu0 %v620
    %v2580 = vpop.f32.mrf.mxu0
    %v2581 = vadd.f32 %v2196, %v2580
    %v2582 = vpop.f32.mrf.mxu0
    %2583 = vmatprep.mubr.f32.mxu0 %v625
    %2584 = vmatmul.mubr.f32.gmra.mxu0 %v624
    %v2585 = vpop.f32.mrf.mxu0
    %v2586 = vadd.f32 %v2201, %v2585
    %v2587 = vpop.f32.mrf.mxu0
    %2588 = vmatprep.mubr.f32.mxu0 %v629
    %2589 = vmatmul.mubr.f32.gmra.mxu0 %v628
    %v2590 = vpop.f32.mrf.mxu0
    %v2591 = vadd.f32 %v2206, %v2590
    %v2592 = vpop.f32.mrf.mxu0
    %2593 = vmatprep.mubr.f32.mxu0 %v633
    %2594 = vmatmul.mubr.f32.gmra.mxu0 %v632
    %v2595 = vpop.f32.mrf.mxu0
    %v2596 = vadd.f32 %v2211, %v2595
    %v2597 = vpop.f32.mrf.mxu0
    %2598 = vmatprep.mubr.f32.mxu0 %v637
    %2599 = vmatmul.mubr.f32.gmra.mxu0 %v636
    %v2600 = vpop.f32.mrf.mxu0
    %v2601 = vadd.f32 %v2216, %v2600
    %v2602 = vpop.f32.mrf.mxu0
    %2603 = vmatprep.mubr.f32.mxu0 %v641
    %2604 = vmatmul.mubr.f32.gmra.mxu0 %v640
    %v2605 = vpop.f32.mrf.mxu0
    %v2606 = vadd.f32 %v2221, %v2605
    %v2607 = vpop.f32.mrf.mxu0
    %2608 = vmatprep.mubr.f32.mxu0 %v645
    %2609 = vmatmul.mubr.f32.gmra.mxu0 %v644
    %v2610 = vpop.f32.mrf.mxu0
    %v2611 = vadd.f32 %v2226, %v2610
    %v2612 = vpop.f32.mrf.mxu0
    %2613 = vmatprep.mubr.f32.mxu0 %v649
    %2614 = vmatmul.mubr.f32.gmra.mxu0 %v648
    %v2615 = vpop.f32.mrf.mxu0
    %v2616 = vadd.f32 %v2231, %v2615
    %v2617 = vpop.f32.mrf.mxu0
    %2618 = vmatprep.mubr.f32.mxu0 %v653
    %2619 = vmatmul.mubr.f32.gmra.mxu0 %v652
    %v2620 = vpop.f32.mrf.mxu0
    %v2621 = vadd.f32 %v2236, %v2620
    %v2622 = vpop.f32.mrf.mxu0
    %2623 = vmatprep.mubr.f32.mxu0 %v657
    %2624 = vmatmul.mubr.f32.gmra.mxu0 %v656
    %v2625 = vpop.f32.mrf.mxu0
    %v2626 = vadd.f32 %v2241, %v2625
    %v2627 = vpop.f32.mrf.mxu0
    %2628 = vmatprep.mubr.f32.mxu0 %v661
    %2629 = vmatmul.mubr.f32.gmra.mxu0 %v660
    %v2630 = vpop.f32.mrf.mxu0
    %v2631 = vadd.f32 %v2246, %v2630
    %v2632 = vpop.f32.mrf.mxu0
    %2633 = vmatprep.mubr.f32.mxu0 %v665
    %2634 = vmatmul.mubr.f32.gmra.mxu0 %v664
    %v2635 = vpop.f32.mrf.mxu0
    %v2636 = vadd.f32 %v2251, %v2635
    %v2637 = vpop.f32.mrf.mxu0
    %2638 = vmatprep.mubr.f32.mxu0 %v669
    %2639 = vmatmul.mubr.f32.gmra.mxu0 %v668
    %v2640 = vpop.f32.mrf.mxu0
    %v2641 = vadd.f32 %v2256, %v2640
    %v2642 = vpop.f32.mrf.mxu0
    %2643 = vmatprep.mubr.f32.mxu0 %v673
    %2644 = vmatmul.mubr.f32.gmra.mxu0 %v672
    %v2645 = vpop.f32.mrf.mxu0
    %v2646 = vadd.f32 %v2261, %v2645
    %v2647 = vpop.f32.mrf.mxu0
    %2648 = vmatprep.mubr.f32.mxu0 %v677
    %2649 = vmatmul.mubr.f32.gmra.mxu0 %v676
    %v2650 = vpop.f32.mrf.mxu0
    %v2651 = vadd.f32 %v2266, %v2650
    %v2652 = vpop.f32.mrf.mxu0
    %2653 = vmatprep.mubr.f32.mxu0 %v681
    %2654 = vmatmul.mubr.f32.gmra.mxu0 %v680
    %v2655 = vpop.f32.mrf.mxu0
    %v2656 = vadd.f32 %v2271, %v2655
    %v2657 = vpop.f32.mrf.mxu0
    %2658 = vmatprep.mubr.f32.mxu0 %v685
    %2659 = vmatmul.mubr.f32.gmra.mxu0 %v684
    %v2660 = vpop.f32.mrf.mxu0
    %v2661 = vadd.f32 %v2276, %v2660
    %v2662 = vpop.f32.mrf.mxu0
    %2663 = vmatprep.mubr.f32.mxu0 %v689
    %2664 = vmatmul.mubr.f32.gmra.mxu0 %v688
    %v2665 = vpop.f32.mrf.mxu0
    %v2666 = vadd.f32 %v2281, %v2665
    %v2667 = vpop.f32.mrf.mxu0
    %2668 = vmatprep.mubr.f32.mxu0 %v693
    %2669 = vmatmul.mubr.f32.gmra.mxu0 %v692
    %v2670 = vpop.f32.mrf.mxu0
    %v2671 = vadd.f32 %v2286, %v2670
    %v2672 = vpop.f32.mrf.mxu0
    %2673 = vmatprep.mubr.f32.mxu0 %v697
    %2674 = vmatmul.mubr.f32.gmra.mxu0 %v696
    %v2675 = vpop.f32.mrf.mxu0
    %v2676 = vadd.f32 %v2291, %v2675
    %v2677 = vpop.f32.mrf.mxu0
    %2678 = vmatprep.mubr.f32.mxu0 %v701
    %2679 = vmatmul.mubr.f32.gmra.mxu0 %v700
    %v2680 = vpop.f32.mrf.mxu0
    %v2681 = vadd.f32 %v2296, %v2680
    %v2682 = vpop.f32.mrf.mxu0
    %2683 = vmatprep.mubr.f32.mxu0 %v705
    %2684 = vmatmul.mubr.f32.gmra.mxu0 %v704
    %v2685 = vpop.f32.mrf.mxu0
    %v2686 = vadd.f32 %v2301, %v2685
    %v2687 = vpop.f32.mrf.mxu0
    %2688 = vmatprep.mubr.f32.mxu0 %v709
    %2689 = vmatmul.mubr.f32.gmra.mxu0 %v708
    %v2690 = vpop.f32.mrf.mxu0
    %v2691 = vadd.f32 %v2306, %v2690
    %v2692 = vpop.f32.mrf.mxu0
    %2693 = vmatprep.mubr.f32.mxu0 %v713
    %2694 = vmatmul.mubr.f32.gmra.mxu0 %v712
    %v2695 = vpop.f32.mrf.mxu0
    %v2696 = vadd.f32 %v2311, %v2695
    %v2697 = vpop.f32.mrf.mxu0
    %2698 = vmatprep.mubr.f32.mxu0 %v717
    %2699 = vmatmul.mubr.f32.gmra.mxu0 %v716
    %v2700 = vpop.f32.mrf.mxu0
    %v2701 = vadd.f32 %v2316, %v2700
    %v2702 = vpop.f32.mrf.mxu0
    %2703 = vmatprep.mubr.f32.mxu0 %v721
    %2704 = vmatmul.mubr.f32.gmra.mxu0 %v720
    %v2705 = vpop.f32.mrf.mxu0
    %v2706 = vadd.f32 %v2321, %v2705
    %v2707 = vpop.f32.mrf.mxu0
    %2708 = vmatprep.mubr.f32.mxu0 %v725
    %2709 = vmatmul.mubr.f32.gmra.mxu0 %v724
    %v2710 = vpop.f32.mrf.mxu0
    %v2711 = vadd.f32 %v2326, %v2710
    %v2712 = vpop.f32.mrf.mxu0
    %2713 = vmatprep.mubr.f32.mxu0 %v729
    %2714 = vmatmul.mubr.f32.gmra.mxu0 %v728
    %v2715 = vpop.f32.mrf.mxu0
    %v2716 = vadd.f32 %v2331, %v2715
    %v2717 = vpop.f32.mrf.mxu0
    %2718 = vmatprep.mubr.f32.mxu0 %v733
    %2719 = vmatmul.mubr.f32.gmra.mxu0 %v732
    %v2720 = vpop.f32.mrf.mxu0
    %v2721 = vadd.f32 %v2336, %v2720
    %v2722 = vpop.f32.mrf.mxu0
    %2723 = vmatprep.mubr.f32.mxu0 %v737
    %2724 = vmatmul.mubr.f32.gmra.mxu0 %v736
    %v2725 = vpop.f32.mrf.mxu0
    %v2726 = vadd.f32 %v2341, %v2725
    %v2727 = vpop.f32.mrf.mxu0
    %2728 = vmatprep.mubr.f32.mxu0 %v741
    %2729 = vmatmul.mubr.f32.gmra.mxu0 %v740
    %v2730 = vpop.f32.mrf.mxu0
    %v2731 = vadd.f32 %v2346, %v2730
    %v2732 = vpop.f32.mrf.mxu0
    %2733 = vmatprep.mubr.f32.mxu0 %v745
    %2734 = vmatmul.mubr.f32.gmra.mxu0 %v744
    %v2735 = vpop.f32.mrf.mxu0
    %v2736 = vadd.f32 %v2351, %v2735
    %v2737 = vpop.f32.mrf.mxu0
    %2738 = vmatprep.mubr.f32.mxu0 %v749
    %2739 = vmatmul.mubr.f32.gmra.mxu0 %v748
    %v2740 = vpop.f32.mrf.mxu0
    %v2741 = vadd.f32 %v2356, %v2740
    %v2742 = vpop.f32.mrf.mxu0
    %2743 = vmatprep.mubr.f32.mxu0 %v753
    %2744 = vmatmul.mubr.f32.gmra.mxu0 %v752
    %v2745 = vpop.f32.mrf.mxu0
    %v2746 = vadd.f32 %v2361, %v2745
    %v2747 = vpop.f32.mrf.mxu0
    %2748 = vmatprep.mubr.f32.mxu0 %v757
    %2749 = vmatmul.mubr.f32.gmra.mxu0 %v756
    %v2750 = vpop.f32.mrf.mxu0
    %v2751 = vadd.f32 %v2366, %v2750
    %v2752 = vpop.f32.mrf.mxu0
    %2753 = vmatprep.mubr.f32.mxu0 %v761
    %2754 = vmatmul.mubr.f32.gmra.mxu0 %v760
    %v2755 = vpop.f32.mrf.mxu0
    %v2756 = vadd.f32 %v2371, %v2755
    %v2757 = vpop.f32.mrf.mxu0
    %2758 = vmatprep.mubr.f32.mxu0 %v765
    %2759 = vmatmul.mubr.f32.gmra.mxu0 %v764
    %v2760 = vpop.f32.mrf.mxu0
    %v2761 = vadd.f32 %v2376, %v2760
    %v2762 = vpop.f32.mrf.mxu0
    %2763 = vmatprep.mubr.f32.mxu0 %v769
    %2764 = vmatmul.mubr.f32.gmra.mxu0 %v768
    %v2765 = vpop.f32.mrf.mxu0
    %v2766 = vadd.f32 %v2381, %v2765
    %v2767 = vpop.f32.mrf.mxu0
    %2768 = vmatprep.mubr.f32.mxu0 %v773
    %2769 = vmatmul.mubr.f32.gmra.mxu0 %v772
    %v2770 = vpop.f32.mrf.mxu0
    %v2771 = vadd.f32 %v2386, %v2770
    %v2772 = vpop.f32.mrf.mxu0
    %2773 = vmatprep.mubr.f32.mxu0 %v777
    %2774 = vmatmul.mubr.f32.gmra.mxu0 %v776
    %v2775 = vpop.f32.mrf.mxu0
    %v2776 = vadd.f32 %v2391, %v2775
    %v2777 = vpop.f32.mrf.mxu0
    %2778 = vmatprep.mubr.f32.mxu0 %v781
    %2779 = vmatmul.mubr.f32.gmra.mxu0 %v780
    %v2780 = vpop.f32.mrf.mxu0
    %v2781 = vadd.f32 %v2396, %v2780
    %v2782 = vpop.f32.mrf.mxu0
    %2783 = vmatprep.mubr.f32.mxu0 %v785
    %2784 = vmatmul.mubr.f32.gmra.mxu0 %v784
    %v2785 = vpop.f32.mrf.mxu0
    %v2786 = vadd.f32 %v2401, %v2785
    %v2787 = vpop.f32.mrf.mxu0
    %2788 = vmatprep.mubr.f32.mxu0 %v789
    %2789 = vmatmul.mubr.f32.gmra.mxu0 %v788
    %v2790 = vpop.f32.mrf.mxu0
    %v2791 = vadd.f32 %v2406, %v2790
    %v2792 = vpop.f32.mrf.mxu0
    %2793 = vmatprep.mubr.f32.mxu0 %v793
    %2794 = vmatmul.mubr.f32.gmra.mxu0 %v792
    %v2795 = vpop.f32.mrf.mxu0
    %v2796 = vadd.f32 %v2411, %v2795
    %v2797 = vpop.f32.mrf.mxu0
    %2798 = vdwg.mxu0
    %2799 = vst [vmem:[#allocation10] sm:$0xff] %v2481
    %2800 = vst [vmem:[#allocation10 + $0x8] sm:$0xff] %v2486
    %2801 = vst [vmem:[#allocation10 + $0x10] sm:$0xff] %v2491
    %2802 = vst [vmem:[#allocation10 + $0x18] sm:$0xff] %v2496
    %2803 = vst [vmem:[#allocation10 + $0x20] sm:$0xff] %v2501
    %2804 = vst [vmem:[#allocation10 + $0x28] sm:$0xff] %v2506
    %2805 = vst [vmem:[#allocation10 + $0x30] sm:$0xff] %v2511
    %2806 = vst [vmem:[#allocation10 + $0x38] sm:$0xff] %v2516
    %2807 = vst [vmem:[#allocation10 + $0x40] sm:$0xff] %v2521
    %2808 = vst [vmem:[#allocation10 + $0x48] sm:$0xff] %v2526
    %2809 = vst [vmem:[#allocation10 + $0x50] sm:$0xff] %v2531
    %2810 = vst [vmem:[#allocation10 + $0x58] sm:$0xff] %v2536
    %2811 = vst [vmem:[#allocation10 + $0x60] sm:$0xff] %v2541
    %2812 = vst [vmem:[#allocation10 + $0x68] sm:$0xff] %v2546
    %2813 = vst [vmem:[#allocation10 + $0x70] sm:$0xff] %v2551
    %2814 = vst [vmem:[#allocation10 + $0x78] sm:$0xff] %v2556
    %2815 = vst [vmem:[#allocation10 + $0x80] sm:$0xff] %v2561
    %2816 = vst [vmem:[#allocation10 + $0x88] sm:$0xff] %v2566
    %2817 = vst [vmem:[#allocation10 + $0x90] sm:$0xff] %v2571
    %2818 = vst [vmem:[#allocation10 + $0x98] sm:$0xff] %v2576
    %2819 = vst [vmem:[#allocation10 + $0xa0] sm:$0xff] %v2581
    %2820 = vst [vmem:[#allocation10 + $0xa8] sm:$0xff] %v2586
    %2821 = vst [vmem:[#allocation10 + $0xb0] sm:$0xff] %v2591
    %2822 = vst [vmem:[#allocation10 + $0xb8] sm:$0xff] %v2596
    %2823 = vst [vmem:[#allocation10 + $0xc0] sm:$0xff] %v2601
    %2824 = vst [vmem:[#allocation10 + $0xc8] sm:$0xff] %v2606
    %2825 = vst [vmem:[#allocation10 + $0xd0] sm:$0xff] %v2611
    %2826 = vst [vmem:[#allocation10 + $0xd8] sm:$0xff] %v2616
    %2827 = vst [vmem:[#allocation10 + $0xe0] sm:$0xff] %v2621
    %2828 = vst [vmem:[#allocation10 + $0xe8] sm:$0xff] %v2626
    %2829 = vst [vmem:[#allocation10 + $0xf0] sm:$0xff] %v2631
    %2830 = vst [vmem:[#allocation10 + $0xf8] sm:$0xff] %v2636
    %2831 = vst [vmem:[#allocation10 + $0x100] sm:$0xff] %v2641
    %2832 = vst [vmem:[#allocation10 + $0x108] sm:$0xff] %v2646
    %2833 = vst [vmem:[#allocation10 + $0x110] sm:$0xff] %v2651
    %2834 = vst [vmem:[#allocation10 + $0x118] sm:$0xff] %v2656
    %2835 = vst [vmem:[#allocation10 + $0x120] sm:$0xff] %v2661
    %2836 = vst [vmem:[#allocation10 + $0x128] sm:$0xff] %v2666
    %2837 = vst [vmem:[#allocation10 + $0x130] sm:$0xff] %v2671
    %2838 = vst [vmem:[#allocation10 + $0x138] sm:$0xff] %v2676
    %2839 = vst [vmem:[#allocation10 + $0x140] sm:$0xff] %v2681
    %2840 = vst [vmem:[#allocation10 + $0x148] sm:$0xff] %v2686
    %2841 = vst [vmem:[#allocation10 + $0x150] sm:$0xff] %v2691
    %2842 = vst [vmem:[#allocation10 + $0x158] sm:$0xff] %v2696
    %2843 = vst [vmem:[#allocation10 + $0x160] sm:$0xff] %v2701
    %2844 = vst [vmem:[#allocation10 + $0x168] sm:$0xff] %v2706
    %2845 = vst [vmem:[#allocation10 + $0x170] sm:$0xff] %v2711
    %2846 = vst [vmem:[#allocation10 + $0x178] sm:$0xff] %v2716
    %2847 = vst [vmem:[#allocation10 + $0x180] sm:$0xff] %v2721
    %2848 = vst [vmem:[#allocation10 + $0x188] sm:$0xff] %v2726
    %2849 = vst [vmem:[#allocation10 + $0x190] sm:$0xff] %v2731
    %2850 = vst [vmem:[#allocation10 + $0x198] sm:$0xff] %v2736
    %2851 = vst [vmem:[#allocation10 + $0x1a0] sm:$0xff] %v2741
    %2852 = vst [vmem:[#allocation10 + $0x1a8] sm:$0xff] %v2746
    %2853 = vst [vmem:[#allocation10 + $0x1b0] sm:$0xff] %v2751
    %2854 = vst [vmem:[#allocation10 + $0x1b8] sm:$0xff] %v2756
    %2855 = vst [vmem:[#allocation10 + $0x1c0] sm:$0xff] %v2761
    %2856 = vst [vmem:[#allocation10 + $0x1c8] sm:$0xff] %v2766
    %2857 = vst [vmem:[#allocation10 + $0x1d0] sm:$0xff] %v2771
    %2858 = vst [vmem:[#allocation10 + $0x1d8] sm:$0xff] %v2776
    %2859 = vst [vmem:[#allocation10 + $0x1e0] sm:$0xff] %v2781
    %2860 = vst [vmem:[#allocation10 + $0x1e8] sm:$0xff] %v2786
    %2861 = vst [vmem:[#allocation10 + $0x1f0] sm:$0xff] %v2791
    %2862 = vst [vmem:[#allocation10 + $0x1f8] sm:$0xff] %v2796
    // Predicated region
    $region34: #{tpu_custom_call.1} parent=1 // pred_check
      _
    $region35: #{tpu_custom_call.1} parent=1 // pred_check_branch
      %2864 = sbr.rel (0) target = $region37
    $region36: #{tpu_custom_call.1} parent=1 // pred_region
      %s2866 = ssub.s32 8192, 8192
      %2867 = vsyncadd [#allocation4], %s2866
      %s2868 = sshll.u32 [#allocation10], 4
      %s2869 = int_to_ptr.vmem [resolvable:$true] %s2868
      %2874 = dma.vmem_to_hbm [thread:$0]  %s2869, 8192, %s4, [#allocation4], 128, 128, 8
    $region37: #{tpu_custom_call.1} parent=1 // pred_fallthru
      _
    // Predicated region
    $region38: #{tpu_custom_call.1} parent=1 // pred_check
      _
    $region39: #{tpu_custom_call.1} parent=1 // pred_check_branch
      %2876 = sbr.rel (0) target = $region41
    $region40: #{tpu_custom_call.1} parent=1 // pred_region
      %2877 = dma.done [#allocation4], 8192
    $region41: #{tpu_custom_call.1} parent=1 // pred_fallthru
      _
    %2878 = vsyncpa [#allocation3], 1
    %2879 = vsyncpa [#allocation6], 1
    %2880 = vsyncpa [#allocation9], 1
    %2881 = vsyncpa [#allocation4], 1

</llo_original>
